<compile_context>
chip_gen: v7x
topology: tpu7x:2x2x1
jax: 0.10.0
libtpu: 0.0.40
codegen_flags: <defaults>
</compile_context>

<pallas_src>
import jax
import jax.numpy as jnp
from jax.experimental import pallas as pl
from jax.experimental.pallas import tpu as pltpu


# ----------------------------- constants -----------------------------------

CONV1_OUT = 16
CONV2_OUT = 32
OH1, OW1 = 24, 24                  # conv1 output spatial: (100-8)//4 + 1
OH2, OW2 = 11, 11                  # conv2 output spatial: (24-4)//2 + 1
FC1_IN = CONV2_OUT * OH2 * OW2     # 3872
FC1_OUT = 256

_VMEM = pl.BlockSpec(memory_space=pltpu.MemorySpace.VMEM)


# ----------------------------- Pallas kernels -------------------------------

def _mm_bias_relu_kernel(a_ref, w_ref, b_ref, o_ref):
    # o = relu(a @ w + b); a:(M,K) w:(K,N) b:(1,N); cast once to o's dtype.
    acc = jnp.dot(a_ref[...], w_ref[...], preferred_element_type=jnp.float32)
    o_ref[...] = jnp.maximum(acc + b_ref[...], 0.0).astype(o_ref.dtype)


def _head_kernel(x_ref, w1_ref, b1_ref, w2_ref, b2_ref, o_ref):
    # fc1: bf16 operands on the MXU with f32 accumulation (no activation,
    # matching the reference forward), then fc2, then softmax -- all resident
    # in VMEM as a single block (no K grid / accumulator needed).
    h = jnp.dot(x_ref[...], w1_ref[...], preferred_element_type=jnp.float32)
    h = h + b1_ref[...]
    logits = jnp.dot(h, w2_ref[...], preferred_element_type=jnp.float32)
    logits = logits + b2_ref[...]
    m = jnp.max(logits, axis=-1, keepdims=True)
    e = jnp.exp(logits - m)
    # Exact reciprocal: these probabilities feed Categorical sampling.
    o_ref[...] = e / jnp.sum(e, axis=-1, keepdims=True)


# ----------------------------- kernel wrappers ------------------------------

def conv1_mm(patches, w, b):
    """relu(patches @ w + b), gridded over batch ('parallel' -> v7x megacore)."""
    M, kdim = patches.shape                   # (B*576, 64)
    rows = OH1 * OW1                          # 576 rows per batch element
    return pl.pallas_call(
        _mm_bias_relu_kernel,
        out_shape=jax.ShapeDtypeStruct((M, CONV1_OUT), jnp.float32),
        grid_spec=pltpu.PrefetchScalarGridSpec(
            num_scalar_prefetch=0,
            grid=(M // rows,),
            in_specs=[pl.BlockSpec((rows, kdim), lambda i: (i, 0)),
                      pl.BlockSpec((kdim, CONV1_OUT), lambda i: (0, 0)),
                      pl.BlockSpec((1, CONV1_OUT), lambda i: (0, 0))],
            out_specs=pl.BlockSpec((rows, CONV1_OUT), lambda i: (i, 0))),
        compiler_params=pltpu.CompilerParams(dimension_semantics=("parallel",)),
    )(patches, w, b)


def conv2_mm(patches, w, b):
    """relu(patches @ w + b); tiny problem, one full-VMEM block, bf16 output."""
    M = patches.shape[0]                      # B * 121
    return pl.pallas_call(
        _mm_bias_relu_kernel,
        out_shape=jax.ShapeDtypeStruct((M, CONV2_OUT), jnp.bfloat16),
        in_specs=[_VMEM, _VMEM, _VMEM],
        out_specs=_VMEM,
    )(patches, w, b)


def fc_head_softmax(flat, w1, b1, w2, b2):
    """Fused fc1 -> fc2 -> softmax as one full-VMEM block (no K grid/pad)."""
    B = flat.shape[0]
    A = w2.shape[1]
    return pl.pallas_call(
        _head_kernel,
        out_shape=jax.ShapeDtypeStruct((B, A), jnp.float32),
        in_specs=[_VMEM] * 5,
        out_specs=_VMEM,
    )(flat, w1, b1, w2, b2)


# ----------------------------- JAX glue (im2col, NHWC) ----------------------

def im2col_k2s(x, stride):
    """im2col for kernel_size == 2*stride (true for both convs here).

    x: (B, H, W, C) NHWC -> (B*OH*OW, (2*stride)^2*C), feature order (kh,kw,c).
    Each patch is a 2x2 group of (stride x stride) tiles, so the im2col is
    4 static slices + 2 concats instead of k*k strided slices + concat.
    """
    B, H, W, C = x.shape
    s = stride
    gh, gw = H // s, W // s
    oh, ow = gh - 1, gw - 1
    x5 = x.reshape(B, gh, s, gw, s, C)
    row_blocks = []
    for di in (0, 1):
        col_blocks = []
        for dj in (0, 1):
            t = x5[:, di:di + oh, :, dj:dj + ow, :, :]            # (B,oh,s,ow,s,C)
            col_blocks.append(jnp.transpose(t, (0, 1, 3, 2, 4, 5)))  # (B,oh,ow,s,s,C)
        row_blocks.append(jnp.concatenate(col_blocks, axis=4))    # (B,oh,ow,s,2s,C)
    p = jnp.concatenate(row_blocks, axis=3)                       # (B,oh,ow,2s,2s,C)
    return p.reshape(B * oh * ow, 4 * s * s * C), oh, ow


# ----------------------------- parameter prep (one-time) --------------------

def prepare_actor_params(params):
    """One-time conversion of PyTorch-layout params into kernel-ready layouts."""
    # Conv weights (out, c, kh, kw) -> (kh*kw*c, out) to match NHWC im2col order.
    w1 = params["conv1_w"].transpose(2, 3, 1, 0).reshape(1 * 8 * 8, CONV1_OUT)
    w2 = params["conv2_w"].transpose(2, 3, 1, 0).reshape(CONV1_OUT * 4 * 4, CONV2_OUT)
    # fc1: PyTorch flattens NCHW (c, h, w); our activations flatten NHWC (h, w, c).
    # Permute the weight rows once so the forward never transposes activations.
    fc1 = params["fc1_w"].reshape(FC1_OUT, CONV2_OUT, OH2, OW2)
    fc1 = fc1.transpose(2, 3, 1, 0).reshape(FC1_IN, FC1_OUT).astype(jnp.bfloat16)
    return {
        "w1": w1, "b1": params["conv1_b"].reshape(1, CONV1_OUT),
        "w2": w2, "b2": params["conv2_b"].reshape(1, CONV2_OUT),
        "fc1_w": fc1, "fc1_b": params["fc1_b"].reshape(1, FC1_OUT),
        "fc2_w": params["fc2_w"].T, "fc2_b": params["fc2_b"].reshape(1, -1),
    }


# ----------------------------- Actor forward --------------------------------

def actor_forward(kp, x):
    """x: (B, 1, 100, 100) f32 NCHW -> (B, action_dim) action probabilities."""
    B = x.shape[0]
    # C == 1, so NCHW -> NHWC is a free reshape (identical memory layout).
    x_nhwc = x.reshape(B, x.shape[2], x.shape[3], 1)

    # conv1: Conv2d(1, 16, k=8, s=4) + ReLU  (4-slice im2col + fused matmul kernel)
    patches1, _, _ = im2col_k2s(x_nhwc, 4)                        # (B*576, 64)
    y1 = conv1_mm(patches1, kp["w1"], kp["b1"])                   # (B*576, 16) f32

    # conv2: Conv2d(16, 32, k=4, s=2) + ReLU  (bf16 output -> flat stays bf16)
    y1_nhwc = y1.reshape(B, OH1, OW1, CONV1_OUT)
    patches2, _, _ = im2col_k2s(y1_nhwc, 2)                       # (B*121, 256)
    y2 = conv2_mm(patches2, kp["w2"], kp["b2"])                   # (B*121, 32) bf16

    # NHWC flatten (contiguity-preserving reshape); no K padding needed.
    flat = y2.reshape(B, FC1_IN)                                  # (B, 3872) bf16

    # fc1 (3872->256, no activation) -> fc2 (256->A) -> softmax, one fused kernel.
    return fc_head_softmax(flat, kp["fc1_w"], kp["fc1_b"], kp["fc2_w"], kp["fc2_b"])


# ----------------------------- init / demo ----------------------------------

def init_params(key, action_dim):
    """PyTorch-layout parameters (same init scheme as nn.Conv2d / nn.Linear)."""
    ks = jax.random.split(key, 8)

    def uni(k, shape, fan_in):
        bound = 1.0 / jnp.sqrt(fan_in)
        return jax.random.uniform(k, shape, jnp.float32, -bound, bound)

    return {
        "conv1_w": uni(ks[0], (16, 1, 8, 8), 1 * 8 * 8),
        "conv1_b": uni(ks[1], (16,), 1 * 8 * 8),
        "conv2_w": uni(ks[2], (32, 16, 4, 4), 16 * 4 * 4),
        "conv2_b": uni(ks[3], (32,), 16 * 4 * 4),
        "fc1_w": uni(ks[4], (FC1_OUT, FC1_IN), FC1_IN),
        "fc1_b": uni(ks[5], (FC1_OUT,), FC1_IN),
        "fc2_w": uni(ks[6], (action_dim, FC1_OUT), FC1_OUT),
        "fc2_b": uni(ks[7], (action_dim,), FC1_OUT),
    }


if __name__ == "__main__":
    key = jax.random.PRNGKey(0)
    k_param, k_x = jax.random.split(key)

    action_dim = 4                       # len([[5,0],[0,5],[-5,0],[0,-5]])
    batch = 2
    x = jax.random.uniform(k_x, (batch, 1, 100, 100), jnp.float32)  # env grid in [0,1)

    params = init_params(k_param, action_dim)
    kparams = prepare_actor_params(params)      # one-time weight re-layout (matmul-ready)

    fwd = jax.jit(actor_forward)
    probs = jax.block_until_ready(fwd(kparams, x))

    assert probs.shape == (batch, action_dim)
    row_sums = jnp.sum(probs, axis=-1)
    assert bool(jnp.all(jnp.abs(row_sums - 1.0) < 1e-4))   # exact softmax reciprocal
    assert bool(jnp.all(probs >= 0.0))

    print("KERNEL_OK")
</pallas_src>

<mosaic_0001>
module attributes {stable_mosaic.version = 11 : i64} {
  func.func @_mm_bias_relu_kernel(%arg0: i32, %arg1: memref<576x64xf32, #tpu.memory_space<vmem>>, %arg2: memref<64x16xf32, #tpu.memory_space<vmem>>, %arg3: memref<1x16xf32, #tpu.memory_space<vmem>>, %arg4: memref<576x16xf32, #tpu.memory_space<vmem>>) attributes {dimension_semantics = [#tpu.dimension_semantics<parallel>], iteration_bounds = array<i64: 2>, scalar_prefetch = 0 : i64, scratch_operands = 0 : i64, tpu.core_type = #tpu.core_type<tc>, window_params = [{transform_indices = @transform_0, window_bounds = array<i64: 576, 64>}, {pipeline_mode = #tpu.pipeline_mode<synchronous>, transform_indices = @transform_1, window_bounds = array<i64: 64, 16>}, {pipeline_mode = #tpu.pipeline_mode<synchronous>, transform_indices = @transform_2, window_bounds = array<i64: 1, 16>}, {transform_indices = @transform_3, window_bounds = array<i64: 576, 16>}]} {
    %c0 = arith.constant 0 : index
    %c0_0 = arith.constant 0 : index
    %0 = vector.load %arg1[%c0, %c0_0] : memref<576x64xf32, #tpu.memory_space<vmem>>, vector<576x64xf32>
    %c0_1 = arith.constant 0 : index
    %c0_2 = arith.constant 0 : index
    %1 = vector.load %arg2[%c0_1, %c0_2] : memref<64x16xf32, #tpu.memory_space<vmem>>, vector<64x16xf32>
    %cst = arith.constant dense<0.000000e+00> : vector<576x16xf32>
    %2 = tpu.matmul %0, %1, %cst {dimension_numbers = #tpu.dot_dimension_numbers<[1], [0], [0], [1], [0, 0, 1, 1], [], []>} : vector<576x64xf32>, vector<64x16xf32>, vector<576x16xf32> -> vector<576x16xf32>
    %c0_3 = arith.constant 0 : index
    %c0_4 = arith.constant 0 : index
    %3 = vector.load %arg3[%c0_3, %c0_4] : memref<1x16xf32, #tpu.memory_space<vmem>>, vector<1x16xf32>
    %4 = vector.broadcast %3 : vector<1x16xf32> to vector<576x16xf32>
    %5 = arith.addf %2, %4 : vector<576x16xf32>
    %cst_5 = arith.constant 0.000000e+00 : f32
    %6 = vector.broadcast %cst_5 : f32 to vector<576x16xf32>
    %7 = arith.maximumf %5, %6 : vector<576x16xf32>
    %c0_6 = arith.constant 0 : index
    %c0_7 = arith.constant 0 : index
    %8 = vector.load %arg4[%c0_6, %c0_7] : memref<576x16xf32, #tpu.memory_space<vmem>>, vector<576x16xf32>
    tpu.vector_store %arg4[%c0_6, %c0_7], %7 {strides = array<i32>} : memref<576x16xf32, #tpu.memory_space<vmem>>, vector<576x16xf32>,
    return
  }
  func.func @transform_0(%arg0: i32) -> (i32, i32) {
    %c0_i32 = arith.constant 0 : i32
    %c0_i32_0 = arith.constant 0 : i32
    return %arg0, %c0_i32 : i32, i32
  }
  func.func @transform_1(%arg0: i32) -> (i32, i32) {
    %c0_i32 = arith.constant 0 : i32
    %c0_i32_0 = arith.constant 0 : i32
    %c0_i32_1 = arith.constant 0 : i32
    return %c0_i32, %c0_i32_0 : i32, i32
  }
  func.func @transform_2(%arg0: i32) -> (i32, i32) {
    %c0_i32 = arith.constant 0 : i32
    %c0_i32_0 = arith.constant 0 : i32
    %c0_i32_1 = arith.constant 0 : i32
    return %c0_i32, %c0_i32_0 : i32, i32
  }
  func.func @transform_3(%arg0: i32) -> (i32, i32) {
    %c0_i32 = arith.constant 0 : i32
    %c0_i32_0 = arith.constant 0 : i32
    return %arg0, %c0_i32 : i32, i32
  }
}

module attributes {stable_mosaic.version = 11 : i64} {
  func.func @_mm_bias_relu_kernel(%arg0: memref<242x256xf32, #tpu.memory_space<vmem>>, %arg1: memref<256x32xf32, #tpu.memory_space<vmem>>, %arg2: memref<1x32xf32, #tpu.memory_space<vmem>>, %arg3: memref<242x32xbf16, #tpu.memory_space<vmem>>) attributes {dimension_semantics = [], scalar_prefetch = 0 : i64, scratch_operands = 0 : i64, tpu.core_type = #tpu.core_type<tc>} {
    %c0 = arith.constant 0 : index
    %c0_0 = arith.constant 0 : index
    %0 = vector.load %arg0[%c0, %c0_0] : memref<242x256xf32, #tpu.memory_space<vmem>>, vector<242x256xf32>
    %c0_1 = arith.constant 0 : index
    %c0_2 = arith.constant 0 : index
    %1 = vector.load %arg1[%c0_1, %c0_2] : memref<256x32xf32, #tpu.memory_space<vmem>>, vector<256x32xf32>
    %cst = arith.constant dense<0.000000e+00> : vector<242x32xf32>
    %2 = tpu.matmul %0, %1, %cst {dimension_numbers = #tpu.dot_dimension_numbers<[1], [0], [0], [1], [0, 0, 1, 1], [], []>} : vector<242x256xf32>, vector<256x32xf32>, vector<242x32xf32> -> vector<242x32xf32>
    %c0_3 = arith.constant 0 : index
    %c0_4 = arith.constant 0 : index
    %3 = vector.load %arg2[%c0_3, %c0_4] : memref<1x32xf32, #tpu.memory_space<vmem>>, vector<1x32xf32>
    %4 = vector.broadcast %3 : vector<1x32xf32> to vector<242x32xf32>
    %5 = arith.addf %2, %4 : vector<242x32xf32>
    %cst_5 = arith.constant 0.000000e+00 : f32
    %6 = vector.broadcast %cst_5 : f32 to vector<242x32xf32>
    %7 = arith.maximumf %5, %6 : vector<242x32xf32>
    %8 = arith.truncf %7 : vector<242x32xf32> to vector<242x32xbf16>
    %c0_6 = arith.constant 0 : index
    %c0_7 = arith.constant 0 : index
    %9 = vector.load %arg3[%c0_6, %c0_7] : memref<242x32xbf16, #tpu.memory_space<vmem>>, vector<242x32xbf16>
    tpu.vector_store %arg3[%c0_6, %c0_7], %8 {strides = array<i32>} : memref<242x32xbf16, #tpu.memory_space<vmem>>, vector<242x32xbf16>,
    return
  }
}

module attributes {stable_mosaic.version = 11 : i64} {
  func.func @_head_kernel(%arg0: memref<2x3872xbf16, #tpu.memory_space<vmem>>, %arg1: memref<3872x256xbf16, #tpu.memory_space<vmem>>, %arg2: memref<1x256xf32, #tpu.memory_space<vmem>>, %arg3: memref<256x4xf32, #tpu.memory_space<vmem>>, %arg4: memref<1x4xf32, #tpu.memory_space<vmem>>, %arg5: memref<2x4xf32, #tpu.memory_space<vmem>>) attributes {dimension_semantics = [], scalar_prefetch = 0 : i64, scratch_operands = 0 : i64, tpu.core_type = #tpu.core_type<tc>} {
    %c0 = arith.constant 0 : index
    %c0_0 = arith.constant 0 : index
    %0 = vector.load %arg0[%c0, %c0_0] : memref<2x3872xbf16, #tpu.memory_space<vmem>>, vector<2x3872xbf16>
    %c0_1 = arith.constant 0 : index
    %c0_2 = arith.constant 0 : index
    %1 = vector.load %arg1[%c0_1, %c0_2] : memref<3872x256xbf16, #tpu.memory_space<vmem>>, vector<3872x256xbf16>
    %cst = arith.constant dense<0.000000e+00> : vector<2x256xf32>
    %2 = tpu.matmul %0, %1, %cst {dimension_numbers = #tpu.dot_dimension_numbers<[1], [0], [0], [1], [0, 0, 1, 1], [], []>} : vector<2x3872xbf16>, vector<3872x256xbf16>, vector<2x256xf32> -> vector<2x256xf32>
    %c0_3 = arith.constant 0 : index
    %c0_4 = arith.constant 0 : index
    %3 = vector.load %arg2[%c0_3, %c0_4] : memref<1x256xf32, #tpu.memory_space<vmem>>, vector<1x256xf32>
    %4 = vector.broadcast %3 : vector<1x256xf32> to vector<2x256xf32>
    %5 = arith.addf %2, %4 : vector<2x256xf32>
    %c0_5 = arith.constant 0 : index
    %c0_6 = arith.constant 0 : index
    %6 = vector.load %arg3[%c0_5, %c0_6] : memref<256x4xf32, #tpu.memory_space<vmem>>, vector<256x4xf32>
    %cst_7 = arith.constant dense<0.000000e+00> : vector<2x4xf32>
    %7 = tpu.matmul %5, %6, %cst_7 {dimension_numbers = #tpu.dot_dimension_numbers<[1], [0], [0], [1], [0, 0, 1, 1], [], []>} : vector<2x256xf32>, vector<256x4xf32>, vector<2x4xf32> -> vector<2x4xf32>
    %c0_8 = arith.constant 0 : index
    %c0_9 = arith.constant 0 : index
    %8 = vector.load %arg4[%c0_8, %c0_9] : memref<1x4xf32, #tpu.memory_space<vmem>>, vector<1x4xf32>
    %9 = vector.broadcast %8 : vector<1x4xf32> to vector<2x4xf32>
    %10 = arith.addf %7, %9 : vector<2x4xf32>
    %cst_10 = arith.constant dense<0xFF800000> : vector<2xf32>
    %11 = vector.multi_reduction <maximumf>, %10, %cst_10 [1] : vector<2x4xf32> to vector<2xf32>
    %12 = vector.shape_cast %11 : vector<2xf32> to vector<2x1xf32>
    %13 = vector.broadcast %12 : vector<2x1xf32> to vector<2x4xf32>
    %14 = arith.subf %10, %13 : vector<2x4xf32>
    %15 = math.exp %14 : vector<2x4xf32>
    %cst_11 = arith.constant dense<0.000000e+00> : vector<2xf32>
    %16 = vector.multi_reduction <add>, %15, %cst_11 [1] : vector<2x4xf32> to vector<2xf32>
    %17 = vector.shape_cast %16 : vector<2xf32> to vector<2x1xf32>
    %18 = vector.broadcast %17 : vector<2x1xf32> to vector<2x4xf32>
    %19 = arith.divf %15, %18 : vector<2x4xf32>
    %c0_12 = arith.constant 0 : index
    %c0_13 = arith.constant 0 : index
    %20 = vector.load %arg5[%c0_12, %c0_13] : memref<2x4xf32, #tpu.memory_space<vmem>>, vector<2x4xf32>
    tpu.vector_store %arg5[%c0_12, %c0_13], %19 {strides = array<i32>} : memref<2x4xf32, #tpu.memory_space<vmem>>, vector<2x4xf32>,
    return
  }
}

</mosaic_0001>

<llo_original>
// kernel: actor_forward.3
$region0: #{actor_forward.3}
  #allocation0 [shape = 'u32[]', space=smem, size = 0x4, offset = 0x4, fixed_abs, tag = 'smem constant byte address 0x4 - core index']
  #allocation1 [shape = 'u32[144,128]{1,0:T(1,128)}', space=vmem, size = 0x12000, scoped, tag = 'internal scratch']
  %s0 = inlined_call_operand.vmem [shape: f32[1152,64], index: 0, kind: input, shape index: {}]
  %s1 = inlined_call_operand.vmem [shape: f32[64,16], index: 1, kind: input, shape index: {}]
  %s2 = inlined_call_operand.vmem [shape: f32[1,16], index: 2, kind: input, shape index: {}]
  %s3 = inlined_call_operand.vmem [shape: f32[1152,16], index: 3, kind: output, shape index: {}]
  %s4 = sld [smem:[#allocation0]]
  $region45: #{actor_forward.3} parent=0
    _
  %s6 = ssub.s32 1, %s4
  %s7 = scalar_select 0, %s6, %s4
  loop: start=0, step=1, limit=4
  $region2: #{actor_forward.3} parent=0 // loop_pre_header
    _
  $region3: #{actor_forward.3} parent=0 // loop_header
    %s9 = sphi 0, %s13
    %p10 = scmp.ge.s32.totalorder %s9, 4
    %s19 = sphi 0, %s21
    %s22 = sphi 0, %s19
    %s23 = sphi 0, %s22
    %s39 = sphi 0, %s23
    %s43 = sphi 0, %s43
    %s45 = sphi 0, %s43
    %s46 = sphi 0, %s45
    %s60 = sphi 0, %s46
    %s64 = sphi 0, %s64
    %s66 = sphi 0, %s64
    %s67 = sphi 0, %s66
    %s81 = sphi 0, %s67
    %s87 = sphi 0, %s89
    %s90 = sphi 0, %s87
    %s91 = sphi 0, %s90
    %s107 = sphi 0, %s91
  $region4: #{actor_forward.3} parent=0 // loop_header_branch
    %12 = sbr.rel (%p10) target = $region8
  $region5: #{actor_forward.3} parent=0 // loop_body
    %s14 = ssub.s32 %s9, 1
    %s15 = ssub.s32 %s9, 2
    %s16 = sadd.s32 %s9, 1
    %s17 = ssub.s32 %s9, %s16
    %p18 = scmp.eq.s32.totalorder %s17, 0
    %s20 = sadd.s32 %s19, 1
    %s21 = scalar_select %p18, %s19, %s20
    %p24 = pneg %p18
    %p25 = scmp.eq.s32.totalorder %s9, 1
    %p26 = por %p24, %p25
    %p27 = scmp.ne.s32.totalorder %s19, %s22
    %p28 = scmp.eq.s32.totalorder %s9, 0
    %p29 = por %p27, %p28
    %p30 = scmp.ne.s32.totalorder %s19, %s22
    %p31 = scmp.eq.s32.totalorder %s14, 1
    %p32 = por %p30, %p31
    %p33 = scmp.ne.s32.totalorder %s22, %s23
    %p34 = scmp.eq.s32.totalorder %s14, 0
    %p35 = por %p33, %p34
    %p36 = scmp.ne.s32.totalorder %s22, %s23
    %p37 = scmp.eq.s32.totalorder %s15, 1
    %p38 = por %p36, %p37
    %p40 = scmp.ne.s32.totalorder %s23, %s39
    %p41 = scmp.eq.s32.totalorder %s15, 0
    %p42 = por %p40, %p41
    %s44 = sadd.s32 %s43, 1
    %p47 = scmp.eq.s32.totalorder %s9, 1
    %p48 = scmp.ne.s32.totalorder %s43, %s45
    %p49 = scmp.eq.s32.totalorder %s9, 0
    %p50 = por %p48, %p49
    %p51 = scmp.ne.s32.totalorder %s43, %s45
    %p52 = scmp.eq.s32.totalorder %s14, 1
    %p53 = por %p51, %p52
    %p54 = scmp.ne.s32.totalorder %s45, %s46
    %p55 = scmp.eq.s32.totalorder %s14, 0
    %p56 = por %p54, %p55
    %p57 = scmp.ne.s32.totalorder %s45, %s46
    %p58 = scmp.eq.s32.totalorder %s15, 1
    %p59 = por %p57, %p58
    %p61 = scmp.ne.s32.totalorder %s46, %s60
    %p62 = scmp.eq.s32.totalorder %s15, 0
    %p63 = por %p61, %p62
    %s65 = sadd.s32 %s64, 1
    %p68 = scmp.eq.s32.totalorder %s9, 1
    %p69 = scmp.ne.s32.totalorder %s64, %s66
    %p70 = scmp.eq.s32.totalorder %s9, 0
    %p71 = por %p69, %p70
    %p72 = scmp.ne.s32.totalorder %s64, %s66
    %p73 = scmp.eq.s32.totalorder %s14, 1
    %p74 = por %p72, %p73
    %p75 = scmp.ne.s32.totalorder %s66, %s67
    %p76 = scmp.eq.s32.totalorder %s14, 0
    %p77 = por %p75, %p76
    %p78 = scmp.ne.s32.totalorder %s66, %s67
    %p79 = scmp.eq.s32.totalorder %s15, 1
    %p80 = por %p78, %p79
    %p82 = scmp.ne.s32.totalorder %s67, %s81
    %p83 = scmp.eq.s32.totalorder %s15, 0
    %p84 = por %p82, %p83
    %s85 = ssub.s32 %s9, %s16
    %p86 = scmp.eq.s32.totalorder %s85, 0
    %s88 = sadd.s32 %s87, 1
    %s89 = scalar_select %p86, %s87, %s88
    %p92 = pneg %p86
    %p93 = scmp.eq.s32.totalorder %s9, 1
    %p94 = por %p92, %p93
    %p95 = scmp.ne.s32.totalorder %s87, %s90
    %p96 = scmp.eq.s32.totalorder %s9, 0
    %p97 = por %p95, %p96
    %p98 = scmp.ne.s32.totalorder %s87, %s90
    %p99 = scmp.eq.s32.totalorder %s14, 1
    %p100 = por %p98, %p99
    %p101 = scmp.ne.s32.totalorder %s90, %s91
    %p102 = scmp.eq.s32.totalorder %s14, 0
    %p103 = por %p101, %p102
    %p104 = scmp.ne.s32.totalorder %s90, %s91
    %p105 = scmp.eq.s32.totalorder %s15, 1
    %p106 = por %p104, %p105
    %p108 = scmp.ne.s32.totalorder %s91, %s107
    %p109 = scmp.eq.s32.totalorder %s15, 0
    %p110 = por %p108, %p109
    %p111 = scmp.le.s32.totalorder 1, %s9
    %p112 = scmp.lt.s32.totalorder %s9, 3
    %p113 = pnand %p111, %p112
    %p114 = pneg %p113
    // Predicated region
    $region9: #{actor_forward.3} parent=5 // pred_check
      _
    $region10: #{actor_forward.3} parent=5 // pred_check_branch
      %116 = sbr.rel (%p113) target = $region12
    $region11: #{actor_forward.3} parent=5 // pred_region
      %s117 = ssub.s32 %s9, 1
      // Predicated region
      $region13: #{actor_forward.3} parent=11 // pred_check
        %p118 = pneg %p56
      $region14: #{actor_forward.3} parent=11 // pred_check_branch
        %120 = sbr.rel (%p118) target = $region16
      $region15: #{actor_forward.3} parent=11 // pred_region
        _
      $region16: #{actor_forward.3} parent=11 // pred_fallthru
        _
      // Predicated region
      $region17: #{actor_forward.3} parent=11 // pred_check
        %p121 = pneg %p77
      $region18: #{actor_forward.3} parent=11 // pred_check_branch
        %123 = sbr.rel (%p121) target = $region20
      $region19: #{actor_forward.3} parent=11 // pred_region
        _
      $region20: #{actor_forward.3} parent=11 // pred_fallthru
        _
    $region12: #{actor_forward.3} parent=5 // pred_fallthru
      _
    %p124 = scmp.lt.s32.totalorder %s9, 2
    // Predicated region
    $region21: #{actor_forward.3} parent=5 // pred_check
      %p125 = pneg %p124
    $region22: #{actor_forward.3} parent=5 // pred_check_branch
      %127 = sbr.rel (%p125) target = $region24
    $region23: #{actor_forward.3} parent=5 // pred_region
      // Predicated region
      $region25: #{actor_forward.3} parent=23 // pred_check
        %p128 = pneg %p29
      $region26: #{actor_forward.3} parent=23 // pred_check_branch
        %130 = sbr.rel (%p128) target = $region28
      $region27: #{actor_forward.3} parent=23 // pred_region
        %s131 = smul.u32 72, %s9
        %p132 = scmp.lt.s32.totalorder %s131, 143
        %s133 = scalar_select %p132, %s131, 143
        %s134 = smul.addr %s133, 8
        %s135 = scalar_lea.vmem %s0, %s134
        %s136 = smul.u32 72, %s9
      $region28: #{actor_forward.3} parent=23 // pred_fallthru
        _
    $region24: #{actor_forward.3} parent=5 // pred_fallthru
      _
    %p137 = scmp.le.s32.totalorder 1, %s9
    %p138 = scmp.lt.s32.totalorder %s9, 3
    %p139 = pnand %p137, %p138
    %p140 = pneg %p139
    // Predicated region
    $region29: #{actor_forward.3} parent=5 // pred_check
      _
    $region30: #{actor_forward.3} parent=5 // pred_check_branch
      %142 = sbr.rel (%p139) target = $region32
    $region31: #{actor_forward.3} parent=5 // pred_region
      %s143 = ssub.s32 %s9, 1
      %s144 = smul.u32 72, %s14
      %p145 = scmp.lt.s32.totalorder %s144, 143
      %s146 = scalar_select %p145, %s144, 143
      %s147 = smul.addr %s146, 8
      %s148 = scalar_lea.vmem %s0, %s147
      %p149 = pneg %p35
      %p150 = pneg %p32
      %p151 = pneg %p56
      %p152 = pneg %p53
      %p153 = pneg %p77
      %p154 = pneg %p74
      %p155 = pneg %p103
      %p156 = pneg %p100
      %s157 = smul.u32 72, %s14
      %p158 = scmp.lt.s32.totalorder %s157, 143
      %s159 = scalar_select %p158, %s157, 143
      %s160 = smul.addr %s159, 8
      %s161 = scalar_lea.vmem %s3, %s160
      %s162 = smul.u32 72, %s14
      %p163 = scmp.lt.s32.totalorder %s162, 143
      %s164 = scalar_select %p163, %s162, 143
      %s165 = smul.addr %s164, 8
      %s166 = scalar_lea.vmem %s0, %s165
      %s167 = smul.u32 72, %s14
      %s168 = smul.u32 72, %s14
      %p169 = scmp.lt.s32.totalorder %s168, 143
      %s170 = scalar_select %p169, %s168, 143
      %s171 = smul.addr %s170, 8
      %s172 = scalar_lea.vmem %s3, %s171
      %s173 = smul.u32 72, %s14
      %v174 = vld [vmem:[%s166] sm:$0xff]
      %v175 = vld [vmem:[%s166 + $0x8] sm:$0xff]
      %v176 = vld [vmem:[%s166 + $0x10] sm:$0xff]
      %v177 = vld [vmem:[%s166 + $0x18] sm:$0xff]
      %v178 = vld [vmem:[%s166 + $0x20] sm:$0xff]
      %v179 = vld [vmem:[%s166 + $0x28] sm:$0xff]
      %v180 = vld [vmem:[%s166 + $0x30] sm:$0xff]
      %v181 = vld [vmem:[%s166 + $0x38] sm:$0xff]
      %v182 = vld [vmem:[%s166 + $0x40] sm:$0xff]
      %v183 = vld [vmem:[%s166 + $0x48] sm:$0xff]
      %v184 = vld [vmem:[%s166 + $0x50] sm:$0xff]
      %v185 = vld [vmem:[%s166 + $0x58] sm:$0xff]
      %v186 = vld [vmem:[%s166 + $0x60] sm:$0xff]
      %v187 = vld [vmem:[%s166 + $0x68] sm:$0xff]
      %v188 = vld [vmem:[%s166 + $0x70] sm:$0xff]
      %v189 = vld [vmem:[%s166 + $0x78] sm:$0xff]
      %v190 = vld [vmem:[%s166 + $0x80] sm:$0xff]
      %v191 = vld [vmem:[%s166 + $0x88] sm:$0xff]
      %v192 = vld [vmem:[%s166 + $0x90] sm:$0xff]
      %v193 = vld [vmem:[%s166 + $0x98] sm:$0xff]
      %v194 = vld [vmem:[%s166 + $0xa0] sm:$0xff]
      %v195 = vld [vmem:[%s166 + $0xa8] sm:$0xff]
      %v196 = vld [vmem:[%s166 + $0xb0] sm:$0xff]
      %v197 = vld [vmem:[%s166 + $0xb8] sm:$0xff]
      %v198 = vld [vmem:[%s166 + $0xc0] sm:$0xff]
      %v199 = vld [vmem:[%s166 + $0xc8] sm:$0xff]
      %v200 = vld [vmem:[%s166 + $0xd0] sm:$0xff]
      %v201 = vld [vmem:[%s166 + $0xd8] sm:$0xff]
      %v202 = vld [vmem:[%s166 + $0xe0] sm:$0xff]
      %v203 = vld [vmem:[%s166 + $0xe8] sm:$0xff]
      %v204 = vld [vmem:[%s166 + $0xf0] sm:$0xff]
      %v205 = vld [vmem:[%s166 + $0xf8] sm:$0xff]
      %v206 = vld [vmem:[%s166 + $0x100] sm:$0xff]
      %v207 = vld [vmem:[%s166 + $0x108] sm:$0xff]
      %v208 = vld [vmem:[%s166 + $0x110] sm:$0xff]
      %v209 = vld [vmem:[%s166 + $0x118] sm:$0xff]
      %v210 = vld [vmem:[%s166 + $0x120] sm:$0xff]
      %v211 = vld [vmem:[%s166 + $0x128] sm:$0xff]
      %v212 = vld [vmem:[%s166 + $0x130] sm:$0xff]
      %v213 = vld [vmem:[%s166 + $0x138] sm:$0xff]
      %v214 = vld [vmem:[%s166 + $0x140] sm:$0xff]
      %v215 = vld [vmem:[%s166 + $0x148] sm:$0xff]
      %v216 = vld [vmem:[%s166 + $0x150] sm:$0xff]
      %v217 = vld [vmem:[%s166 + $0x158] sm:$0xff]
      %v218 = vld [vmem:[%s166 + $0x160] sm:$0xff]
      %v219 = vld [vmem:[%s166 + $0x168] sm:$0xff]
      %v220 = vld [vmem:[%s166 + $0x170] sm:$0xff]
      %v221 = vld [vmem:[%s166 + $0x178] sm:$0xff]
      %v222 = vld [vmem:[%s166 + $0x180] sm:$0xff]
      %v223 = vld [vmem:[%s166 + $0x188] sm:$0xff]
      %v224 = vld [vmem:[%s166 + $0x190] sm:$0xff]
      %v225 = vld [vmem:[%s166 + $0x198] sm:$0xff]
      %v226 = vld [vmem:[%s166 + $0x1a0] sm:$0xff]
      %v227 = vld [vmem:[%s166 + $0x1a8] sm:$0xff]
      %v228 = vld [vmem:[%s166 + $0x1b0] sm:$0xff]
      %v229 = vld [vmem:[%s166 + $0x1b8] sm:$0xff]
      %v230 = vld [vmem:[%s166 + $0x1c0] sm:$0xff]
      %v231 = vld [vmem:[%s166 + $0x1c8] sm:$0xff]
      %v232 = vld [vmem:[%s166 + $0x1d0] sm:$0xff]
      %v233 = vld [vmem:[%s166 + $0x1d8] sm:$0xff]
      %v234 = vld [vmem:[%s166 + $0x1e0] sm:$0xff]
      %v235 = vld [vmem:[%s166 + $0x1e8] sm:$0xff]
      %v236 = vld [vmem:[%s166 + $0x1f0] sm:$0xff]
      %v237 = vld [vmem:[%s166 + $0x1f8] sm:$0xff]
      %v238 = vld [vmem:[%s166 + $0x200] sm:$0xff]
      %v239 = vld [vmem:[%s166 + $0x208] sm:$0xff]
      %v240 = vld [vmem:[%s166 + $0x210] sm:$0xff]
      %v241 = vld [vmem:[%s166 + $0x218] sm:$0xff]
      %v242 = vld [vmem:[%s166 + $0x220] sm:$0xff]
      %v243 = vld [vmem:[%s166 + $0x228] sm:$0xff]
      %v244 = vld [vmem:[%s166 + $0x230] sm:$0xff]
      %v245 = vld [vmem:[%s166 + $0x238] sm:$0xff]
      %v246 = vld [vmem:[%s1] sm:$0xff]
      %v247 = vld [vmem:[%s1 + $0x8] sm:$0xff]
      %v248 = vld [vmem:[%s1 + $0x10] sm:$0xff]
      %v249 = vld [vmem:[%s1 + $0x18] sm:$0xff]
      %v250 = vld [vmem:[%s1 + $0x20] sm:$0xff]
      %v251 = vld [vmem:[%s1 + $0x28] sm:$0xff]
      %v252 = vld [vmem:[%s1 + $0x30] sm:$0xff]
      %v253 = vld [vmem:[%s1 + $0x38] sm:$0xff]
      %v254 = vld [vmem:[%s2] sm:$0x1]
      %v256 = vlaneseq
      %v257 = vshrl.u32 %v256, 7
      %v258 = vsub.s32 0, %v257
      %v259 = vrot.slane %v254, %v258
      %vm261 = vcmask 523264
      %v263 = vsel %vm261, %v174, 0
      %v266 = vsel %vm261, %v175, 0
      %v269 = vsel %vm261, %v176, 0
      %v272 = vsel %vm261, %v177, 0
      %v275 = vsel %vm261, %v178, 0
      %v278 = vsel %vm261, %v179, 0
      %v281 = vsel %vm261, %v180, 0
      %v284 = vsel %vm261, %v181, 0
      %v287 = vsel %vm261, %v182, 0
      %v290 = vsel %vm261, %v183, 0
      %v293 = vsel %vm261, %v184, 0
      %v296 = vsel %vm261, %v185, 0
      %v299 = vsel %vm261, %v186, 0
      %v302 = vsel %vm261, %v187, 0
      %v305 = vsel %vm261, %v188, 0
      %v308 = vsel %vm261, %v189, 0
      %v311 = vsel %vm261, %v190, 0
      %v314 = vsel %vm261, %v191, 0
      %v317 = vsel %vm261, %v192, 0
      %v320 = vsel %vm261, %v193, 0
      %v323 = vsel %vm261, %v194, 0
      %v326 = vsel %vm261, %v195, 0
      %v329 = vsel %vm261, %v196, 0
      %v332 = vsel %vm261, %v197, 0
      %v335 = vsel %vm261, %v198, 0
      %v338 = vsel %vm261, %v199, 0
      %v341 = vsel %vm261, %v200, 0
      %v344 = vsel %vm261, %v201, 0
      %v347 = vsel %vm261, %v202, 0
      %v350 = vsel %vm261, %v203, 0
      %v353 = vsel %vm261, %v204, 0
      %v356 = vsel %vm261, %v205, 0
      %v359 = vsel %vm261, %v206, 0
      %v362 = vsel %vm261, %v207, 0
      %v365 = vsel %vm261, %v208, 0
      %v368 = vsel %vm261, %v209, 0
      %v371 = vsel %vm261, %v210, 0
      %v374 = vsel %vm261, %v211, 0
      %v377 = vsel %vm261, %v212, 0
      %v380 = vsel %vm261, %v213, 0
      %v383 = vsel %vm261, %v214, 0
      %v386 = vsel %vm261, %v215, 0
      %v389 = vsel %vm261, %v216, 0
      %v392 = vsel %vm261, %v217, 0
      %v395 = vsel %vm261, %v218, 0
      %v398 = vsel %vm261, %v219, 0
      %v401 = vsel %vm261, %v220, 0
      %v404 = vsel %vm261, %v221, 0
      %v407 = vsel %vm261, %v222, 0
      %v410 = vsel %vm261, %v223, 0
      %v413 = vsel %vm261, %v224, 0
      %v416 = vsel %vm261, %v225, 0
      %v419 = vsel %vm261, %v226, 0
      %v422 = vsel %vm261, %v227, 0
      %v425 = vsel %vm261, %v228, 0
      %v428 = vsel %vm261, %v229, 0
      %v431 = vsel %vm261, %v230, 0
      %v434 = vsel %vm261, %v231, 0
      %v437 = vsel %vm261, %v232, 0
      %v440 = vsel %vm261, %v233, 0
      %v443 = vsel %vm261, %v234, 0
      %v446 = vsel %vm261, %v235, 0
      %v449 = vsel %vm261, %v236, 0
      %v452 = vsel %vm261, %v237, 0
      %v455 = vsel %vm261, %v238, 0
      %v458 = vsel %vm261, %v239, 0
      %v461 = vsel %vm261, %v240, 0
      %v464 = vsel %vm261, %v241, 0
      %v467 = vsel %vm261, %v242, 0
      %v470 = vsel %vm261, %v243, 0
      %v473 = vsel %vm261, %v244, 0
      %v476 = vsel %vm261, %v245, 0
      %478 = vmatprep.subr.mxu0 0.0
      %479 = vmatpush1.msra.mxu0 %v246
      %480 = vmatprep.subr.mxu0 0.0
      %481 = vmatpush1.msra.mxu0 %v247
      %482 = vmatprep.subr.mxu0 0.0
      %483 = vmatpush1.msra.mxu0 %v248
      %484 = vmatprep.subr.mxu0 0.0
      %485 = vmatpush1.msra.mxu0 %v249
      %486 = vmatprep.subr.mxu0 0.0
      %487 = vmatpush1.msra.mxu0 %v250
      %488 = vmatprep.subr.mxu0 0.0
      %489 = vmatpush1.msra.mxu0 %v251
      %490 = vmatprep.subr.mxu0 0.0
      %491 = vmatpush1.msra.mxu0 %v252
      %492 = vmatprep.subr.mxu0 0.0
      %493 = vmatpush1.msra.mxu0 %v253
      %494 = vmatprep.subr.mxu0 0.0
      %495 = vmatpush1.msra.mxu0 0.0
      %496 = vmatprep.subr.mxu0 0.0
      %497 = vmatpush1.msra.mxu0 0.0
      %498 = vmatprep.subr.mxu0 0.0
      %499 = vmatpush1.msra.mxu0 0.0
      %500 = vmatprep.subr.mxu0 0.0
      %501 = vmatpush1.msra.mxu0 0.0
      %502 = vmatprep.subr.mxu0 0.0
      %503 = vmatpush1.msra.mxu0 0.0
      %504 = vmatprep.subr.mxu0 0.0
      %505 = vmatpush1.msra.mxu0 0.0
      %506 = vmatprep.subr.mxu0 0.0
      %507 = vmatpush1.msra.mxu0 0.0
      %508 = vmatprep.subr.mxu0 0.0
      %509 = vmatpush1.msra.mxu0 0.0
      %510 = vmatprep.subr.mxu0 0.0
      %511 = vmatpush1.msra.mxu0 0.0
      %512 = vmatprep.subr.mxu0 0.0
      %513 = vmatpush1.msra.mxu0 0.0
      %514 = vmatprep.subr.mxu0 0.0
      %515 = vmatpush1.msra.mxu0 0.0
      %516 = vmatprep.subr.mxu0 0.0
      %517 = vmatpush1.msra.mxu0 0.0
      %518 = vmatprep.subr.mxu0 0.0
      %519 = vmatpush1.msra.mxu0 0.0
      %520 = vmatprep.subr.mxu0 0.0
      %521 = vmatpush1.msra.mxu0 0.0
      %522 = vmatprep.subr.mxu0 0.0
      %523 = vmatpush1.msra.mxu0 0.0
      %524 = vmatprep.subr.mxu0 0.0
      %525 = vmatpush1.msra.mxu0 0.0
      %526 = vmatprep.subr.mxu0 0.0
      %527 = vmatpush1.msra.mxu0 0.0
      %528 = vmatprep.subr.mxu0 0.0
      %529 = vmatpush1.msra.mxu0 0.0
      %530 = vmatprep.subr.mxu0 0.0
      %531 = vmatpush1.msra.mxu0 0.0
      %532 = vmatprep.subr.mxu0 0.0
      %533 = vmatpush1.msra.mxu0 0.0
      %534 = vmatprep.subr.mxu0 0.0
      %535 = vmatpush1.msra.mxu0 0.0
      %536 = vmatprep.subr.mxu0 0.0
      %537 = vmatpush1.msra.mxu0 0.0
      %538 = vmatprep.subr.mxu0 0.0
      %539 = vmatpush1.msra.mxu0 0.0
      %540 = vmatprep.subr.mxu0 0.0
      %541 = vmatpush1.msra.mxu0 0.0
      %542 = vmatprep.mubr.f32.mxu0 0.0
      %543 = vmatmul.mubr.f32.gmra.mrb[0].mxu0 %v263
      %v544 = vpop.f32.mrb[0].mxu0
      %v545 = vadd.f32 %v259, %v544
      %v546 = vpop.f32.mrb[0].mxu0
      %547 = vmatprep.mubr.f32.mxu0 0.0
      %548 = vmatmul.mubr.f32.gmra.mrb[0].mxu0 %v266
      %v549 = vpop.f32.mrb[0].mxu0
      %v550 = vadd.f32 %v259, %v549
      %v551 = vpop.f32.mrb[0].mxu0
      %552 = vmatprep.mubr.f32.mxu0 0.0
      %553 = vmatmul.mubr.f32.gmra.mrb[0].mxu0 %v269
      %v554 = vpop.f32.mrb[0].mxu0
      %v555 = vadd.f32 %v259, %v554
      %v556 = vpop.f32.mrb[0].mxu0
      %557 = vmatprep.mubr.f32.mxu0 0.0
      %558 = vmatmul.mubr.f32.gmra.mrb[0].mxu0 %v272
      %v559 = vpop.f32.mrb[0].mxu0
      %v560 = vadd.f32 %v259, %v559
      %v561 = vpop.f32.mrb[0].mxu0
      %562 = vmatprep.mubr.f32.mxu0 0.0
      %563 = vmatmul.mubr.f32.gmra.mrb[0].mxu0 %v275
      %v564 = vpop.f32.mrb[0].mxu0
      %v565 = vadd.f32 %v259, %v564
      %v566 = vpop.f32.mrb[0].mxu0
      %567 = vmatprep.mubr.f32.mxu0 0.0
      %568 = vmatmul.mubr.f32.gmra.mrb[0].mxu0 %v278
      %v569 = vpop.f32.mrb[0].mxu0
      %v570 = vadd.f32 %v259, %v569
      %v571 = vpop.f32.mrb[0].mxu0
      %572 = vmatprep.mubr.f32.mxu0 0.0
      %573 = vmatmul.mubr.f32.gmra.mrb[0].mxu0 %v281
      %v574 = vpop.f32.mrb[0].mxu0
      %v575 = vadd.f32 %v259, %v574
      %v576 = vpop.f32.mrb[0].mxu0
      %577 = vmatprep.mubr.f32.mxu0 0.0
      %578 = vmatmul.mubr.f32.gmra.mrb[0].mxu0 %v284
      %v579 = vpop.f32.mrb[0].mxu0
      %v580 = vadd.f32 %v259, %v579
      %v581 = vpop.f32.mrb[0].mxu0
      %582 = vmatprep.mubr.f32.mxu0 0.0
      %583 = vmatmul.mubr.f32.gmra.mrb[0].mxu0 %v287
      %v584 = vpop.f32.mrb[0].mxu0
      %v585 = vadd.f32 %v259, %v584
      %v586 = vpop.f32.mrb[0].mxu0
      %587 = vmatprep.mubr.f32.mxu0 0.0
      %588 = vmatmul.mubr.f32.gmra.mrb[0].mxu0 %v290
      %v589 = vpop.f32.mrb[0].mxu0
      %v590 = vadd.f32 %v259, %v589
      %v591 = vpop.f32.mrb[0].mxu0
      %592 = vmatprep.mubr.f32.mxu0 0.0
      %593 = vmatmul.mubr.f32.gmra.mrb[0].mxu0 %v293
      %v594 = vpop.f32.mrb[0].mxu0
      %v595 = vadd.f32 %v259, %v594
      %v596 = vpop.f32.mrb[0].mxu0
      %597 = vmatprep.mubr.f32.mxu0 0.0
      %598 = vmatmul.mubr.f32.gmra.mrb[0].mxu0 %v296
      %v599 = vpop.f32.mrb[0].mxu0
      %v600 = vadd.f32 %v259, %v599
      %v601 = vpop.f32.mrb[0].mxu0
      %602 = vmatprep.mubr.f32.mxu0 0.0
      %603 = vmatmul.mubr.f32.gmra.mrb[0].mxu0 %v299
      %v604 = vpop.f32.mrb[0].mxu0
      %v605 = vadd.f32 %v259, %v604
      %v606 = vpop.f32.mrb[0].mxu0
      %607 = vmatprep.mubr.f32.mxu0 0.0
      %608 = vmatmul.mubr.f32.gmra.mrb[0].mxu0 %v302
      %v609 = vpop.f32.mrb[0].mxu0
      %v610 = vadd.f32 %v259, %v609
      %v611 = vpop.f32.mrb[0].mxu0
      %612 = vmatprep.mubr.f32.mxu0 0.0
      %613 = vmatmul.mubr.f32.gmra.mrb[0].mxu0 %v305
      %v614 = vpop.f32.mrb[0].mxu0
      %v615 = vadd.f32 %v259, %v614
      %v616 = vpop.f32.mrb[0].mxu0
      %617 = vmatprep.mubr.f32.mxu0 0.0
      %618 = vmatmul.mubr.f32.gmra.mrb[0].mxu0 %v308
      %v619 = vpop.f32.mrb[0].mxu0
      %v620 = vadd.f32 %v259, %v619
      %v621 = vpop.f32.mrb[0].mxu0
      %622 = vmatprep.mubr.f32.mxu0 0.0
      %623 = vmatmul.mubr.f32.gmra.mrb[0].mxu0 %v311
      %v624 = vpop.f32.mrb[0].mxu0
      %v625 = vadd.f32 %v259, %v624
      %v626 = vpop.f32.mrb[0].mxu0
      %627 = vmatprep.mubr.f32.mxu0 0.0
      %628 = vmatmul.mubr.f32.gmra.mrb[0].mxu0 %v314
      %v629 = vpop.f32.mrb[0].mxu0
      %v630 = vadd.f32 %v259, %v629
      %v631 = vpop.f32.mrb[0].mxu0
      %632 = vmatprep.mubr.f32.mxu0 0.0
      %633 = vmatmul.mubr.f32.gmra.mrb[0].mxu0 %v317
      %v634 = vpop.f32.mrb[0].mxu0
      %v635 = vadd.f32 %v259, %v634
      %v636 = vpop.f32.mrb[0].mxu0
      %637 = vmatprep.mubr.f32.mxu0 0.0
      %638 = vmatmul.mubr.f32.gmra.mrb[0].mxu0 %v320
      %v639 = vpop.f32.mrb[0].mxu0
      %v640 = vadd.f32 %v259, %v639
      %v641 = vpop.f32.mrb[0].mxu0
      %642 = vmatprep.mubr.f32.mxu0 0.0
      %643 = vmatmul.mubr.f32.gmra.mrb[0].mxu0 %v323
      %v644 = vpop.f32.mrb[0].mxu0
      %v645 = vadd.f32 %v259, %v644
      %v646 = vpop.f32.mrb[0].mxu0
      %647 = vmatprep.mubr.f32.mxu0 0.0
      %648 = vmatmul.mubr.f32.gmra.mrb[0].mxu0 %v326
      %v649 = vpop.f32.mrb[0].mxu0
      %v650 = vadd.f32 %v259, %v649
      %v651 = vpop.f32.mrb[0].mxu0
      %652 = vmatprep.mubr.f32.mxu0 0.0
      %653 = vmatmul.mubr.f32.gmra.mrb[0].mxu0 %v329
      %v654 = vpop.f32.mrb[0].mxu0
      %v655 = vadd.f32 %v259, %v654
      %v656 = vpop.f32.mrb[0].mxu0
      %657 = vmatprep.mubr.f32.mxu0 0.0
      %658 = vmatmul.mubr.f32.gmra.mrb[0].mxu0 %v332
      %v659 = vpop.f32.mrb[0].mxu0
      %v660 = vadd.f32 %v259, %v659
      %v661 = vpop.f32.mrb[0].mxu0
      %662 = vmatprep.mubr.f32.mxu0 0.0
      %663 = vmatmul.mubr.f32.gmra.mrb[0].mxu0 %v335
      %v664 = vpop.f32.mrb[0].mxu0
      %v665 = vadd.f32 %v259, %v664
      %v666 = vpop.f32.mrb[0].mxu0
      %667 = vmatprep.mubr.f32.mxu0 0.0
      %668 = vmatmul.mubr.f32.gmra.mrb[0].mxu0 %v338
      %v669 = vpop.f32.mrb[0].mxu0
      %v670 = vadd.f32 %v259, %v669
      %v671 = vpop.f32.mrb[0].mxu0
      %672 = vmatprep.mubr.f32.mxu0 0.0
      %673 = vmatmul.mubr.f32.gmra.mrb[0].mxu0 %v341
      %v674 = vpop.f32.mrb[0].mxu0
      %v675 = vadd.f32 %v259, %v674
      %v676 = vpop.f32.mrb[0].mxu0
      %677 = vmatprep.mubr.f32.mxu0 0.0
      %678 = vmatmul.mubr.f32.gmra.mrb[0].mxu0 %v344
      %v679 = vpop.f32.mrb[0].mxu0
      %v680 = vadd.f32 %v259, %v679
      %v681 = vpop.f32.mrb[0].mxu0
      %682 = vmatprep.mubr.f32.mxu0 0.0
      %683 = vmatmul.mubr.f32.gmra.mrb[0].mxu0 %v347
      %v684 = vpop.f32.mrb[0].mxu0
      %v685 = vadd.f32 %v259, %v684
      %v686 = vpop.f32.mrb[0].mxu0
      %687 = vmatprep.mubr.f32.mxu0 0.0
      %688 = vmatmul.mubr.f32.gmra.mrb[0].mxu0 %v350
      %v689 = vpop.f32.mrb[0].mxu0
      %v690 = vadd.f32 %v259, %v689
      %v691 = vpop.f32.mrb[0].mxu0
      %692 = vmatprep.mubr.f32.mxu0 0.0
      %693 = vmatmul.mubr.f32.gmra.mrb[0].mxu0 %v353
      %v694 = vpop.f32.mrb[0].mxu0
      %v695 = vadd.f32 %v259, %v694
      %v696 = vpop.f32.mrb[0].mxu0
      %697 = vmatprep.mubr.f32.mxu0 0.0
      %698 = vmatmul.mubr.f32.gmra.mrb[0].mxu0 %v356
      %v699 = vpop.f32.mrb[0].mxu0
      %v700 = vadd.f32 %v259, %v699
      %v701 = vpop.f32.mrb[0].mxu0
      %702 = vmatprep.mubr.f32.mxu0 0.0
      %703 = vmatmul.mubr.f32.gmra.mrb[0].mxu0 %v359
      %v704 = vpop.f32.mrb[0].mxu0
      %v705 = vadd.f32 %v259, %v704
      %v706 = vpop.f32.mrb[0].mxu0
      %707 = vmatprep.mubr.f32.mxu0 0.0
      %708 = vmatmul.mubr.f32.gmra.mrb[0].mxu0 %v362
      %v709 = vpop.f32.mrb[0].mxu0
      %v710 = vadd.f32 %v259, %v709
      %v711 = vpop.f32.mrb[0].mxu0
      %712 = vmatprep.mubr.f32.mxu0 0.0
      %713 = vmatmul.mubr.f32.gmra.mrb[0].mxu0 %v365
      %v714 = vpop.f32.mrb[0].mxu0
      %v715 = vadd.f32 %v259, %v714
      %v716 = vpop.f32.mrb[0].mxu0
      %717 = vmatprep.mubr.f32.mxu0 0.0
      %718 = vmatmul.mubr.f32.gmra.mrb[0].mxu0 %v368
      %v719 = vpop.f32.mrb[0].mxu0
      %v720 = vadd.f32 %v259, %v719
      %v721 = vpop.f32.mrb[0].mxu0
      %722 = vmatprep.mubr.f32.mxu0 0.0
      %723 = vmatmul.mubr.f32.gmra.mrb[0].mxu0 %v371
      %v724 = vpop.f32.mrb[0].mxu0
      %v725 = vadd.f32 %v259, %v724
      %v726 = vpop.f32.mrb[0].mxu0
      %727 = vmatprep.mubr.f32.mxu0 0.0
      %728 = vmatmul.mubr.f32.gmra.mrb[0].mxu0 %v374
      %v729 = vpop.f32.mrb[0].mxu0
      %v730 = vadd.f32 %v259, %v729
      %v731 = vpop.f32.mrb[0].mxu0
      %732 = vmatprep.mubr.f32.mxu0 0.0
      %733 = vmatmul.mubr.f32.gmra.mrb[0].mxu0 %v377
      %v734 = vpop.f32.mrb[0].mxu0
      %v735 = vadd.f32 %v259, %v734
      %v736 = vpop.f32.mrb[0].mxu0
      %737 = vmatprep.mubr.f32.mxu0 0.0
      %738 = vmatmul.mubr.f32.gmra.mrb[0].mxu0 %v380
      %v739 = vpop.f32.mrb[0].mxu0
      %v740 = vadd.f32 %v259, %v739
      %v741 = vpop.f32.mrb[0].mxu0
      %742 = vmatprep.mubr.f32.mxu0 0.0
      %743 = vmatmul.mubr.f32.gmra.mrb[0].mxu0 %v383
      %v744 = vpop.f32.mrb[0].mxu0
      %v745 = vadd.f32 %v259, %v744
      %v746 = vpop.f32.mrb[0].mxu0
      %747 = vmatprep.mubr.f32.mxu0 0.0
      %748 = vmatmul.mubr.f32.gmra.mrb[0].mxu0 %v386
      %v749 = vpop.f32.mrb[0].mxu0
      %v750 = vadd.f32 %v259, %v749
      %v751 = vpop.f32.mrb[0].mxu0
      %752 = vmatprep.mubr.f32.mxu0 0.0
      %753 = vmatmul.mubr.f32.gmra.mrb[0].mxu0 %v389
      %v754 = vpop.f32.mrb[0].mxu0
      %v755 = vadd.f32 %v259, %v754
      %v756 = vpop.f32.mrb[0].mxu0
      %757 = vmatprep.mubr.f32.mxu0 0.0
      %758 = vmatmul.mubr.f32.gmra.mrb[0].mxu0 %v392
      %v759 = vpop.f32.mrb[0].mxu0
      %v760 = vadd.f32 %v259, %v759
      %v761 = vpop.f32.mrb[0].mxu0
      %762 = vmatprep.mubr.f32.mxu0 0.0
      %763 = vmatmul.mubr.f32.gmra.mrb[0].mxu0 %v395
      %v764 = vpop.f32.mrb[0].mxu0
      %v765 = vadd.f32 %v259, %v764
      %v766 = vpop.f32.mrb[0].mxu0
      %767 = vmatprep.mubr.f32.mxu0 0.0
      %768 = vmatmul.mubr.f32.gmra.mrb[0].mxu0 %v398
      %v769 = vpop.f32.mrb[0].mxu0
      %v770 = vadd.f32 %v259, %v769
      %v771 = vpop.f32.mrb[0].mxu0
      %772 = vmatprep.mubr.f32.mxu0 0.0
      %773 = vmatmul.mubr.f32.gmra.mrb[0].mxu0 %v401
      %v774 = vpop.f32.mrb[0].mxu0
      %v775 = vadd.f32 %v259, %v774
      %v776 = vpop.f32.mrb[0].mxu0
      %777 = vmatprep.mubr.f32.mxu0 0.0
      %778 = vmatmul.mubr.f32.gmra.mrb[0].mxu0 %v404
      %v779 = vpop.f32.mrb[0].mxu0
      %v780 = vadd.f32 %v259, %v779
      %v781 = vpop.f32.mrb[0].mxu0
      %782 = vmatprep.mubr.f32.mxu0 0.0
      %783 = vmatmul.mubr.f32.gmra.mrb[0].mxu0 %v407
      %v784 = vpop.f32.mrb[0].mxu0
      %v785 = vadd.f32 %v259, %v784
      %v786 = vpop.f32.mrb[0].mxu0
      %787 = vmatprep.mubr.f32.mxu0 0.0
      %788 = vmatmul.mubr.f32.gmra.mrb[0].mxu0 %v410
      %v789 = vpop.f32.mrb[0].mxu0
      %v790 = vadd.f32 %v259, %v789
      %v791 = vpop.f32.mrb[0].mxu0
      %792 = vmatprep.mubr.f32.mxu0 0.0
      %793 = vmatmul.mubr.f32.gmra.mrb[0].mxu0 %v413
      %v794 = vpop.f32.mrb[0].mxu0
      %v795 = vadd.f32 %v259, %v794
      %v796 = vpop.f32.mrb[0].mxu0
      %797 = vmatprep.mubr.f32.mxu0 0.0
      %798 = vmatmul.mubr.f32.gmra.mrb[0].mxu0 %v416
      %v799 = vpop.f32.mrb[0].mxu0
      %v800 = vadd.f32 %v259, %v799
      %v801 = vpop.f32.mrb[0].mxu0
      %802 = vmatprep.mubr.f32.mxu0 0.0
      %803 = vmatmul.mubr.f32.gmra.mrb[0].mxu0 %v419
      %v804 = vpop.f32.mrb[0].mxu0
      %v805 = vadd.f32 %v259, %v804
      %v806 = vpop.f32.mrb[0].mxu0
      %807 = vmatprep.mubr.f32.mxu0 0.0
      %808 = vmatmul.mubr.f32.gmra.mrb[0].mxu0 %v422
      %v809 = vpop.f32.mrb[0].mxu0
      %v810 = vadd.f32 %v259, %v809
      %v811 = vpop.f32.mrb[0].mxu0
      %812 = vmatprep.mubr.f32.mxu0 0.0
      %813 = vmatmul.mubr.f32.gmra.mrb[0].mxu0 %v425
      %v814 = vpop.f32.mrb[0].mxu0
      %v815 = vadd.f32 %v259, %v814
      %v816 = vpop.f32.mrb[0].mxu0
      %817 = vmatprep.mubr.f32.mxu0 0.0
      %818 = vmatmul.mubr.f32.gmra.mrb[0].mxu0 %v428
      %v819 = vpop.f32.mrb[0].mxu0
      %v820 = vadd.f32 %v259, %v819
      %v821 = vpop.f32.mrb[0].mxu0
      %822 = vmatprep.mubr.f32.mxu0 0.0
      %823 = vmatmul.mubr.f32.gmra.mrb[0].mxu0 %v431
      %v824 = vpop.f32.mrb[0].mxu0
      %v825 = vadd.f32 %v259, %v824
      %v826 = vpop.f32.mrb[0].mxu0
      %827 = vmatprep.mubr.f32.mxu0 0.0
      %828 = vmatmul.mubr.f32.gmra.mrb[0].mxu0 %v434
      %v829 = vpop.f32.mrb[0].mxu0
      %v830 = vadd.f32 %v259, %v829
      %v831 = vpop.f32.mrb[0].mxu0
      %832 = vmatprep.mubr.f32.mxu0 0.0
      %833 = vmatmul.mubr.f32.gmra.mrb[0].mxu0 %v437
      %v834 = vpop.f32.mrb[0].mxu0
      %v835 = vadd.f32 %v259, %v834
      %v836 = vpop.f32.mrb[0].mxu0
      %837 = vmatprep.mubr.f32.mxu0 0.0
      %838 = vmatmul.mubr.f32.gmra.mrb[0].mxu0 %v440
      %v839 = vpop.f32.mrb[0].mxu0
      %v840 = vadd.f32 %v259, %v839
      %v841 = vpop.f32.mrb[0].mxu0
      %842 = vmatprep.mubr.f32.mxu0 0.0
      %843 = vmatmul.mubr.f32.gmra.mrb[0].mxu0 %v443
      %v844 = vpop.f32.mrb[0].mxu0
      %v845 = vadd.f32 %v259, %v844
      %v846 = vpop.f32.mrb[0].mxu0
      %847 = vmatprep.mubr.f32.mxu0 0.0
      %848 = vmatmul.mubr.f32.gmra.mrb[0].mxu0 %v446
      %v849 = vpop.f32.mrb[0].mxu0
      %v850 = vadd.f32 %v259, %v849
      %v851 = vpop.f32.mrb[0].mxu0
      %852 = vmatprep.mubr.f32.mxu0 0.0
      %853 = vmatmul.mubr.f32.gmra.mrb[0].mxu0 %v449
      %v854 = vpop.f32.mrb[0].mxu0
      %v855 = vadd.f32 %v259, %v854
      %v856 = vpop.f32.mrb[0].mxu0
      %857 = vmatprep.mubr.f32.mxu0 0.0
      %858 = vmatmul.mubr.f32.gmra.mrb[0].mxu0 %v452
      %v859 = vpop.f32.mrb[0].mxu0
      %v860 = vadd.f32 %v259, %v859
      %v861 = vpop.f32.mrb[0].mxu0
      %862 = vmatprep.mubr.f32.mxu0 0.0
      %863 = vmatmul.mubr.f32.gmra.mrb[0].mxu0 %v455
      %v864 = vpop.f32.mrb[0].mxu0
      %v865 = vadd.f32 %v259, %v864
      %v866 = vpop.f32.mrb[0].mxu0
      %867 = vmatprep.mubr.f32.mxu0 0.0
      %868 = vmatmul.mubr.f32.gmra.mrb[0].mxu0 %v458
      %v869 = vpop.f32.mrb[0].mxu0
      %v870 = vadd.f32 %v259, %v869
      %v871 = vpop.f32.mrb[0].mxu0
      %872 = vmatprep.mubr.f32.mxu0 0.0
      %873 = vmatmul.mubr.f32.gmra.mrb[0].mxu0 %v461
      %v874 = vpop.f32.mrb[0].mxu0
      %v875 = vadd.f32 %v259, %v874
      %v876 = vpop.f32.mrb[0].mxu0
      %877 = vmatprep.mubr.f32.mxu0 0.0
      %878 = vmatmul.mubr.f32.gmra.mrb[0].mxu0 %v464
      %v879 = vpop.f32.mrb[0].mxu0
      %v880 = vadd.f32 %v259, %v879
      %v881 = vpop.f32.mrb[0].mxu0
      %882 = vmatprep.mubr.f32.mxu0 0.0
      %883 = vmatmul.mubr.f32.gmra.mrb[0].mxu0 %v467
      %v884 = vpop.f32.mrb[0].mxu0
      %v885 = vadd.f32 %v259, %v884
      %v886 = vpop.f32.mrb[0].mxu0
      %887 = vmatprep.mubr.f32.mxu0 0.0
      %888 = vmatmul.mubr.f32.gmra.mrb[0].mxu0 %v470
      %v889 = vpop.f32.mrb[0].mxu0
      %v890 = vadd.f32 %v259, %v889
      %v891 = vpop.f32.mrb[0].mxu0
      %892 = vmatprep.mubr.f32.mxu0 0.0
      %893 = vmatmul.mubr.f32.gmra.mrb[0].mxu0 %v473
      %v894 = vpop.f32.mrb[0].mxu0
      %v895 = vadd.f32 %v259, %v894
      %v896 = vpop.f32.mrb[0].mxu0
      %897 = vmatprep.mubr.f32.mxu0 0.0
      %898 = vmatmul.mubr.f32.gmra.mrb[0].mxu0 %v476
      %v899 = vpop.f32.mrb[0].mxu0
      %v900 = vadd.f32 %v259, %v899
      %v901 = vpop.f32.mrb[0].mxu0
      %902 = vdwg.mxu0
      %v903 = vmax.f32 %v545, 0.0
      %v904 = vmax.f32 %v550, 0.0
      %v905 = vmax.f32 %v555, 0.0
      %v906 = vmax.f32 %v560, 0.0
      %v907 = vmax.f32 %v565, 0.0
      %v908 = vmax.f32 %v570, 0.0
      %v909 = vmax.f32 %v575, 0.0
      %v910 = vmax.f32 %v580, 0.0
      %v911 = vmax.f32 %v585, 0.0
      %v912 = vmax.f32 %v590, 0.0
      %v913 = vmax.f32 %v595, 0.0
      %v914 = vmax.f32 %v600, 0.0
      %v915 = vmax.f32 %v605, 0.0
      %v916 = vmax.f32 %v610, 0.0
      %v917 = vmax.f32 %v615, 0.0
      %v918 = vmax.f32 %v620, 0.0
      %v919 = vmax.f32 %v625, 0.0
      %v920 = vmax.f32 %v630, 0.0
      %v921 = vmax.f32 %v635, 0.0
      %v922 = vmax.f32 %v640, 0.0
      %v923 = vmax.f32 %v645, 0.0
      %v924 = vmax.f32 %v650, 0.0
      %v925 = vmax.f32 %v655, 0.0
      %v926 = vmax.f32 %v660, 0.0
      %v927 = vmax.f32 %v665, 0.0
      %v928 = vmax.f32 %v670, 0.0
      %v929 = vmax.f32 %v675, 0.0
      %v930 = vmax.f32 %v680, 0.0
      %v931 = vmax.f32 %v685, 0.0
      %v932 = vmax.f32 %v690, 0.0
      %v933 = vmax.f32 %v695, 0.0
      %v934 = vmax.f32 %v700, 0.0
      %v935 = vmax.f32 %v705, 0.0
      %v936 = vmax.f32 %v710, 0.0
      %v937 = vmax.f32 %v715, 0.0
      %v938 = vmax.f32 %v720, 0.0
      %v939 = vmax.f32 %v725, 0.0
      %v940 = vmax.f32 %v730, 0.0
      %v941 = vmax.f32 %v735, 0.0
      %v942 = vmax.f32 %v740, 0.0
      %v943 = vmax.f32 %v745, 0.0
      %v944 = vmax.f32 %v750, 0.0
      %v945 = vmax.f32 %v755, 0.0
      %v946 = vmax.f32 %v760, 0.0
      %v947 = vmax.f32 %v765, 0.0
      %v948 = vmax.f32 %v770, 0.0
      %v949 = vmax.f32 %v775, 0.0
      %v950 = vmax.f32 %v780, 0.0
      %v951 = vmax.f32 %v785, 0.0
      %v952 = vmax.f32 %v790, 0.0
      %v953 = vmax.f32 %v795, 0.0
      %v954 = vmax.f32 %v800, 0.0
      %v955 = vmax.f32 %v805, 0.0
      %v956 = vmax.f32 %v810, 0.0
      %v957 = vmax.f32 %v815, 0.0
      %v958 = vmax.f32 %v820, 0.0
      %v959 = vmax.f32 %v825, 0.0
      %v960 = vmax.f32 %v830, 0.0
      %v961 = vmax.f32 %v835, 0.0
      %v962 = vmax.f32 %v840, 0.0
      %v963 = vmax.f32 %v845, 0.0
      %v964 = vmax.f32 %v850, 0.0
      %v965 = vmax.f32 %v855, 0.0
      %v966 = vmax.f32 %v860, 0.0
      %v967 = vmax.f32 %v865, 0.0
      %v968 = vmax.f32 %v870, 0.0
      %v969 = vmax.f32 %v875, 0.0
      %v970 = vmax.f32 %v880, 0.0
      %v971 = vmax.f32 %v885, 0.0
      %v972 = vmax.f32 %v890, 0.0
      %v973 = vmax.f32 %v895, 0.0
      %v974 = vmax.f32 %v900, 0.0
      %vm975 = vcmask 130048
      %976 = vst.msk [vmem:[%s172] sm:$0xff] %vm975, %v903
      %977 = vst.msk [vmem:[%s172 + $0x8] sm:$0xff] %vm975, %v904
      %978 = vst.msk [vmem:[%s172 + $0x10] sm:$0xff] %vm975, %v905
      %979 = vst.msk [vmem:[%s172 + $0x18] sm:$0xff] %vm975, %v906
      %980 = vst.msk [vmem:[%s172 + $0x20] sm:$0xff] %vm975, %v907
      %981 = vst.msk [vmem:[%s172 + $0x28] sm:$0xff] %vm975, %v908
      %982 = vst.msk [vmem:[%s172 + $0x30] sm:$0xff] %vm975, %v909
      %983 = vst.msk [vmem:[%s172 + $0x38] sm:$0xff] %vm975, %v910
      %984 = vst.msk [vmem:[%s172 + $0x40] sm:$0xff] %vm975, %v911
      %985 = vst.msk [vmem:[%s172 + $0x48] sm:$0xff] %vm975, %v912
      %986 = vst.msk [vmem:[%s172 + $0x50] sm:$0xff] %vm975, %v913
      %987 = vst.msk [vmem:[%s172 + $0x58] sm:$0xff] %vm975, %v914
      %988 = vst.msk [vmem:[%s172 + $0x60] sm:$0xff] %vm975, %v915
      %989 = vst.msk [vmem:[%s172 + $0x68] sm:$0xff] %vm975, %v916
      %990 = vst.msk [vmem:[%s172 + $0x70] sm:$0xff] %vm975, %v917
      %991 = vst.msk [vmem:[%s172 + $0x78] sm:$0xff] %vm975, %v918
      %992 = vst.msk [vmem:[%s172 + $0x80] sm:$0xff] %vm975, %v919
      %993 = vst.msk [vmem:[%s172 + $0x88] sm:$0xff] %vm975, %v920
      %994 = vst.msk [vmem:[%s172 + $0x90] sm:$0xff] %vm975, %v921
      %995 = vst.msk [vmem:[%s172 + $0x98] sm:$0xff] %vm975, %v922
      %996 = vst.msk [vmem:[%s172 + $0xa0] sm:$0xff] %vm975, %v923
      %997 = vst.msk [vmem:[%s172 + $0xa8] sm:$0xff] %vm975, %v924
      %998 = vst.msk [vmem:[%s172 + $0xb0] sm:$0xff] %vm975, %v925
      %999 = vst.msk [vmem:[%s172 + $0xb8] sm:$0xff] %vm975, %v926
      %1000 = vst.msk [vmem:[%s172 + $0xc0] sm:$0xff] %vm975, %v927
      %1001 = vst.msk [vmem:[%s172 + $0xc8] sm:$0xff] %vm975, %v928
      %1002 = vst.msk [vmem:[%s172 + $0xd0] sm:$0xff] %vm975, %v929
      %1003 = vst.msk [vmem:[%s172 + $0xd8] sm:$0xff] %vm975, %v930
      %1004 = vst.msk [vmem:[%s172 + $0xe0] sm:$0xff] %vm975, %v931
      %1005 = vst.msk [vmem:[%s172 + $0xe8] sm:$0xff] %vm975, %v932
      %1006 = vst.msk [vmem:[%s172 + $0xf0] sm:$0xff] %vm975, %v933
      %1007 = vst.msk [vmem:[%s172 + $0xf8] sm:$0xff] %vm975, %v934
      %1008 = vst.msk [vmem:[%s172 + $0x100] sm:$0xff] %vm975, %v935
      %1009 = vst.msk [vmem:[%s172 + $0x108] sm:$0xff] %vm975, %v936
      %1010 = vst.msk [vmem:[%s172 + $0x110] sm:$0xff] %vm975, %v937
      %1011 = vst.msk [vmem:[%s172 + $0x118] sm:$0xff] %vm975, %v938
      %1012 = vst.msk [vmem:[%s172 + $0x120] sm:$0xff] %vm975, %v939
      %1013 = vst.msk [vmem:[%s172 + $0x128] sm:$0xff] %vm975, %v940
      %1014 = vst.msk [vmem:[%s172 + $0x130] sm:$0xff] %vm975, %v941
      %1015 = vst.msk [vmem:[%s172 + $0x138] sm:$0xff] %vm975, %v942
      %1016 = vst.msk [vmem:[%s172 + $0x140] sm:$0xff] %vm975, %v943
      %1017 = vst.msk [vmem:[%s172 + $0x148] sm:$0xff] %vm975, %v944
      %1018 = vst.msk [vmem:[%s172 + $0x150] sm:$0xff] %vm975, %v945
      %1019 = vst.msk [vmem:[%s172 + $0x158] sm:$0xff] %vm975, %v946
      %1020 = vst.msk [vmem:[%s172 + $0x160] sm:$0xff] %vm975, %v947
      %1021 = vst.msk [vmem:[%s172 + $0x168] sm:$0xff] %vm975, %v948
      %1022 = vst.msk [vmem:[%s172 + $0x170] sm:$0xff] %vm975, %v949
      %1023 = vst.msk [vmem:[%s172 + $0x178] sm:$0xff] %vm975, %v950
      %1024 = vst.msk [vmem:[%s172 + $0x180] sm:$0xff] %vm975, %v951
      %1025 = vst.msk [vmem:[%s172 + $0x188] sm:$0xff] %vm975, %v952
      %1026 = vst.msk [vmem:[%s172 + $0x190] sm:$0xff] %vm975, %v953
      %1027 = vst.msk [vmem:[%s172 + $0x198] sm:$0xff] %vm975, %v954
      %1028 = vst.msk [vmem:[%s172 + $0x1a0] sm:$0xff] %vm975, %v955
      %1029 = vst.msk [vmem:[%s172 + $0x1a8] sm:$0xff] %vm975, %v956
      %1030 = vst.msk [vmem:[%s172 + $0x1b0] sm:$0xff] %vm975, %v957
      %1031 = vst.msk [vmem:[%s172 + $0x1b8] sm:$0xff] %vm975, %v958
      %1032 = vst.msk [vmem:[%s172 + $0x1c0] sm:$0xff] %vm975, %v959
      %1033 = vst.msk [vmem:[%s172 + $0x1c8] sm:$0xff] %vm975, %v960
      %1034 = vst.msk [vmem:[%s172 + $0x1d0] sm:$0xff] %vm975, %v961
      %1035 = vst.msk [vmem:[%s172 + $0x1d8] sm:$0xff] %vm975, %v962
      %1036 = vst.msk [vmem:[%s172 + $0x1e0] sm:$0xff] %vm975, %v963
      %1037 = vst.msk [vmem:[%s172 + $0x1e8] sm:$0xff] %vm975, %v964
      %1038 = vst.msk [vmem:[%s172 + $0x1f0] sm:$0xff] %vm975, %v965
      %1039 = vst.msk [vmem:[%s172 + $0x1f8] sm:$0xff] %vm975, %v966
      %1040 = vst.msk [vmem:[%s172 + $0x200] sm:$0xff] %vm975, %v967
      %1041 = vst.msk [vmem:[%s172 + $0x208] sm:$0xff] %vm975, %v968
      %1042 = vst.msk [vmem:[%s172 + $0x210] sm:$0xff] %vm975, %v969
      %1043 = vst.msk [vmem:[%s172 + $0x218] sm:$0xff] %vm975, %v970
      %1044 = vst.msk [vmem:[%s172 + $0x220] sm:$0xff] %vm975, %v971
      %1045 = vst.msk [vmem:[%s172 + $0x228] sm:$0xff] %vm975, %v972
      %1046 = vst.msk [vmem:[%s172 + $0x230] sm:$0xff] %vm975, %v973
      %1047 = vst.msk [vmem:[%s172 + $0x238] sm:$0xff] %vm975, %v974
      %s1048 = smul.u32 72, %s14
      %p1049 = scmp.lt.s32.totalorder %s1048, 143
      %s1050 = scalar_select %p1049, %s1048, 143
      %s1051 = smul.addr %s1050, 8
      %s1052 = scalar_lea.vmem %s3, %s1051
      // Predicated region
      $region33: #{actor_forward.3} parent=31 // pred_check
        %p1053 = pneg %p100
      $region34: #{actor_forward.3} parent=31 // pred_check_branch
        %1055 = sbr.rel (%p1053) target = $region36
      $region35: #{actor_forward.3} parent=31 // pred_region
        %s1056 = smul.u32 72, %s14
      $region36: #{actor_forward.3} parent=31 // pred_fallthru
        _
    $region32: #{actor_forward.3} parent=5 // pred_fallthru
      _
    %p1057 = scmp.le.s32.totalorder 2, %s9
    // Predicated region
    $region37: #{actor_forward.3} parent=5 // pred_check
      %p1058 = pneg %p1057
    $region38: #{actor_forward.3} parent=5 // pred_check_branch
      %1060 = sbr.rel (%p1058) target = $region40
    $region39: #{actor_forward.3} parent=5 // pred_region
      %s1061 = ssub.s32 %s9, 2
      // Predicated region
      $region41: #{actor_forward.3} parent=39 // pred_check
        %p1062 = pneg %p106
      $region42: #{actor_forward.3} parent=39 // pred_check_branch
        %1064 = sbr.rel (%p1062) target = $region44
      $region43: #{actor_forward.3} parent=39 // pred_region
        %s1065 = smul.u32 72, %s15
        %p1066 = scmp.lt.s32.totalorder %s1065, 143
        %s1067 = scalar_select %p1066, %s1065, 143
        %s1068 = smul.addr %s1067, 8
        %s1069 = scalar_lea.vmem %s3, %s1068
      $region44: #{actor_forward.3} parent=39 // pred_fallthru
        _
    $region40: #{actor_forward.3} parent=5 // pred_fallthru
      _
  $region6: #{actor_forward.3} parent=0 // loop_footer
    %s13 = sadd.s32 1, %s9
  $region7: #{actor_forward.3} parent=0 // loop_footer_branch
    %8 = sbr.rel target = $region3
  $region8: #{actor_forward.3} parent=0 // loop_exit
    _

// kernel: actor_forward.4
$region0: #{actor_forward.4}
  #allocation0 [shape = 'u32[]', space=smem, size = 0x4, offset = 0x4, fixed_abs, tag = 'smem constant byte address 0x4 - core index']
  #allocation1 [shape = 'u32[144,128]{1,0:T(1,128)}', space=vmem, size = 0x12000, scoped, tag = 'internal scratch']
  %s0 = inlined_call_operand.vmem [shape: f32[242,256], index: 0, kind: input, shape index: {}]
  %s1 = inlined_call_operand.vmem [shape: f32[256,32], index: 1, kind: input, shape index: {}]
  %s2 = inlined_call_operand.vmem [shape: f32[1,32], index: 2, kind: input, shape index: {}]
  %s3 = inlined_call_operand.vmem [shape: bf16[242,32], index: 3, kind: output, shape index: {}]
  %s4 = sld [smem:[#allocation0]]
  $region22: #{actor_forward.4} parent=0
    _
  %s6 = ssub.s32 1, %s4
  %s7 = scalar_select 0, %s6, %s4
  // Predicated region
  $region2: #{actor_forward.4} parent=0 // pred_check
    _
  $region3: #{actor_forward.4} parent=0 // pred_check_branch
    %9 = sbr.rel (0) target = $region5
  $region4: #{actor_forward.4} parent=0 // pred_region
    _
  $region5: #{actor_forward.4} parent=0 // pred_fallthru
    _
  // Predicated region
  $region6: #{actor_forward.4} parent=0 // pred_check
    _
  $region7: #{actor_forward.4} parent=0 // pred_check_branch
    %11 = sbr.rel (0) target = $region9
  $region8: #{actor_forward.4} parent=0 // pred_region
    _
  $region9: #{actor_forward.4} parent=0 // pred_fallthru
    _
  // Predicated region
  $region10: #{actor_forward.4} parent=0 // pred_check
    _
  $region11: #{actor_forward.4} parent=0 // pred_check_branch
    %13 = sbr.rel (0) target = $region13
  $region12: #{actor_forward.4} parent=0 // pred_region
    _
  $region13: #{actor_forward.4} parent=0 // pred_fallthru
    _
  %v14 = vld [vmem:[%s0] sm:$0xff]
  %v15 = vld [vmem:[%s0 + $0x8] sm:$0xff]
  %v16 = vld [vmem:[%s0 + $0x10] sm:$0xff]
  %v17 = vld [vmem:[%s0 + $0x18] sm:$0xff]
  %v18 = vld [vmem:[%s0 + $0x20] sm:$0xff]
  %v19 = vld [vmem:[%s0 + $0x28] sm:$0xff]
  %v20 = vld [vmem:[%s0 + $0x30] sm:$0xff]
  %v21 = vld [vmem:[%s0 + $0x38] sm:$0xff]
  %v22 = vld [vmem:[%s0 + $0x40] sm:$0xff]
  %v23 = vld [vmem:[%s0 + $0x48] sm:$0xff]
  %v24 = vld [vmem:[%s0 + $0x50] sm:$0xff]
  %v25 = vld [vmem:[%s0 + $0x58] sm:$0xff]
  %v26 = vld [vmem:[%s0 + $0x60] sm:$0xff]
  %v27 = vld [vmem:[%s0 + $0x68] sm:$0xff]
  %v28 = vld [vmem:[%s0 + $0x70] sm:$0xff]
  %v29 = vld [vmem:[%s0 + $0x78] sm:$0xff]
  %v30 = vld [vmem:[%s0 + $0x80] sm:$0xff]
  %v31 = vld [vmem:[%s0 + $0x88] sm:$0xff]
  %v32 = vld [vmem:[%s0 + $0x90] sm:$0xff]
  %v33 = vld [vmem:[%s0 + $0x98] sm:$0xff]
  %v34 = vld [vmem:[%s0 + $0xa0] sm:$0xff]
  %v35 = vld [vmem:[%s0 + $0xa8] sm:$0xff]
  %v36 = vld [vmem:[%s0 + $0xb0] sm:$0xff]
  %v37 = vld [vmem:[%s0 + $0xb8] sm:$0xff]
  %v38 = vld [vmem:[%s0 + $0xc0] sm:$0xff]
  %v39 = vld [vmem:[%s0 + $0xc8] sm:$0xff]
  %v40 = vld [vmem:[%s0 + $0xd0] sm:$0xff]
  %v41 = vld [vmem:[%s0 + $0xd8] sm:$0xff]
  %v42 = vld [vmem:[%s0 + $0xe0] sm:$0xff]
  %v43 = vld [vmem:[%s0 + $0xe8] sm:$0xff]
  %v44 = vld [vmem:[%s0 + $0xf0] sm:$0xff]
  %v45 = vld [vmem:[%s0 + $0xf8] sm:$0xff]
  %v46 = vld [vmem:[%s0 + $0x100] sm:$0xff]
  %v47 = vld [vmem:[%s0 + $0x108] sm:$0xff]
  %v48 = vld [vmem:[%s0 + $0x110] sm:$0xff]
  %v49 = vld [vmem:[%s0 + $0x118] sm:$0xff]
  %v50 = vld [vmem:[%s0 + $0x120] sm:$0xff]
  %v51 = vld [vmem:[%s0 + $0x128] sm:$0xff]
  %v52 = vld [vmem:[%s0 + $0x130] sm:$0xff]
  %v53 = vld [vmem:[%s0 + $0x138] sm:$0xff]
  %v54 = vld [vmem:[%s0 + $0x140] sm:$0xff]
  %v55 = vld [vmem:[%s0 + $0x148] sm:$0xff]
  %v56 = vld [vmem:[%s0 + $0x150] sm:$0xff]
  %v57 = vld [vmem:[%s0 + $0x158] sm:$0xff]
  %v58 = vld [vmem:[%s0 + $0x160] sm:$0xff]
  %v59 = vld [vmem:[%s0 + $0x168] sm:$0xff]
  %v60 = vld [vmem:[%s0 + $0x170] sm:$0xff]
  %v61 = vld [vmem:[%s0 + $0x178] sm:$0xff]
  %v62 = vld [vmem:[%s0 + $0x180] sm:$0xff]
  %v63 = vld [vmem:[%s0 + $0x188] sm:$0xff]
  %v64 = vld [vmem:[%s0 + $0x190] sm:$0xff]
  %v65 = vld [vmem:[%s0 + $0x198] sm:$0xff]
  %v66 = vld [vmem:[%s0 + $0x1a0] sm:$0xff]
  %v67 = vld [vmem:[%s0 + $0x1a8] sm:$0xff]
  %v68 = vld [vmem:[%s0 + $0x1b0] sm:$0xff]
  %v69 = vld [vmem:[%s0 + $0x1b8] sm:$0xff]
  %v70 = vld [vmem:[%s0 + $0x1c0] sm:$0xff]
  %v71 = vld [vmem:[%s0 + $0x1c8] sm:$0xff]
  %v72 = vld [vmem:[%s0 + $0x1d0] sm:$0xff]
  %v73 = vld [vmem:[%s0 + $0x1d8] sm:$0xff]
  %v74 = vld [vmem:[%s0 + $0x1e0] sm:$0x3]
  %v75 = vld [vmem:[%s0 + $0x1e8] sm:$0x3]
  %v76 = vld [vmem:[%s1] sm:$0xff]
  %v77 = vld [vmem:[%s1 + $0x8] sm:$0xff]
  %v78 = vld [vmem:[%s1 + $0x10] sm:$0xff]
  %v79 = vld [vmem:[%s1 + $0x18] sm:$0xff]
  %v80 = vld [vmem:[%s1 + $0x20] sm:$0xff]
  %v81 = vld [vmem:[%s1 + $0x28] sm:$0xff]
  %v82 = vld [vmem:[%s1 + $0x30] sm:$0xff]
  %v83 = vld [vmem:[%s1 + $0x38] sm:$0xff]
  %v84 = vld [vmem:[%s1 + $0x40] sm:$0xff]
  %v85 = vld [vmem:[%s1 + $0x48] sm:$0xff]
  %v86 = vld [vmem:[%s1 + $0x50] sm:$0xff]
  %v87 = vld [vmem:[%s1 + $0x58] sm:$0xff]
  %v88 = vld [vmem:[%s1 + $0x60] sm:$0xff]
  %v89 = vld [vmem:[%s1 + $0x68] sm:$0xff]
  %v90 = vld [vmem:[%s1 + $0x70] sm:$0xff]
  %v91 = vld [vmem:[%s1 + $0x78] sm:$0xff]
  %v92 = vld [vmem:[%s1 + $0x80] sm:$0xff]
  %v93 = vld [vmem:[%s1 + $0x88] sm:$0xff]
  %v94 = vld [vmem:[%s1 + $0x90] sm:$0xff]
  %v95 = vld [vmem:[%s1 + $0x98] sm:$0xff]
  %v96 = vld [vmem:[%s1 + $0xa0] sm:$0xff]
  %v97 = vld [vmem:[%s1 + $0xa8] sm:$0xff]
  %v98 = vld [vmem:[%s1 + $0xb0] sm:$0xff]
  %v99 = vld [vmem:[%s1 + $0xb8] sm:$0xff]
  %v100 = vld [vmem:[%s1 + $0xc0] sm:$0xff]
  %v101 = vld [vmem:[%s1 + $0xc8] sm:$0xff]
  %v102 = vld [vmem:[%s1 + $0xd0] sm:$0xff]
  %v103 = vld [vmem:[%s1 + $0xd8] sm:$0xff]
  %v104 = vld [vmem:[%s1 + $0xe0] sm:$0xff]
  %v105 = vld [vmem:[%s1 + $0xe8] sm:$0xff]
  %v106 = vld [vmem:[%s1 + $0xf0] sm:$0xff]
  %v107 = vld [vmem:[%s1 + $0xf8] sm:$0xff]
  %v108 = vld [vmem:[%s2] sm:$0x1]
  %v110 = vlaneseq
  %v111 = vshrl.u32 %v110, 7
  %v112 = vsub.s32 0, %v111
  %v113 = vrot.slane %v108, %v112
  %115 = vmatprep.subr.mxu0 0.0
  %116 = vmatpush1.msra.mxu0 %v76
  %117 = vmatprep.subr.mxu0 0.0
  %118 = vmatpush1.msra.mxu0 %v77
  %119 = vmatprep.subr.mxu0 0.0
  %120 = vmatpush1.msra.mxu0 %v78
  %121 = vmatprep.subr.mxu0 0.0
  %122 = vmatpush1.msra.mxu0 %v79
  %123 = vmatprep.subr.mxu0 0.0
  %124 = vmatpush1.msra.mxu0 %v80
  %125 = vmatprep.subr.mxu0 0.0
  %126 = vmatpush1.msra.mxu0 %v81
  %127 = vmatprep.subr.mxu0 0.0
  %128 = vmatpush1.msra.mxu0 %v82
  %129 = vmatprep.subr.mxu0 0.0
  %130 = vmatpush1.msra.mxu0 %v83
  %131 = vmatprep.subr.mxu0 0.0
  %132 = vmatpush1.msra.mxu0 %v84
  %133 = vmatprep.subr.mxu0 0.0
  %134 = vmatpush1.msra.mxu0 %v85
  %135 = vmatprep.subr.mxu0 0.0
  %136 = vmatpush1.msra.mxu0 %v86
  %137 = vmatprep.subr.mxu0 0.0
  %138 = vmatpush1.msra.mxu0 %v87
  %139 = vmatprep.subr.mxu0 0.0
  %140 = vmatpush1.msra.mxu0 %v88
  %141 = vmatprep.subr.mxu0 0.0
  %142 = vmatpush1.msra.mxu0 %v89
  %143 = vmatprep.subr.mxu0 0.0
  %144 = vmatpush1.msra.mxu0 %v90
  %145 = vmatprep.subr.mxu0 0.0
  %146 = vmatpush1.msra.mxu0 %v91
  %147 = vmatprep.subr.mxu0 0.0
  %148 = vmatpush1.msra.mxu0 %v92
  %149 = vmatprep.subr.mxu0 0.0
  %150 = vmatpush1.msra.mxu0 %v93
  %151 = vmatprep.subr.mxu0 0.0
  %152 = vmatpush1.msra.mxu0 %v94
  %153 = vmatprep.subr.mxu0 0.0
  %154 = vmatpush1.msra.mxu0 %v95
  %155 = vmatprep.subr.mxu0 0.0
  %156 = vmatpush1.msra.mxu0 %v96
  %157 = vmatprep.subr.mxu0 0.0
  %158 = vmatpush1.msra.mxu0 %v97
  %159 = vmatprep.subr.mxu0 0.0
  %160 = vmatpush1.msra.mxu0 %v98
  %161 = vmatprep.subr.mxu0 0.0
  %162 = vmatpush1.msra.mxu0 %v99
  %163 = vmatprep.subr.mxu0 0.0
  %164 = vmatpush1.msra.mxu0 %v100
  %165 = vmatprep.subr.mxu0 0.0
  %166 = vmatpush1.msra.mxu0 %v101
  %167 = vmatprep.subr.mxu0 0.0
  %168 = vmatpush1.msra.mxu0 %v102
  %169 = vmatprep.subr.mxu0 0.0
  %170 = vmatpush1.msra.mxu0 %v103
  %171 = vmatprep.subr.mxu0 0.0
  %172 = vmatpush1.msra.mxu0 %v104
  %173 = vmatprep.subr.mxu0 0.0
  %174 = vmatpush1.msra.mxu0 %v105
  %175 = vmatprep.subr.mxu0 0.0
  %176 = vmatpush1.msra.mxu0 %v106
  %177 = vmatprep.subr.mxu0 0.0
  %178 = vmatpush1.msra.mxu0 %v107
  %179 = vmatprep.mubr.f32.mxu0 %v15
  %180 = vmatmul.mubr.f32.gmra.mrb[0].mxu0 %v14
  %v181 = vpop.f32.mrb[0].mxu0
  %v182 = vadd.f32 %v113, %v181
  %v183 = vpop.f32.mrb[0].mxu0
  %184 = vmatprep.mubr.f32.mxu0 %v17
  %185 = vmatmul.mubr.f32.gmra.mrb[0].mxu0 %v16
  %v186 = vpop.f32.mrb[0].mxu0
  %v187 = vadd.f32 %v113, %v186
  %v188 = vpop.f32.mrb[0].mxu0
  %189 = vmatprep.mubr.f32.mxu0 %v19
  %190 = vmatmul.mubr.f32.gmra.mrb[0].mxu0 %v18
  %v191 = vpop.f32.mrb[0].mxu0
  %v192 = vadd.f32 %v113, %v191
  %v193 = vpop.f32.mrb[0].mxu0
  %194 = vmatprep.mubr.f32.mxu0 %v21
  %195 = vmatmul.mubr.f32.gmra.mrb[0].mxu0 %v20
  %v196 = vpop.f32.mrb[0].mxu0
  %v197 = vadd.f32 %v113, %v196
  %v198 = vpop.f32.mrb[0].mxu0
  %199 = vmatprep.mubr.f32.mxu0 %v23
  %200 = vmatmul.mubr.f32.gmra.mrb[0].mxu0 %v22
  %v201 = vpop.f32.mrb[0].mxu0
  %v202 = vadd.f32 %v113, %v201
  %v203 = vpop.f32.mrb[0].mxu0
  %204 = vmatprep.mubr.f32.mxu0 %v25
  %205 = vmatmul.mubr.f32.gmra.mrb[0].mxu0 %v24
  %v206 = vpop.f32.mrb[0].mxu0
  %v207 = vadd.f32 %v113, %v206
  %v208 = vpop.f32.mrb[0].mxu0
  %209 = vmatprep.mubr.f32.mxu0 %v27
  %210 = vmatmul.mubr.f32.gmra.mrb[0].mxu0 %v26
  %v211 = vpop.f32.mrb[0].mxu0
  %v212 = vadd.f32 %v113, %v211
  %v213 = vpop.f32.mrb[0].mxu0
  %214 = vmatprep.mubr.f32.mxu0 %v29
  %215 = vmatmul.mubr.f32.gmra.mrb[0].mxu0 %v28
  %v216 = vpop.f32.mrb[0].mxu0
  %v217 = vadd.f32 %v113, %v216
  %v218 = vpop.f32.mrb[0].mxu0
  %219 = vmatprep.mubr.f32.mxu0 %v31
  %220 = vmatmul.mubr.f32.gmra.mrb[0].mxu0 %v30
  %v221 = vpop.f32.mrb[0].mxu0
  %v222 = vadd.f32 %v113, %v221
  %v223 = vpop.f32.mrb[0].mxu0
  %224 = vmatprep.mubr.f32.mxu0 %v33
  %225 = vmatmul.mubr.f32.gmra.mrb[0].mxu0 %v32
  %v226 = vpop.f32.mrb[0].mxu0
  %v227 = vadd.f32 %v113, %v226
  %v228 = vpop.f32.mrb[0].mxu0
  %229 = vmatprep.mubr.f32.mxu0 %v35
  %230 = vmatmul.mubr.f32.gmra.mrb[0].mxu0 %v34
  %v231 = vpop.f32.mrb[0].mxu0
  %v232 = vadd.f32 %v113, %v231
  %v233 = vpop.f32.mrb[0].mxu0
  %234 = vmatprep.mubr.f32.mxu0 %v37
  %235 = vmatmul.mubr.f32.gmra.mrb[0].mxu0 %v36
  %v236 = vpop.f32.mrb[0].mxu0
  %v237 = vadd.f32 %v113, %v236
  %v238 = vpop.f32.mrb[0].mxu0
  %239 = vmatprep.mubr.f32.mxu0 %v39
  %240 = vmatmul.mubr.f32.gmra.mrb[0].mxu0 %v38
  %v241 = vpop.f32.mrb[0].mxu0
  %v242 = vadd.f32 %v113, %v241
  %v243 = vpop.f32.mrb[0].mxu0
  %244 = vmatprep.mubr.f32.mxu0 %v41
  %245 = vmatmul.mubr.f32.gmra.mrb[0].mxu0 %v40
  %v246 = vpop.f32.mrb[0].mxu0
  %v247 = vadd.f32 %v113, %v246
  %v248 = vpop.f32.mrb[0].mxu0
  %249 = vmatprep.mubr.f32.mxu0 %v43
  %250 = vmatmul.mubr.f32.gmra.mrb[0].mxu0 %v42
  %v251 = vpop.f32.mrb[0].mxu0
  %v252 = vadd.f32 %v113, %v251
  %v253 = vpop.f32.mrb[0].mxu0
  %254 = vmatprep.mubr.f32.mxu0 %v45
  %255 = vmatmul.mubr.f32.gmra.mrb[0].mxu0 %v44
  %v256 = vpop.f32.mrb[0].mxu0
  %v257 = vadd.f32 %v113, %v256
  %v258 = vpop.f32.mrb[0].mxu0
  %259 = vmatprep.mubr.f32.mxu0 %v47
  %260 = vmatmul.mubr.f32.gmra.mrb[0].mxu0 %v46
  %v261 = vpop.f32.mrb[0].mxu0
  %v262 = vadd.f32 %v113, %v261
  %v263 = vpop.f32.mrb[0].mxu0
  %264 = vmatprep.mubr.f32.mxu0 %v49
  %265 = vmatmul.mubr.f32.gmra.mrb[0].mxu0 %v48
  %v266 = vpop.f32.mrb[0].mxu0
  %v267 = vadd.f32 %v113, %v266
  %v268 = vpop.f32.mrb[0].mxu0
  %269 = vmatprep.mubr.f32.mxu0 %v51
  %270 = vmatmul.mubr.f32.gmra.mrb[0].mxu0 %v50
  %v271 = vpop.f32.mrb[0].mxu0
  %v272 = vadd.f32 %v113, %v271
  %v273 = vpop.f32.mrb[0].mxu0
  %274 = vmatprep.mubr.f32.mxu0 %v53
  %275 = vmatmul.mubr.f32.gmra.mrb[0].mxu0 %v52
  %v276 = vpop.f32.mrb[0].mxu0
  %v277 = vadd.f32 %v113, %v276
  %v278 = vpop.f32.mrb[0].mxu0
  %279 = vmatprep.mubr.f32.mxu0 %v55
  %280 = vmatmul.mubr.f32.gmra.mrb[0].mxu0 %v54
  %v281 = vpop.f32.mrb[0].mxu0
  %v282 = vadd.f32 %v113, %v281
  %v283 = vpop.f32.mrb[0].mxu0
  %284 = vmatprep.mubr.f32.mxu0 %v57
  %285 = vmatmul.mubr.f32.gmra.mrb[0].mxu0 %v56
  %v286 = vpop.f32.mrb[0].mxu0
  %v287 = vadd.f32 %v113, %v286
  %v288 = vpop.f32.mrb[0].mxu0
  %289 = vmatprep.mubr.f32.mxu0 %v59
  %290 = vmatmul.mubr.f32.gmra.mrb[0].mxu0 %v58
  %v291 = vpop.f32.mrb[0].mxu0
  %v292 = vadd.f32 %v113, %v291
  %v293 = vpop.f32.mrb[0].mxu0
  %294 = vmatprep.mubr.f32.mxu0 %v61
  %295 = vmatmul.mubr.f32.gmra.mrb[0].mxu0 %v60
  %v296 = vpop.f32.mrb[0].mxu0
  %v297 = vadd.f32 %v113, %v296
  %v298 = vpop.f32.mrb[0].mxu0
  %299 = vmatprep.mubr.f32.mxu0 %v63
  %300 = vmatmul.mubr.f32.gmra.mrb[0].mxu0 %v62
  %v301 = vpop.f32.mrb[0].mxu0
  %v302 = vadd.f32 %v113, %v301
  %v303 = vpop.f32.mrb[0].mxu0
  %304 = vmatprep.mubr.f32.mxu0 %v65
  %305 = vmatmul.mubr.f32.gmra.mrb[0].mxu0 %v64
  %v306 = vpop.f32.mrb[0].mxu0
  %v307 = vadd.f32 %v113, %v306
  %v308 = vpop.f32.mrb[0].mxu0
  %309 = vmatprep.mubr.f32.mxu0 %v67
  %310 = vmatmul.mubr.f32.gmra.mrb[0].mxu0 %v66
  %v311 = vpop.f32.mrb[0].mxu0
  %v312 = vadd.f32 %v113, %v311
  %v313 = vpop.f32.mrb[0].mxu0
  %314 = vmatprep.mubr.f32.mxu0 %v69
  %315 = vmatmul.mubr.f32.gmra.mrb[0].mxu0 %v68
  %v316 = vpop.f32.mrb[0].mxu0
  %v317 = vadd.f32 %v113, %v316
  %v318 = vpop.f32.mrb[0].mxu0
  %319 = vmatprep.mubr.f32.mxu0 %v71
  %320 = vmatmul.mubr.f32.gmra.mrb[0].mxu0 %v70
  %v321 = vpop.f32.mrb[0].mxu0
  %v322 = vadd.f32 %v113, %v321
  %v323 = vpop.f32.mrb[0].mxu0
  %324 = vmatprep.mubr.f32.mxu0 %v73
  %325 = vmatmul.mubr.f32.gmra.mrb[0].mxu0 %v72
  %v326 = vpop.f32.mrb[0].mxu0
  %v327 = vadd.f32 %v113, %v326
  %v328 = vpop.f32.mrb[0].mxu0
  %329 = vmatprep.mubr.f32.mxu0 %v75
  %330 = vmatmul.mubr.f32.gmra.mrb[0].mxu0 %v74
  %v331 = vpop.f32.mrb[0].mxu0
  %v332 = vadd.f32 %v113, %v331
  %v333 = vpop.f32.mrb[0].mxu0
  %334 = vdwg.mxu0
  %v335 = vmax.f32 %v182, 0.0
  %v336 = vmax.f32 %v187, 0.0
  %v337 = vmax.f32 %v192, 0.0
  %v338 = vmax.f32 %v197, 0.0
  %v339 = vmax.f32 %v202, 0.0
  %v340 = vmax.f32 %v207, 0.0
  %v341 = vmax.f32 %v212, 0.0
  %v342 = vmax.f32 %v217, 0.0
  %v343 = vmax.f32 %v222, 0.0
  %v344 = vmax.f32 %v227, 0.0
  %v345 = vmax.f32 %v232, 0.0
  %v346 = vmax.f32 %v237, 0.0
  %v347 = vmax.f32 %v242, 0.0
  %v348 = vmax.f32 %v247, 0.0
  %v349 = vmax.f32 %v252, 0.0
  %v350 = vmax.f32 %v257, 0.0
  %v351 = vmax.f32 %v262, 0.0
  %v352 = vmax.f32 %v267, 0.0
  %v353 = vmax.f32 %v272, 0.0
  %v354 = vmax.f32 %v277, 0.0
  %v355 = vmax.f32 %v282, 0.0
  %v356 = vmax.f32 %v287, 0.0
  %v357 = vmax.f32 %v292, 0.0
  %v358 = vmax.f32 %v297, 0.0
  %v359 = vmax.f32 %v302, 0.0
  %v360 = vmax.f32 %v307, 0.0
  %v361 = vmax.f32 %v312, 0.0
  %v362 = vmax.f32 %v317, 0.0
  %v363 = vmax.f32 %v322, 0.0
  %v364 = vmax.f32 %v327, 0.0
  %v365 = vmax.f32 %v332, 0.0
  %v366 = vpack.c.bf16 %v336, %v335
  %v367 = vpack.c.bf16 %v338, %v337
  %v368 = vpack.c.bf16 %v340, %v339
  %v369 = vpack.c.bf16 %v342, %v341
  %v370 = vpack.c.bf16 %v344, %v343
  %v371 = vpack.c.bf16 %v346, %v345
  %v372 = vpack.c.bf16 %v348, %v347
  %v373 = vpack.c.bf16 %v350, %v349
  %v374 = vpack.c.bf16 %v352, %v351
  %v375 = vpack.c.bf16 %v354, %v353
  %v376 = vpack.c.bf16 %v356, %v355
  %v377 = vpack.c.bf16 %v358, %v357
  %v378 = vpack.c.bf16 %v360, %v359
  %v379 = vpack.c.bf16 %v362, %v361
  %v380 = vpack.c.bf16 %v364, %v363
  %v381 = vpack.c.bf16 %v365, %v365
  %v398 = vunpack.c.l.b16 %v366
  %v399 = vunpack.c.h.b16 %v366
  %v400 = vunpack.c.l.b16 %v367
  %v401 = vunpack.c.h.b16 %v367
  %v402 = vunpack.c.l.b16 %v368
  %v403 = vunpack.c.h.b16 %v368
  %v404 = vunpack.c.l.b16 %v369
  %v405 = vunpack.c.h.b16 %v369
  %v406 = vunpack.c.l.b16 %v370
  %v407 = vunpack.c.h.b16 %v370
  %v408 = vunpack.c.l.b16 %v371
  %v409 = vunpack.c.h.b16 %v371
  %v410 = vunpack.c.l.b16 %v372
  %v411 = vunpack.c.h.b16 %v372
  %v412 = vunpack.c.l.b16 %v373
  %v413 = vunpack.c.h.b16 %v373
  %v414 = vunpack.c.l.b16 %v374
  %v415 = vunpack.c.h.b16 %v374
  %v416 = vunpack.c.l.b16 %v375
  %v417 = vunpack.c.h.b16 %v375
  %v418 = vunpack.c.l.b16 %v376
  %v419 = vunpack.c.h.b16 %v376
  %v420 = vunpack.c.l.b16 %v377
  %v421 = vunpack.c.h.b16 %v377
  %v422 = vunpack.c.l.b16 %v378
  %v423 = vunpack.c.h.b16 %v378
  %v424 = vunpack.c.l.b16 %v379
  %v425 = vunpack.c.h.b16 %v379
  %v426 = vunpack.c.l.b16 %v380
  %v427 = vunpack.c.h.b16 %v380
  %v428 = vunpack.c.l.b16 %v381
  %v429 = vpack.c.b16 %v398, %v398
  %v430 = vpack.c.b16 %v399, %v399
  %v431 = vpack.c.b16 %v400, %v400
  %v432 = vpack.c.b16 %v401, %v401
  %v433 = vpack.c.b16 %v402, %v402
  %v434 = vpack.c.b16 %v403, %v403
  %v435 = vpack.c.b16 %v404, %v404
  %v436 = vpack.c.b16 %v405, %v405
  %v437 = vpack.c.b16 %v406, %v406
  %v438 = vpack.c.b16 %v407, %v407
  %v439 = vpack.c.b16 %v408, %v408
  %v440 = vpack.c.b16 %v409, %v409
  %v441 = vpack.c.b16 %v410, %v410
  %v442 = vpack.c.b16 %v411, %v411
  %v443 = vpack.c.b16 %v412, %v412
  %v444 = vpack.c.b16 %v413, %v413
  %v445 = vpack.c.b16 %v414, %v414
  %v446 = vpack.c.b16 %v415, %v415
  %v447 = vpack.c.b16 %v416, %v416
  %v448 = vpack.c.b16 %v417, %v417
  %v449 = vpack.c.b16 %v418, %v418
  %v450 = vpack.c.b16 %v419, %v419
  %v451 = vpack.c.b16 %v420, %v420
  %v452 = vpack.c.b16 %v421, %v421
  %v453 = vpack.c.b16 %v422, %v422
  %v454 = vpack.c.b16 %v423, %v423
  %v455 = vpack.c.b16 %v424, %v424
  %v456 = vpack.c.b16 %v425, %v425
  %v457 = vpack.c.b16 %v426, %v426
  %v458 = vpack.c.b16 %v427, %v427
  %v459 = vpack.c.b16 %v428, %v428
  %vm491 = vcmask 257024
  %492 = vst.msk [vmem:[%s3] sm:$0xf] %vm491, %v429
  %493 = vst.msk [vmem:[%s3 + $0x4] sm:$0xf] %vm491, %v430
  %494 = vst.msk [vmem:[%s3 + $0x8] sm:$0xf] %vm491, %v431
  %495 = vst.msk [vmem:[%s3 + $0xc] sm:$0xf] %vm491, %v432
  %496 = vst.msk [vmem:[%s3 + $0x10] sm:$0xf] %vm491, %v433
  %497 = vst.msk [vmem:[%s3 + $0x14] sm:$0xf] %vm491, %v434
  %498 = vst.msk [vmem:[%s3 + $0x18] sm:$0xf] %vm491, %v435
  %499 = vst.msk [vmem:[%s3 + $0x1c] sm:$0xf] %vm491, %v436
  %500 = vst.msk [vmem:[%s3 + $0x20] sm:$0xf] %vm491, %v437
  %501 = vst.msk [vmem:[%s3 + $0x24] sm:$0xf] %vm491, %v438
  %502 = vst.msk [vmem:[%s3 + $0x28] sm:$0xf] %vm491, %v439
  %503 = vst.msk [vmem:[%s3 + $0x2c] sm:$0xf] %vm491, %v440
  %504 = vst.msk [vmem:[%s3 + $0x30] sm:$0xf] %vm491, %v441
  %505 = vst.msk [vmem:[%s3 + $0x34] sm:$0xf] %vm491, %v442
  %506 = vst.msk [vmem:[%s3 + $0x38] sm:$0xf] %vm491, %v443
  %507 = vst.msk [vmem:[%s3 + $0x3c] sm:$0xf] %vm491, %v444
  %508 = vst.msk [vmem:[%s3 + $0x40] sm:$0xf] %vm491, %v445
  %509 = vst.msk [vmem:[%s3 + $0x44] sm:$0xf] %vm491, %v446
  %510 = vst.msk [vmem:[%s3 + $0x48] sm:$0xf] %vm491, %v447
  %511 = vst.msk [vmem:[%s3 + $0x4c] sm:$0xf] %vm491, %v448
  %512 = vst.msk [vmem:[%s3 + $0x50] sm:$0xf] %vm491, %v449
  %513 = vst.msk [vmem:[%s3 + $0x54] sm:$0xf] %vm491, %v450
  %514 = vst.msk [vmem:[%s3 + $0x58] sm:$0xf] %vm491, %v451
  %515 = vst.msk [vmem:[%s3 + $0x5c] sm:$0xf] %vm491, %v452
  %516 = vst.msk [vmem:[%s3 + $0x60] sm:$0xf] %vm491, %v453
  %517 = vst.msk [vmem:[%s3 + $0x64] sm:$0xf] %vm491, %v454
  %518 = vst.msk [vmem:[%s3 + $0x68] sm:$0xf] %vm491, %v455
  %519 = vst.msk [vmem:[%s3 + $0x6c] sm:$0xf] %vm491, %v456
  %520 = vst.msk [vmem:[%s3 + $0x70] sm:$0xf] %vm491, %v457
  %521 = vst.msk [vmem:[%s3 + $0x74] sm:$0xf] %vm491, %v458
  %vm522 = vcmask 253952
  %523 = vst.msk [vmem:[%s3 + $0x78] sm:$0x1] %vm522, %v459
  // Predicated region
  $region14: #{actor_forward.4} parent=0 // pred_check
    _
  $region15: #{actor_forward.4} parent=0 // pred_check_branch
    %525 = sbr.rel (0) target = $region17
  $region16: #{actor_forward.4} parent=0 // pred_region
    _
  $region17: #{actor_forward.4} parent=0 // pred_fallthru
    _
  // Predicated region
  $region18: #{actor_forward.4} parent=0 // pred_check
    _
  $region19: #{actor_forward.4} parent=0 // pred_check_branch
    %527 = sbr.rel (0) target = $region21
  $region20: #{actor_forward.4} parent=0 // pred_region
    _
  $region21: #{actor_forward.4} parent=0 // pred_fallthru
    _

// kernel: actor_forward.5
$region0: #{actor_forward.5}
  #allocation0 [shape = 'u32[]', space=smem, size = 0x4, offset = 0x4, fixed_abs, tag = 'smem constant byte address 0x4 - core index']
  #allocation1 [shape = 'u32[144,128]{1,0:T(1,128)}', space=vmem, size = 0x12000, scoped, tag = 'internal scratch']
  %s0 = inlined_call_operand.vmem [shape: bf16[2,3872], index: 0, kind: input, shape index: {}]
  %s1 = inlined_call_operand.vmem [shape: bf16[3872,256], index: 1, kind: input, shape index: {}]
  %s2 = inlined_call_operand.vmem [shape: f32[1,256], index: 2, kind: input, shape index: {}]
  %s3 = inlined_call_operand.vmem [shape: f32[256,4], index: 3, kind: input, shape index: {}]
  %s4 = inlined_call_operand.vmem [shape: f32[1,4], index: 4, kind: input, shape index: {}]
  %s5 = inlined_call_operand.hbm [shape: f32[2,4], index: 5, kind: output, shape index: {}]
  %s6 = sld [smem:[#allocation0]]
  $region30: #{actor_forward.5} parent=0
    _
  %s8 = ssub.s32 1, %s6
  %s9 = scalar_select 0, %s8, %s6
  $region1: #{actor_forward.5} parent=0
    #allocation2 [shape = 'u8[1024]{0}', space=vmem, size = 0x400, scoped, tag = 'output window, operand 0, single buffered']
    #allocation3 [shape = 's32[1]{0}', space=sflag, size = 0x4, scoped, tag = 'scoped memory for actor_forward.5']
    %10 = vsyncpa [#allocation3], 0
    // Predicated region
    $region2: #{actor_forward.5} parent=1 // pred_check
      _
    $region3: #{actor_forward.5} parent=1 // pred_check_branch
      %12 = sbr.rel (0) target = $region5
    $region4: #{actor_forward.5} parent=1 // pred_region
      _
    $region5: #{actor_forward.5} parent=1 // pred_fallthru
      _
    // Predicated region
    $region6: #{actor_forward.5} parent=1 // pred_check
      _
    $region7: #{actor_forward.5} parent=1 // pred_check_branch
      %14 = sbr.rel (0) target = $region9
    $region8: #{actor_forward.5} parent=1 // pred_region
      _
    $region9: #{actor_forward.5} parent=1 // pred_fallthru
      _
    // Predicated region
    $region10: #{actor_forward.5} parent=1 // pred_check
      _
    $region11: #{actor_forward.5} parent=1 // pred_check_branch
      %16 = sbr.rel (0) target = $region13
    $region12: #{actor_forward.5} parent=1 // pred_region
      _
    $region13: #{actor_forward.5} parent=1 // pred_fallthru
      _
    // Predicated region
    $region14: #{actor_forward.5} parent=1 // pred_check
      _
    $region15: #{actor_forward.5} parent=1 // pred_check_branch
      %18 = sbr.rel (0) target = $region17
    $region16: #{actor_forward.5} parent=1 // pred_region
      _
    $region17: #{actor_forward.5} parent=1 // pred_fallthru
      _
    // Predicated region
    $region18: #{actor_forward.5} parent=1 // pred_check
      _
    $region19: #{actor_forward.5} parent=1 // pred_check_branch
      %20 = sbr.rel (0) target = $region21
    $region20: #{actor_forward.5} parent=1 // pred_region
      _
    $region21: #{actor_forward.5} parent=1 // pred_fallthru
      _
    %v22 = vld [vmem:[%s0] sm:$0xff]
    %v23 = vld [vmem:[%s0 + $0x8] sm:$0xff]
    %v24 = vld [vmem:[%s0 + $0x10] sm:$0xff]
    %v25 = vld [vmem:[%s0 + $0x18] sm:$0x7f]
    %v26 = vld [vmem:[%s1] sm:$0xff]
    %v27 = vld [vmem:[%s1 + $0x8] sm:$0xff]
    %v28 = vld [vmem:[%s1 + $0x10] sm:$0xff]
    %v29 = vld [vmem:[%s1 + $0x18] sm:$0xff]
    %v30 = vld [vmem:[%s1 + $0x20] sm:$0xff]
    %v31 = vld [vmem:[%s1 + $0x28] sm:$0xff]
    %v32 = vld [vmem:[%s1 + $0x30] sm:$0xff]
    %v33 = vld [vmem:[%s1 + $0x38] sm:$0xff]
    %v34 = vld [vmem:[%s1 + $0x40] sm:$0xff]
    %v35 = vld [vmem:[%s1 + $0x48] sm:$0xff]
    %v36 = vld [vmem:[%s1 + $0x50] sm:$0xff]
    %v37 = vld [vmem:[%s1 + $0x58] sm:$0xff]
    %v38 = vld [vmem:[%s1 + $0x60] sm:$0xff]
    %v39 = vld [vmem:[%s1 + $0x68] sm:$0xff]
    %v40 = vld [vmem:[%s1 + $0x70] sm:$0xff]
    %v41 = vld [vmem:[%s1 + $0x78] sm:$0xff]
    %v42 = vld [vmem:[%s1 + $0x80] sm:$0xff]
    %v43 = vld [vmem:[%s1 + $0x88] sm:$0xff]
    %v44 = vld [vmem:[%s1 + $0x90] sm:$0xff]
    %v45 = vld [vmem:[%s1 + $0x98] sm:$0xff]
    %v46 = vld [vmem:[%s1 + $0xa0] sm:$0xff]
    %v47 = vld [vmem:[%s1 + $0xa8] sm:$0xff]
    %v48 = vld [vmem:[%s1 + $0xb0] sm:$0xff]
    %v49 = vld [vmem:[%s1 + $0xb8] sm:$0xff]
    %v50 = vld [vmem:[%s1 + $0xc0] sm:$0xff]
    %v51 = vld [vmem:[%s1 + $0xc8] sm:$0xff]
    %v52 = vld [vmem:[%s1 + $0xd0] sm:$0xff]
    %v53 = vld [vmem:[%s1 + $0xd8] sm:$0xff]
    %v54 = vld [vmem:[%s1 + $0xe0] sm:$0xff]
    %v55 = vld [vmem:[%s1 + $0xe8] sm:$0xff]
    %v56 = vld [vmem:[%s1 + $0xf0] sm:$0xff]
    %v57 = vld [vmem:[%s1 + $0xf8] sm:$0xff]
    %v58 = vld [vmem:[%s1 + $0x100] sm:$0xff]
    %v59 = vld [vmem:[%s1 + $0x108] sm:$0xff]
    %v60 = vld [vmem:[%s1 + $0x110] sm:$0xff]
    %v61 = vld [vmem:[%s1 + $0x118] sm:$0xff]
    %v62 = vld [vmem:[%s1 + $0x120] sm:$0xff]
    %v63 = vld [vmem:[%s1 + $0x128] sm:$0xff]
    %v64 = vld [vmem:[%s1 + $0x130] sm:$0xff]
    %v65 = vld [vmem:[%s1 + $0x138] sm:$0xff]
    %v66 = vld [vmem:[%s1 + $0x140] sm:$0xff]
    %v67 = vld [vmem:[%s1 + $0x148] sm:$0xff]
    %v68 = vld [vmem:[%s1 + $0x150] sm:$0xff]
    %v69 = vld [vmem:[%s1 + $0x158] sm:$0xff]
    %v70 = vld [vmem:[%s1 + $0x160] sm:$0xff]
    %v71 = vld [vmem:[%s1 + $0x168] sm:$0xff]
    %v72 = vld [vmem:[%s1 + $0x170] sm:$0xff]
    %v73 = vld [vmem:[%s1 + $0x178] sm:$0xff]
    %v74 = vld [vmem:[%s1 + $0x180] sm:$0xff]
    %v75 = vld [vmem:[%s1 + $0x188] sm:$0xff]
    %v76 = vld [vmem:[%s1 + $0x190] sm:$0xff]
    %v77 = vld [vmem:[%s1 + $0x198] sm:$0xff]
    %v78 = vld [vmem:[%s1 + $0x1a0] sm:$0xff]
    %v79 = vld [vmem:[%s1 + $0x1a8] sm:$0xff]
    %v80 = vld [vmem:[%s1 + $0x1b0] sm:$0xff]
    %v81 = vld [vmem:[%s1 + $0x1b8] sm:$0xff]
    %v82 = vld [vmem:[%s1 + $0x1c0] sm:$0xff]
    %v83 = vld [vmem:[%s1 + $0x1c8] sm:$0xff]
    %v84 = vld [vmem:[%s1 + $0x1d0] sm:$0xff]
    %v85 = vld [vmem:[%s1 + $0x1d8] sm:$0xff]
    %v86 = vld [vmem:[%s1 + $0x1e0] sm:$0xff]
    %v87 = vld [vmem:[%s1 + $0x1e8] sm:$0xff]
    %v88 = vld [vmem:[%s1 + $0x1f0] sm:$0xff]
    %v89 = vld [vmem:[%s1 + $0x1f8] sm:$0xff]
    %v90 = vld [vmem:[%s1 + $0x200] sm:$0xff]
    %v91 = vld [vmem:[%s1 + $0x208] sm:$0xff]
    %v92 = vld [vmem:[%s1 + $0x210] sm:$0xff]
    %v93 = vld [vmem:[%s1 + $0x218] sm:$0xff]
    %v94 = vld [vmem:[%s1 + $0x220] sm:$0xff]
    %v95 = vld [vmem:[%s1 + $0x228] sm:$0xff]
    %v96 = vld [vmem:[%s1 + $0x230] sm:$0xff]
    %v97 = vld [vmem:[%s1 + $0x238] sm:$0xff]
    %v98 = vld [vmem:[%s1 + $0x240] sm:$0xff]
    %v99 = vld [vmem:[%s1 + $0x248] sm:$0xff]
    %v100 = vld [vmem:[%s1 + $0x250] sm:$0xff]
    %v101 = vld [vmem:[%s1 + $0x258] sm:$0xff]
    %v102 = vld [vmem:[%s1 + $0x260] sm:$0xff]
    %v103 = vld [vmem:[%s1 + $0x268] sm:$0xff]
    %v104 = vld [vmem:[%s1 + $0x270] sm:$0xff]
    %v105 = vld [vmem:[%s1 + $0x278] sm:$0xff]
    %v106 = vld [vmem:[%s1 + $0x280] sm:$0xff]
    %v107 = vld [vmem:[%s1 + $0x288] sm:$0xff]
    %v108 = vld [vmem:[%s1 + $0x290] sm:$0xff]
    %v109 = vld [vmem:[%s1 + $0x298] sm:$0xff]
    %v110 = vld [vmem:[%s1 + $0x2a0] sm:$0xff]
    %v111 = vld [vmem:[%s1 + $0x2a8] sm:$0xff]
    %v112 = vld [vmem:[%s1 + $0x2b0] sm:$0xff]
    %v113 = vld [vmem:[%s1 + $0x2b8] sm:$0xff]
    %v114 = vld [vmem:[%s1 + $0x2c0] sm:$0xff]
    %v115 = vld [vmem:[%s1 + $0x2c8] sm:$0xff]
    %v116 = vld [vmem:[%s1 + $0x2d0] sm:$0xff]
    %v117 = vld [vmem:[%s1 + $0x2d8] sm:$0xff]
    %v118 = vld [vmem:[%s1 + $0x2e0] sm:$0xff]
    %v119 = vld [vmem:[%s1 + $0x2e8] sm:$0xff]
    %v120 = vld [vmem:[%s1 + $0x2f0] sm:$0xff]
    %v121 = vld [vmem:[%s1 + $0x2f8] sm:$0xff]
    %v122 = vld [vmem:[%s1 + $0x300] sm:$0xff]
    %v123 = vld [vmem:[%s1 + $0x308] sm:$0xff]
    %v124 = vld [vmem:[%s1 + $0x310] sm:$0xff]
    %v125 = vld [vmem:[%s1 + $0x318] sm:$0xff]
    %v126 = vld [vmem:[%s1 + $0x320] sm:$0xff]
    %v127 = vld [vmem:[%s1 + $0x328] sm:$0xff]
    %v128 = vld [vmem:[%s1 + $0x330] sm:$0xff]
    %v129 = vld [vmem:[%s1 + $0x338] sm:$0xff]
    %v130 = vld [vmem:[%s1 + $0x340] sm:$0xff]
    %v131 = vld [vmem:[%s1 + $0x348] sm:$0xff]
    %v132 = vld [vmem:[%s1 + $0x350] sm:$0xff]
    %v133 = vld [vmem:[%s1 + $0x358] sm:$0xff]
    %v134 = vld [vmem:[%s1 + $0x360] sm:$0xff]
    %v135 = vld [vmem:[%s1 + $0x368] sm:$0xff]
    %v136 = vld [vmem:[%s1 + $0x370] sm:$0xff]
    %v137 = vld [vmem:[%s1 + $0x378] sm:$0xff]
    %v138 = vld [vmem:[%s1 + $0x380] sm:$0xff]
    %v139 = vld [vmem:[%s1 + $0x388] sm:$0xff]
    %v140 = vld [vmem:[%s1 + $0x390] sm:$0xff]
    %v141 = vld [vmem:[%s1 + $0x398] sm:$0xff]
    %v142 = vld [vmem:[%s1 + $0x3a0] sm:$0xff]
    %v143 = vld [vmem:[%s1 + $0x3a8] sm:$0xff]
    %v144 = vld [vmem:[%s1 + $0x3b0] sm:$0xff]
    %v145 = vld [vmem:[%s1 + $0x3b8] sm:$0xff]
    %v146 = vld [vmem:[%s1 + $0x3c0] sm:$0xff]
    %v147 = vld [vmem:[%s1 + $0x3c8] sm:$0xff]
    %v148 = vld [vmem:[%s1 + $0x3d0] sm:$0xff]
    %v149 = vld [vmem:[%s1 + $0x3d8] sm:$0xff]
    %v150 = vld [vmem:[%s1 + $0x3e0] sm:$0xff]
    %v151 = vld [vmem:[%s1 + $0x3e8] sm:$0xff]
    %v152 = vld [vmem:[%s1 + $0x3f0] sm:$0xff]
    %v153 = vld [vmem:[%s1 + $0x3f8] sm:$0xff]
    %v154 = vld [vmem:[%s1 + $0x400] sm:$0xff]
    %v155 = vld [vmem:[%s1 + $0x408] sm:$0xff]
    %v156 = vld [vmem:[%s1 + $0x410] sm:$0xff]
    %v157 = vld [vmem:[%s1 + $0x418] sm:$0xff]
    %v158 = vld [vmem:[%s1 + $0x420] sm:$0xff]
    %v159 = vld [vmem:[%s1 + $0x428] sm:$0xff]
    %v160 = vld [vmem:[%s1 + $0x430] sm:$0xff]
    %v161 = vld [vmem:[%s1 + $0x438] sm:$0xff]
    %v162 = vld [vmem:[%s1 + $0x440] sm:$0xff]
    %v163 = vld [vmem:[%s1 + $0x448] sm:$0xff]
    %v164 = vld [vmem:[%s1 + $0x450] sm:$0xff]
    %v165 = vld [vmem:[%s1 + $0x458] sm:$0xff]
    %v166 = vld [vmem:[%s1 + $0x460] sm:$0xff]
    %v167 = vld [vmem:[%s1 + $0x468] sm:$0xff]
    %v168 = vld [vmem:[%s1 + $0x470] sm:$0xff]
    %v169 = vld [vmem:[%s1 + $0x478] sm:$0xff]
    %v170 = vld [vmem:[%s1 + $0x480] sm:$0xff]
    %v171 = vld [vmem:[%s1 + $0x488] sm:$0xff]
    %v172 = vld [vmem:[%s1 + $0x490] sm:$0xff]
    %v173 = vld [vmem:[%s1 + $0x498] sm:$0xff]
    %v174 = vld [vmem:[%s1 + $0x4a0] sm:$0xff]
    %v175 = vld [vmem:[%s1 + $0x4a8] sm:$0xff]
    %v176 = vld [vmem:[%s1 + $0x4b0] sm:$0xff]
    %v177 = vld [vmem:[%s1 + $0x4b8] sm:$0xff]
    %v178 = vld [vmem:[%s1 + $0x4c0] sm:$0xff]
    %v179 = vld [vmem:[%s1 + $0x4c8] sm:$0xff]
    %v180 = vld [vmem:[%s1 + $0x4d0] sm:$0xff]
    %v181 = vld [vmem:[%s1 + $0x4d8] sm:$0xff]
    %v182 = vld [vmem:[%s1 + $0x4e0] sm:$0xff]
    %v183 = vld [vmem:[%s1 + $0x4e8] sm:$0xff]
    %v184 = vld [vmem:[%s1 + $0x4f0] sm:$0xff]
    %v185 = vld [vmem:[%s1 + $0x4f8] sm:$0xff]
    %v186 = vld [vmem:[%s1 + $0x500] sm:$0xff]
    %v187 = vld [vmem:[%s1 + $0x508] sm:$0xff]
    %v188 = vld [vmem:[%s1 + $0x510] sm:$0xff]
    %v189 = vld [vmem:[%s1 + $0x518] sm:$0xff]
    %v190 = vld [vmem:[%s1 + $0x520] sm:$0xff]
    %v191 = vld [vmem:[%s1 + $0x528] sm:$0xff]
    %v192 = vld [vmem:[%s1 + $0x530] sm:$0xff]
    %v193 = vld [vmem:[%s1 + $0x538] sm:$0xff]
    %v194 = vld [vmem:[%s1 + $0x540] sm:$0xff]
    %v195 = vld [vmem:[%s1 + $0x548] sm:$0xff]
    %v196 = vld [vmem:[%s1 + $0x550] sm:$0xff]
    %v197 = vld [vmem:[%s1 + $0x558] sm:$0xff]
    %v198 = vld [vmem:[%s1 + $0x560] sm:$0xff]
    %v199 = vld [vmem:[%s1 + $0x568] sm:$0xff]
    %v200 = vld [vmem:[%s1 + $0x570] sm:$0xff]
    %v201 = vld [vmem:[%s1 + $0x578] sm:$0xff]
    %v202 = vld [vmem:[%s1 + $0x580] sm:$0xff]
    %v203 = vld [vmem:[%s1 + $0x588] sm:$0xff]
    %v204 = vld [vmem:[%s1 + $0x590] sm:$0xff]
    %v205 = vld [vmem:[%s1 + $0x598] sm:$0xff]
    %v206 = vld [vmem:[%s1 + $0x5a0] sm:$0xff]
    %v207 = vld [vmem:[%s1 + $0x5a8] sm:$0xff]
    %v208 = vld [vmem:[%s1 + $0x5b0] sm:$0xff]
    %v209 = vld [vmem:[%s1 + $0x5b8] sm:$0xff]
    %v210 = vld [vmem:[%s1 + $0x5c0] sm:$0xff]
    %v211 = vld [vmem:[%s1 + $0x5c8] sm:$0xff]
    %v212 = vld [vmem:[%s1 + $0x5d0] sm:$0xff]
    %v213 = vld [vmem:[%s1 + $0x5d8] sm:$0xff]
    %v214 = vld [vmem:[%s1 + $0x5e0] sm:$0xff]
    %v215 = vld [vmem:[%s1 + $0x5e8] sm:$0xff]
    %v216 = vld [vmem:[%s1 + $0x5f0] sm:$0xff]
    %v217 = vld [vmem:[%s1 + $0x5f8] sm:$0xff]
    %v218 = vld [vmem:[%s1 + $0x600] sm:$0xff]
    %v219 = vld [vmem:[%s1 + $0x608] sm:$0xff]
    %v220 = vld [vmem:[%s1 + $0x610] sm:$0xff]
    %v221 = vld [vmem:[%s1 + $0x618] sm:$0xff]
    %v222 = vld [vmem:[%s1 + $0x620] sm:$0xff]
    %v223 = vld [vmem:[%s1 + $0x628] sm:$0xff]
    %v224 = vld [vmem:[%s1 + $0x630] sm:$0xff]
    %v225 = vld [vmem:[%s1 + $0x638] sm:$0xff]
    %v226 = vld [vmem:[%s1 + $0x640] sm:$0xff]
    %v227 = vld [vmem:[%s1 + $0x648] sm:$0xff]
    %v228 = vld [vmem:[%s1 + $0x650] sm:$0xff]
    %v229 = vld [vmem:[%s1 + $0x658] sm:$0xff]
    %v230 = vld [vmem:[%s1 + $0x660] sm:$0xff]
    %v231 = vld [vmem:[%s1 + $0x668] sm:$0xff]
    %v232 = vld [vmem:[%s1 + $0x670] sm:$0xff]
    %v233 = vld [vmem:[%s1 + $0x678] sm:$0xff]
    %v234 = vld [vmem:[%s1 + $0x680] sm:$0xff]
    %v235 = vld [vmem:[%s1 + $0x688] sm:$0xff]
    %v236 = vld [vmem:[%s1 + $0x690] sm:$0xff]
    %v237 = vld [vmem:[%s1 + $0x698] sm:$0xff]
    %v238 = vld [vmem:[%s1 + $0x6a0] sm:$0xff]
    %v239 = vld [vmem:[%s1 + $0x6a8] sm:$0xff]
    %v240 = vld [vmem:[%s1 + $0x6b0] sm:$0xff]
    %v241 = vld [vmem:[%s1 + $0x6b8] sm:$0xff]
    %v242 = vld [vmem:[%s1 + $0x6c0] sm:$0xff]
    %v243 = vld [vmem:[%s1 + $0x6c8] sm:$0xff]
    %v244 = vld [vmem:[%s1 + $0x6d0] sm:$0xff]
    %v245 = vld [vmem:[%s1 + $0x6d8] sm:$0xff]
    %v246 = vld [vmem:[%s1 + $0x6e0] sm:$0xff]
    %v247 = vld [vmem:[%s1 + $0x6e8] sm:$0xff]
    %v248 = vld [vmem:[%s1 + $0x6f0] sm:$0xff]
    %v249 = vld [vmem:[%s1 + $0x6f8] sm:$0xff]
    %v250 = vld [vmem:[%s1 + $0x700] sm:$0xff]
    %v251 = vld [vmem:[%s1 + $0x708] sm:$0xff]
    %v252 = vld [vmem:[%s1 + $0x710] sm:$0xff]
    %v253 = vld [vmem:[%s1 + $0x718] sm:$0xff]
    %v254 = vld [vmem:[%s1 + $0x720] sm:$0xff]
    %v255 = vld [vmem:[%s1 + $0x728] sm:$0xff]
    %v256 = vld [vmem:[%s1 + $0x730] sm:$0xff]
    %v257 = vld [vmem:[%s1 + $0x738] sm:$0xff]
    %v258 = vld [vmem:[%s1 + $0x740] sm:$0xff]
    %v259 = vld [vmem:[%s1 + $0x748] sm:$0xff]
    %v260 = vld [vmem:[%s1 + $0x750] sm:$0xff]
    %v261 = vld [vmem:[%s1 + $0x758] sm:$0xff]
    %v262 = vld [vmem:[%s1 + $0x760] sm:$0xff]
    %v263 = vld [vmem:[%s1 + $0x768] sm:$0xff]
    %v264 = vld [vmem:[%s1 + $0x770] sm:$0xff]
    %v265 = vld [vmem:[%s1 + $0x778] sm:$0xff]
    %v266 = vld [vmem:[%s1 + $0x780] sm:$0xff]
    %v267 = vld [vmem:[%s1 + $0x788] sm:$0xff]
    %v268 = vld [vmem:[%s1 + $0x790] sm:$0xff]
    %v269 = vld [vmem:[%s1 + $0x798] sm:$0xff]
    %v270 = vld [vmem:[%s1 + $0x7a0] sm:$0xff]
    %v271 = vld [vmem:[%s1 + $0x7a8] sm:$0xff]
    %v272 = vld [vmem:[%s1 + $0x7b0] sm:$0xff]
    %v273 = vld [vmem:[%s1 + $0x7b8] sm:$0xff]
    %v274 = vld [vmem:[%s1 + $0x7c0] sm:$0xff]
    %v275 = vld [vmem:[%s1 + $0x7c8] sm:$0xff]
    %v276 = vld [vmem:[%s1 + $0x7d0] sm:$0xff]
    %v277 = vld [vmem:[%s1 + $0x7d8] sm:$0xff]
    %v278 = vld [vmem:[%s1 + $0x7e0] sm:$0xff]
    %v279 = vld [vmem:[%s1 + $0x7e8] sm:$0xff]
    %v280 = vld [vmem:[%s1 + $0x7f0] sm:$0xff]
    %v281 = vld [vmem:[%s1 + $0x7f8] sm:$0xff]
    %v282 = vld [vmem:[%s1 + $0x800] sm:$0xff]
    %v283 = vld [vmem:[%s1 + $0x808] sm:$0xff]
    %v284 = vld [vmem:[%s1 + $0x810] sm:$0xff]
    %v285 = vld [vmem:[%s1 + $0x818] sm:$0xff]
    %v286 = vld [vmem:[%s1 + $0x820] sm:$0xff]
    %v287 = vld [vmem:[%s1 + $0x828] sm:$0xff]
    %v288 = vld [vmem:[%s1 + $0x830] sm:$0xff]
    %v289 = vld [vmem:[%s1 + $0x838] sm:$0xff]
    %v290 = vld [vmem:[%s1 + $0x840] sm:$0xff]
    %v291 = vld [vmem:[%s1 + $0x848] sm:$0xff]
    %v292 = vld [vmem:[%s1 + $0x850] sm:$0xff]
    %v293 = vld [vmem:[%s1 + $0x858] sm:$0xff]
    %v294 = vld [vmem:[%s1 + $0x860] sm:$0xff]
    %v295 = vld [vmem:[%s1 + $0x868] sm:$0xff]
    %v296 = vld [vmem:[%s1 + $0x870] sm:$0xff]
    %v297 = vld [vmem:[%s1 + $0x878] sm:$0xff]
    %v298 = vld [vmem:[%s1 + $0x880] sm:$0xff]
    %v299 = vld [vmem:[%s1 + $0x888] sm:$0xff]
    %v300 = vld [vmem:[%s1 + $0x890] sm:$0xff]
    %v301 = vld [vmem:[%s1 + $0x898] sm:$0xff]
    %v302 = vld [vmem:[%s1 + $0x8a0] sm:$0xff]
    %v303 = vld [vmem:[%s1 + $0x8a8] sm:$0xff]
    %v304 = vld [vmem:[%s1 + $0x8b0] sm:$0xff]
    %v305 = vld [vmem:[%s1 + $0x8b8] sm:$0xff]
    %v306 = vld [vmem:[%s1 + $0x8c0] sm:$0xff]
    %v307 = vld [vmem:[%s1 + $0x8c8] sm:$0xff]
    %v308 = vld [vmem:[%s1 + $0x8d0] sm:$0xff]
    %v309 = vld [vmem:[%s1 + $0x8d8] sm:$0xff]
    %v310 = vld [vmem:[%s1 + $0x8e0] sm:$0xff]
    %v311 = vld [vmem:[%s1 + $0x8e8] sm:$0xff]
    %v312 = vld [vmem:[%s1 + $0x8f0] sm:$0xff]
    %v313 = vld [vmem:[%s1 + $0x8f8] sm:$0xff]
    %v314 = vld [vmem:[%s1 + $0x900] sm:$0xff]
    %v315 = vld [vmem:[%s1 + $0x908] sm:$0xff]
    %v316 = vld [vmem:[%s1 + $0x910] sm:$0xff]
    %v317 = vld [vmem:[%s1 + $0x918] sm:$0xff]
    %v318 = vld [vmem:[%s1 + $0x920] sm:$0xff]
    %v319 = vld [vmem:[%s1 + $0x928] sm:$0xff]
    %v320 = vld [vmem:[%s1 + $0x930] sm:$0xff]
    %v321 = vld [vmem:[%s1 + $0x938] sm:$0xff]
    %v322 = vld [vmem:[%s1 + $0x940] sm:$0xff]
    %v323 = vld [vmem:[%s1 + $0x948] sm:$0xff]
    %v324 = vld [vmem:[%s1 + $0x950] sm:$0xff]
    %v325 = vld [vmem:[%s1 + $0x958] sm:$0xff]
    %v326 = vld [vmem:[%s1 + $0x960] sm:$0xff]
    %v327 = vld [vmem:[%s1 + $0x968] sm:$0xff]
    %v328 = vld [vmem:[%s1 + $0x970] sm:$0xff]
    %v329 = vld [vmem:[%s1 + $0x978] sm:$0xff]
    %v330 = vld [vmem:[%s1 + $0x980] sm:$0xff]
    %v331 = vld [vmem:[%s1 + $0x988] sm:$0xff]
    %v332 = vld [vmem:[%s1 + $0x990] sm:$0xff]
    %v333 = vld [vmem:[%s1 + $0x998] sm:$0xff]
    %v334 = vld [vmem:[%s1 + $0x9a0] sm:$0xff]
    %v335 = vld [vmem:[%s1 + $0x9a8] sm:$0xff]
    %v336 = vld [vmem:[%s1 + $0x9b0] sm:$0xff]
    %v337 = vld [vmem:[%s1 + $0x9b8] sm:$0xff]
    %v338 = vld [vmem:[%s1 + $0x9c0] sm:$0xff]
    %v339 = vld [vmem:[%s1 + $0x9c8] sm:$0xff]
    %v340 = vld [vmem:[%s1 + $0x9d0] sm:$0xff]
    %v341 = vld [vmem:[%s1 + $0x9d8] sm:$0xff]
    %v342 = vld [vmem:[%s1 + $0x9e0] sm:$0xff]
    %v343 = vld [vmem:[%s1 + $0x9e8] sm:$0xff]
    %v344 = vld [vmem:[%s1 + $0x9f0] sm:$0xff]
    %v345 = vld [vmem:[%s1 + $0x9f8] sm:$0xff]
    %v346 = vld [vmem:[%s1 + $0xa00] sm:$0xff]
    %v347 = vld [vmem:[%s1 + $0xa08] sm:$0xff]
    %v348 = vld [vmem:[%s1 + $0xa10] sm:$0xff]
    %v349 = vld [vmem:[%s1 + $0xa18] sm:$0xff]
    %v350 = vld [vmem:[%s1 + $0xa20] sm:$0xff]
    %v351 = vld [vmem:[%s1 + $0xa28] sm:$0xff]
    %v352 = vld [vmem:[%s1 + $0xa30] sm:$0xff]
    %v353 = vld [vmem:[%s1 + $0xa38] sm:$0xff]
    %v354 = vld [vmem:[%s1 + $0xa40] sm:$0xff]
    %v355 = vld [vmem:[%s1 + $0xa48] sm:$0xff]
    %v356 = vld [vmem:[%s1 + $0xa50] sm:$0xff]
    %v357 = vld [vmem:[%s1 + $0xa58] sm:$0xff]
    %v358 = vld [vmem:[%s1 + $0xa60] sm:$0xff]
    %v359 = vld [vmem:[%s1 + $0xa68] sm:$0xff]
    %v360 = vld [vmem:[%s1 + $0xa70] sm:$0xff]
    %v361 = vld [vmem:[%s1 + $0xa78] sm:$0xff]
    %v362 = vld [vmem:[%s1 + $0xa80] sm:$0xff]
    %v363 = vld [vmem:[%s1 + $0xa88] sm:$0xff]
    %v364 = vld [vmem:[%s1 + $0xa90] sm:$0xff]
    %v365 = vld [vmem:[%s1 + $0xa98] sm:$0xff]
    %v366 = vld [vmem:[%s1 + $0xaa0] sm:$0xff]
    %v367 = vld [vmem:[%s1 + $0xaa8] sm:$0xff]
    %v368 = vld [vmem:[%s1 + $0xab0] sm:$0xff]
    %v369 = vld [vmem:[%s1 + $0xab8] sm:$0xff]
    %v370 = vld [vmem:[%s1 + $0xac0] sm:$0xff]
    %v371 = vld [vmem:[%s1 + $0xac8] sm:$0xff]
    %v372 = vld [vmem:[%s1 + $0xad0] sm:$0xff]
    %v373 = vld [vmem:[%s1 + $0xad8] sm:$0xff]
    %v374 = vld [vmem:[%s1 + $0xae0] sm:$0xff]
    %v375 = vld [vmem:[%s1 + $0xae8] sm:$0xff]
    %v376 = vld [vmem:[%s1 + $0xaf0] sm:$0xff]
    %v377 = vld [vmem:[%s1 + $0xaf8] sm:$0xff]
    %v378 = vld [vmem:[%s1 + $0xb00] sm:$0xff]
    %v379 = vld [vmem:[%s1 + $0xb08] sm:$0xff]
    %v380 = vld [vmem:[%s1 + $0xb10] sm:$0xff]
    %v381 = vld [vmem:[%s1 + $0xb18] sm:$0xff]
    %v382 = vld [vmem:[%s1 + $0xb20] sm:$0xff]
    %v383 = vld [vmem:[%s1 + $0xb28] sm:$0xff]
    %v384 = vld [vmem:[%s1 + $0xb30] sm:$0xff]
    %v385 = vld [vmem:[%s1 + $0xb38] sm:$0xff]
    %v386 = vld [vmem:[%s1 + $0xb40] sm:$0xff]
    %v387 = vld [vmem:[%s1 + $0xb48] sm:$0xff]
    %v388 = vld [vmem:[%s1 + $0xb50] sm:$0xff]
    %v389 = vld [vmem:[%s1 + $0xb58] sm:$0xff]
    %v390 = vld [vmem:[%s1 + $0xb60] sm:$0xff]
    %v391 = vld [vmem:[%s1 + $0xb68] sm:$0xff]
    %v392 = vld [vmem:[%s1 + $0xb70] sm:$0xff]
    %v393 = vld [vmem:[%s1 + $0xb78] sm:$0xff]
    %v394 = vld [vmem:[%s1 + $0xb80] sm:$0xff]
    %v395 = vld [vmem:[%s1 + $0xb88] sm:$0xff]
    %v396 = vld [vmem:[%s1 + $0xb90] sm:$0xff]
    %v397 = vld [vmem:[%s1 + $0xb98] sm:$0xff]
    %v398 = vld [vmem:[%s1 + $0xba0] sm:$0xff]
    %v399 = vld [vmem:[%s1 + $0xba8] sm:$0xff]
    %v400 = vld [vmem:[%s1 + $0xbb0] sm:$0xff]
    %v401 = vld [vmem:[%s1 + $0xbb8] sm:$0xff]
    %v402 = vld [vmem:[%s1 + $0xbc0] sm:$0xff]
    %v403 = vld [vmem:[%s1 + $0xbc8] sm:$0xff]
    %v404 = vld [vmem:[%s1 + $0xbd0] sm:$0xff]
    %v405 = vld [vmem:[%s1 + $0xbd8] sm:$0xff]
    %v406 = vld [vmem:[%s1 + $0xbe0] sm:$0xff]
    %v407 = vld [vmem:[%s1 + $0xbe8] sm:$0xff]
    %v408 = vld [vmem:[%s1 + $0xbf0] sm:$0xff]
    %v409 = vld [vmem:[%s1 + $0xbf8] sm:$0xff]
    %v410 = vld [vmem:[%s1 + $0xc00] sm:$0xff]
    %v411 = vld [vmem:[%s1 + $0xc08] sm:$0xff]
    %v412 = vld [vmem:[%s1 + $0xc10] sm:$0xff]
    %v413 = vld [vmem:[%s1 + $0xc18] sm:$0xff]
    %v414 = vld [vmem:[%s1 + $0xc20] sm:$0xff]
    %v415 = vld [vmem:[%s1 + $0xc28] sm:$0xff]
    %v416 = vld [vmem:[%s1 + $0xc30] sm:$0xff]
    %v417 = vld [vmem:[%s1 + $0xc38] sm:$0xff]
    %v418 = vld [vmem:[%s1 + $0xc40] sm:$0xff]
    %v419 = vld [vmem:[%s1 + $0xc48] sm:$0xff]
    %v420 = vld [vmem:[%s1 + $0xc50] sm:$0xff]
    %v421 = vld [vmem:[%s1 + $0xc58] sm:$0xff]
    %v422 = vld [vmem:[%s1 + $0xc60] sm:$0xff]
    %v423 = vld [vmem:[%s1 + $0xc68] sm:$0xff]
    %v424 = vld [vmem:[%s1 + $0xc70] sm:$0xff]
    %v425 = vld [vmem:[%s1 + $0xc78] sm:$0xff]
    %v426 = vld [vmem:[%s1 + $0xc80] sm:$0xff]
    %v427 = vld [vmem:[%s1 + $0xc88] sm:$0xff]
    %v428 = vld [vmem:[%s1 + $0xc90] sm:$0xff]
    %v429 = vld [vmem:[%s1 + $0xc98] sm:$0xff]
    %v430 = vld [vmem:[%s1 + $0xca0] sm:$0xff]
    %v431 = vld [vmem:[%s1 + $0xca8] sm:$0xff]
    %v432 = vld [vmem:[%s1 + $0xcb0] sm:$0xff]
    %v433 = vld [vmem:[%s1 + $0xcb8] sm:$0xff]
    %v434 = vld [vmem:[%s1 + $0xcc0] sm:$0xff]
    %v435 = vld [vmem:[%s1 + $0xcc8] sm:$0xff]
    %v436 = vld [vmem:[%s1 + $0xcd0] sm:$0xff]
    %v437 = vld [vmem:[%s1 + $0xcd8] sm:$0xff]
    %v438 = vld [vmem:[%s1 + $0xce0] sm:$0xff]
    %v439 = vld [vmem:[%s1 + $0xce8] sm:$0xff]
    %v440 = vld [vmem:[%s1 + $0xcf0] sm:$0xff]
    %v441 = vld [vmem:[%s1 + $0xcf8] sm:$0xff]
    %v442 = vld [vmem:[%s1 + $0xd00] sm:$0xff]
    %v443 = vld [vmem:[%s1 + $0xd08] sm:$0xff]
    %v444 = vld [vmem:[%s1 + $0xd10] sm:$0xff]
    %v445 = vld [vmem:[%s1 + $0xd18] sm:$0xff]
    %v446 = vld [vmem:[%s1 + $0xd20] sm:$0xff]
    %v447 = vld [vmem:[%s1 + $0xd28] sm:$0xff]
    %v448 = vld [vmem:[%s1 + $0xd30] sm:$0xff]
    %v449 = vld [vmem:[%s1 + $0xd38] sm:$0xff]
    %v450 = vld [vmem:[%s1 + $0xd40] sm:$0xff]
    %v451 = vld [vmem:[%s1 + $0xd48] sm:$0xff]
    %v452 = vld [vmem:[%s1 + $0xd50] sm:$0xff]
    %v453 = vld [vmem:[%s1 + $0xd58] sm:$0xff]
    %v454 = vld [vmem:[%s1 + $0xd60] sm:$0xff]
    %v455 = vld [vmem:[%s1 + $0xd68] sm:$0xff]
    %v456 = vld [vmem:[%s1 + $0xd70] sm:$0xff]
    %v457 = vld [vmem:[%s1 + $0xd78] sm:$0xff]
    %v458 = vld [vmem:[%s1 + $0xd80] sm:$0xff]
    %v459 = vld [vmem:[%s1 + $0xd88] sm:$0xff]
    %v460 = vld [vmem:[%s1 + $0xd90] sm:$0xff]
    %v461 = vld [vmem:[%s1 + $0xd98] sm:$0xff]
    %v462 = vld [vmem:[%s1 + $0xda0] sm:$0xff]
    %v463 = vld [vmem:[%s1 + $0xda8] sm:$0xff]
    %v464 = vld [vmem:[%s1 + $0xdb0] sm:$0xff]
    %v465 = vld [vmem:[%s1 + $0xdb8] sm:$0xff]
    %v466 = vld [vmem:[%s1 + $0xdc0] sm:$0xff]
    %v467 = vld [vmem:[%s1 + $0xdc8] sm:$0xff]
    %v468 = vld [vmem:[%s1 + $0xdd0] sm:$0xff]
    %v469 = vld [vmem:[%s1 + $0xdd8] sm:$0xff]
    %v470 = vld [vmem:[%s1 + $0xde0] sm:$0xff]
    %v471 = vld [vmem:[%s1 + $0xde8] sm:$0xff]
    %v472 = vld [vmem:[%s1 + $0xdf0] sm:$0xff]
    %v473 = vld [vmem:[%s1 + $0xdf8] sm:$0xff]
    %v474 = vld [vmem:[%s1 + $0xe00] sm:$0xff]
    %v475 = vld [vmem:[%s1 + $0xe08] sm:$0xff]
    %v476 = vld [vmem:[%s1 + $0xe10] sm:$0xff]
    %v477 = vld [vmem:[%s1 + $0xe18] sm:$0xff]
    %v478 = vld [vmem:[%s1 + $0xe20] sm:$0xff]
    %v479 = vld [vmem:[%s1 + $0xe28] sm:$0xff]
    %v480 = vld [vmem:[%s1 + $0xe30] sm:$0xff]
    %v481 = vld [vmem:[%s1 + $0xe38] sm:$0xff]
    %v482 = vld [vmem:[%s1 + $0xe40] sm:$0xff]
    %v483 = vld [vmem:[%s1 + $0xe48] sm:$0xff]
    %v484 = vld [vmem:[%s1 + $0xe50] sm:$0xff]
    %v485 = vld [vmem:[%s1 + $0xe58] sm:$0xff]
    %v486 = vld [vmem:[%s1 + $0xe60] sm:$0xff]
    %v487 = vld [vmem:[%s1 + $0xe68] sm:$0xff]
    %v488 = vld [vmem:[%s1 + $0xe70] sm:$0xff]
    %v489 = vld [vmem:[%s1 + $0xe78] sm:$0xff]
    %v490 = vld [vmem:[%s1 + $0xe80] sm:$0xff]
    %v491 = vld [vmem:[%s1 + $0xe88] sm:$0xff]
    %v492 = vld [vmem:[%s1 + $0xe90] sm:$0xff]
    %v493 = vld [vmem:[%s1 + $0xe98] sm:$0xff]
    %v494 = vld [vmem:[%s1 + $0xea0] sm:$0xff]
    %v495 = vld [vmem:[%s1 + $0xea8] sm:$0xff]
    %v496 = vld [vmem:[%s1 + $0xeb0] sm:$0xff]
    %v497 = vld [vmem:[%s1 + $0xeb8] sm:$0xff]
    %v498 = vld [vmem:[%s1 + $0xec0] sm:$0xff]
    %v499 = vld [vmem:[%s1 + $0xec8] sm:$0xff]
    %v500 = vld [vmem:[%s1 + $0xed0] sm:$0xff]
    %v501 = vld [vmem:[%s1 + $0xed8] sm:$0xff]
    %v502 = vld [vmem:[%s1 + $0xee0] sm:$0xff]
    %v503 = vld [vmem:[%s1 + $0xee8] sm:$0xff]
    %v504 = vld [vmem:[%s1 + $0xef0] sm:$0xff]
    %v505 = vld [vmem:[%s1 + $0xef8] sm:$0xff]
    %v506 = vld [vmem:[%s1 + $0xf00] sm:$0xff]
    %v507 = vld [vmem:[%s1 + $0xf08] sm:$0xff]
    %v508 = vld [vmem:[%s1 + $0xf10] sm:$0xff]
    %v509 = vld [vmem:[%s1 + $0xf18] sm:$0xff]
    %v510 = vld [vmem:[%s2] sm:$0x3]
    %v512 = vlaneseq
    %v513 = vshrl.u32 %v512, 7
    %v514 = vsub.s32 0, %v513
    %v515 = vrot.slane %v510, %v514
    %v516 = vlaneseq
    %v517 = vshrl.u32 %v516, 7
    %v518 = vsub.s32 1, %v517
    %v519 = vrot.slane %v510, %v518
    %v526 = vcombine.high %v22, %v22
    %v528 = vunpack.c.l.s4 1966171168
    %v529 = vunpack.c.0.s8 %v528
    %v530 = vlaneseq
    %v531 = vshrl.u32 %v530, 7
    %v532 = vsub.s32 %v529, %v531
    %v533 = vrot.slane %v22, %v532
    %v535 = vunpack.c.l.s4 1966171168
    %v536 = vunpack.c.0.s8 %v535
    %v537 = vlaneseq
    %v538 = vshrl.u32 %v537, 7
    %v539 = vsub.s32 %v536, %v538
    %v540 = vrot.slane %v526, %v539
    %v541 = vcombine.high %v533, %v533
    %v542 = vcombine.high %v540, %v540
    %v544 = vunpack.c.l.s4 1966171168
    %v545 = vunpack.c.0.s8 %v544
    %v546 = vlaneseq
    %v547 = vshrl.u32 %v546, 7
    %v548 = vsub.s32 %v545, %v547
    %v549 = vrot.slane %v533, %v548
    %v551 = vunpack.c.l.s4 1966171168
    %v552 = vunpack.c.0.s8 %v551
    %v553 = vlaneseq
    %v554 = vshrl.u32 %v553, 7
    %v555 = vsub.s32 %v552, %v554
    %v556 = vrot.slane %v540, %v555
    %v558 = vunpack.c.l.s4 1966171168
    %v559 = vunpack.c.0.s8 %v558
    %v560 = vlaneseq
    %v561 = vshrl.u32 %v560, 7
    %v562 = vsub.s32 %v559, %v561
    %v563 = vrot.slane %v541, %v562
    %v565 = vunpack.c.l.s4 1966171168
    %v566 = vunpack.c.0.s8 %v565
    %v567 = vlaneseq
    %v568 = vshrl.u32 %v567, 7
    %v569 = vsub.s32 %v566, %v568
    %v570 = vrot.slane %v542, %v569
    %v571 = vcombine.high %v549, %v549
    %v572 = vcombine.high %v556, %v556
    %v573 = vcombine.high %v563, %v563
    %v574 = vcombine.high %v570, %v570
    %v575 = vcombine.high %v23, %v23
    %v577 = vunpack.c.l.s4 1966171168
    %v578 = vunpack.c.0.s8 %v577
    %v579 = vlaneseq
    %v580 = vshrl.u32 %v579, 7
    %v581 = vsub.s32 %v578, %v580
    %v582 = vrot.slane %v23, %v581
    %v584 = vunpack.c.l.s4 1966171168
    %v585 = vunpack.c.0.s8 %v584
    %v586 = vlaneseq
    %v587 = vshrl.u32 %v586, 7
    %v588 = vsub.s32 %v585, %v587
    %v589 = vrot.slane %v575, %v588
    %v590 = vcombine.high %v582, %v582
    %v591 = vcombine.high %v589, %v589
    %v593 = vunpack.c.l.s4 1966171168
    %v594 = vunpack.c.0.s8 %v593
    %v595 = vlaneseq
    %v596 = vshrl.u32 %v595, 7
    %v597 = vsub.s32 %v594, %v596
    %v598 = vrot.slane %v582, %v597
    %v600 = vunpack.c.l.s4 1966171168
    %v601 = vunpack.c.0.s8 %v600
    %v602 = vlaneseq
    %v603 = vshrl.u32 %v602, 7
    %v604 = vsub.s32 %v601, %v603
    %v605 = vrot.slane %v589, %v604
    %v607 = vunpack.c.l.s4 1966171168
    %v608 = vunpack.c.0.s8 %v607
    %v609 = vlaneseq
    %v610 = vshrl.u32 %v609, 7
    %v611 = vsub.s32 %v608, %v610
    %v612 = vrot.slane %v590, %v611
    %v614 = vunpack.c.l.s4 1966171168
    %v615 = vunpack.c.0.s8 %v614
    %v616 = vlaneseq
    %v617 = vshrl.u32 %v616, 7
    %v618 = vsub.s32 %v615, %v617
    %v619 = vrot.slane %v591, %v618
    %v620 = vcombine.high %v598, %v598
    %v621 = vcombine.high %v605, %v605
    %v622 = vcombine.high %v612, %v612
    %v623 = vcombine.high %v619, %v619
    %v624 = vcombine.high %v24, %v24
    %v626 = vunpack.c.l.s4 1966171168
    %v627 = vunpack.c.0.s8 %v626
    %v628 = vlaneseq
    %v629 = vshrl.u32 %v628, 7
    %v630 = vsub.s32 %v627, %v629
    %v631 = vrot.slane %v24, %v630
    %v633 = vunpack.c.l.s4 1966171168
    %v634 = vunpack.c.0.s8 %v633
    %v635 = vlaneseq
    %v636 = vshrl.u32 %v635, 7
    %v637 = vsub.s32 %v634, %v636
    %v638 = vrot.slane %v624, %v637
    %v639 = vcombine.high %v631, %v631
    %v640 = vcombine.high %v638, %v638
    %v642 = vunpack.c.l.s4 1966171168
    %v643 = vunpack.c.0.s8 %v642
    %v644 = vlaneseq
    %v645 = vshrl.u32 %v644, 7
    %v646 = vsub.s32 %v643, %v645
    %v647 = vrot.slane %v631, %v646
    %v649 = vunpack.c.l.s4 1966171168
    %v650 = vunpack.c.0.s8 %v649
    %v651 = vlaneseq
    %v652 = vshrl.u32 %v651, 7
    %v653 = vsub.s32 %v650, %v652
    %v654 = vrot.slane %v638, %v653
    %v656 = vunpack.c.l.s4 1966171168
    %v657 = vunpack.c.0.s8 %v656
    %v658 = vlaneseq
    %v659 = vshrl.u32 %v658, 7
    %v660 = vsub.s32 %v657, %v659
    %v661 = vrot.slane %v639, %v660
    %v663 = vunpack.c.l.s4 1966171168
    %v664 = vunpack.c.0.s8 %v663
    %v665 = vlaneseq
    %v666 = vshrl.u32 %v665, 7
    %v667 = vsub.s32 %v664, %v666
    %v668 = vrot.slane %v640, %v667
    %v669 = vcombine.high %v647, %v647
    %v670 = vcombine.high %v654, %v654
    %v671 = vcombine.high %v661, %v661
    %v672 = vcombine.high %v668, %v668
    %v673 = vcombine.high %v25, %v25
    %v675 = vunpack.c.l.s4 1966171168
    %v676 = vunpack.c.0.s8 %v675
    %v677 = vlaneseq
    %v678 = vshrl.u32 %v677, 7
    %v679 = vsub.s32 %v676, %v678
    %v680 = vrot.slane %v25, %v679
    %v682 = vunpack.c.l.s4 1966171168
    %v683 = vunpack.c.0.s8 %v682
    %v684 = vlaneseq
    %v685 = vshrl.u32 %v684, 7
    %v686 = vsub.s32 %v683, %v685
    %v687 = vrot.slane %v673, %v686
    %v688 = vcombine.high %v680, %v680
    %v689 = vcombine.high %v687, %v687
    %v691 = vunpack.c.l.s4 1966171168
    %v692 = vunpack.c.0.s8 %v691
    %v693 = vlaneseq
    %v694 = vshrl.u32 %v693, 7
    %v695 = vsub.s32 %v692, %v694
    %v696 = vrot.slane %v680, %v695
    %v698 = vunpack.c.l.s4 1966171168
    %v699 = vunpack.c.0.s8 %v698
    %v700 = vlaneseq
    %v701 = vshrl.u32 %v700, 7
    %v702 = vsub.s32 %v699, %v701
    %v703 = vrot.slane %v687, %v702
    %v705 = vunpack.c.l.s4 1966171168
    %v706 = vunpack.c.0.s8 %v705
    %v707 = vlaneseq
    %v708 = vshrl.u32 %v707, 7
    %v709 = vsub.s32 %v706, %v708
    %v710 = vrot.slane %v688, %v709
    %v712 = vunpack.c.l.s4 1966171168
    %v713 = vunpack.c.0.s8 %v712
    %v714 = vlaneseq
    %v715 = vshrl.u32 %v714, 7
    %v716 = vsub.s32 %v713, %v715
    %v717 = vrot.slane %v689, %v716
    %v718 = vcombine.high %v696, %v696
    %v719 = vcombine.high %v703, %v703
    %v720 = vcombine.high %v710, %v710
    %v1235 = vunpack.c.l.b16 %v26
    %v1236 = vunpack.c.h.b16 %v26
    %v1237 = vunpack.c.l.b16 %v27
    %v1238 = vunpack.c.h.b16 %v27
    %v1239 = vunpack.c.l.b16 %v28
    %v1240 = vunpack.c.h.b16 %v28
    %v1241 = vunpack.c.l.b16 %v29
    %v1242 = vunpack.c.h.b16 %v29
    %v1243 = vunpack.c.l.b16 %v30
    %v1244 = vunpack.c.h.b16 %v30
    %v1245 = vunpack.c.l.b16 %v31
    %v1246 = vunpack.c.h.b16 %v31
    %v1247 = vunpack.c.l.b16 %v32
    %v1248 = vunpack.c.h.b16 %v32
    %v1249 = vunpack.c.l.b16 %v33
    %v1250 = vunpack.c.h.b16 %v33
    %v1251 = vunpack.c.l.b16 %v34
    %v1252 = vunpack.c.h.b16 %v34
    %v1253 = vunpack.c.l.b16 %v35
    %v1254 = vunpack.c.h.b16 %v35
    %v1255 = vunpack.c.l.b16 %v36
    %v1256 = vunpack.c.h.b16 %v36
    %v1257 = vunpack.c.l.b16 %v37
    %v1258 = vunpack.c.h.b16 %v37
    %v1259 = vunpack.c.l.b16 %v38
    %v1260 = vunpack.c.h.b16 %v38
    %v1261 = vunpack.c.l.b16 %v39
    %v1262 = vunpack.c.h.b16 %v39
    %v1263 = vunpack.c.l.b16 %v40
    %v1264 = vunpack.c.h.b16 %v40
    %v1265 = vunpack.c.l.b16 %v41
    %v1266 = vunpack.c.h.b16 %v41
    %v1267 = vunpack.c.l.b16 %v42
    %v1268 = vunpack.c.h.b16 %v42
    %v1269 = vunpack.c.l.b16 %v43
    %v1270 = vunpack.c.h.b16 %v43
    %v1271 = vunpack.c.l.b16 %v44
    %v1272 = vunpack.c.h.b16 %v44
    %v1273 = vunpack.c.l.b16 %v45
    %v1274 = vunpack.c.h.b16 %v45
    %v1275 = vunpack.c.l.b16 %v46
    %v1276 = vunpack.c.h.b16 %v46
    %v1277 = vunpack.c.l.b16 %v47
    %v1278 = vunpack.c.h.b16 %v47
    %v1279 = vunpack.c.l.b16 %v48
    %v1280 = vunpack.c.h.b16 %v48
    %v1281 = vunpack.c.l.b16 %v49
    %v1282 = vunpack.c.h.b16 %v49
    %v1283 = vunpack.c.l.b16 %v50
    %v1284 = vunpack.c.h.b16 %v50
    %v1285 = vunpack.c.l.b16 %v51
    %v1286 = vunpack.c.h.b16 %v51
    %v1287 = vunpack.c.l.b16 %v52
    %v1288 = vunpack.c.h.b16 %v52
    %v1289 = vunpack.c.l.b16 %v53
    %v1290 = vunpack.c.h.b16 %v53
    %v1291 = vunpack.c.l.b16 %v54
    %v1292 = vunpack.c.h.b16 %v54
    %v1293 = vunpack.c.l.b16 %v55
    %v1294 = vunpack.c.h.b16 %v55
    %v1295 = vunpack.c.l.b16 %v56
    %v1296 = vunpack.c.h.b16 %v56
    %v1297 = vunpack.c.l.b16 %v57
    %v1298 = vunpack.c.h.b16 %v57
    %v1299 = vunpack.c.l.b16 %v58
    %v1300 = vunpack.c.h.b16 %v58
    %v1301 = vunpack.c.l.b16 %v59
    %v1302 = vunpack.c.h.b16 %v59
    %v1303 = vunpack.c.l.b16 %v60
    %v1304 = vunpack.c.h.b16 %v60
    %v1305 = vunpack.c.l.b16 %v61
    %v1306 = vunpack.c.h.b16 %v61
    %v1307 = vunpack.c.l.b16 %v62
    %v1308 = vunpack.c.h.b16 %v62
    %v1309 = vunpack.c.l.b16 %v63
    %v1310 = vunpack.c.h.b16 %v63
    %v1311 = vunpack.c.l.b16 %v64
    %v1312 = vunpack.c.h.b16 %v64
    %v1313 = vunpack.c.l.b16 %v65
    %v1314 = vunpack.c.h.b16 %v65
    %v1315 = vunpack.c.l.b16 %v66
    %v1316 = vunpack.c.h.b16 %v66
    %v1317 = vunpack.c.l.b16 %v67
    %v1318 = vunpack.c.h.b16 %v67
    %v1319 = vunpack.c.l.b16 %v68
    %v1320 = vunpack.c.h.b16 %v68
    %v1321 = vunpack.c.l.b16 %v69
    %v1322 = vunpack.c.h.b16 %v69
    %v1323 = vunpack.c.l.b16 %v70
    %v1324 = vunpack.c.h.b16 %v70
    %v1325 = vunpack.c.l.b16 %v71
    %v1326 = vunpack.c.h.b16 %v71
    %v1327 = vunpack.c.l.b16 %v72
    %v1328 = vunpack.c.h.b16 %v72
    %v1329 = vunpack.c.l.b16 %v73
    %v1330 = vunpack.c.h.b16 %v73
    %v1331 = vunpack.c.l.b16 %v74
    %v1332 = vunpack.c.h.b16 %v74
    %v1333 = vunpack.c.l.b16 %v75
    %v1334 = vunpack.c.h.b16 %v75
    %v1335 = vunpack.c.l.b16 %v76
    %v1336 = vunpack.c.h.b16 %v76
    %v1337 = vunpack.c.l.b16 %v77
    %v1338 = vunpack.c.h.b16 %v77
    %v1339 = vunpack.c.l.b16 %v78
    %v1340 = vunpack.c.h.b16 %v78
    %v1341 = vunpack.c.l.b16 %v79
    %v1342 = vunpack.c.h.b16 %v79
    %v1343 = vunpack.c.l.b16 %v80
    %v1344 = vunpack.c.h.b16 %v80
    %v1345 = vunpack.c.l.b16 %v81
    %v1346 = vunpack.c.h.b16 %v81
    %v1347 = vunpack.c.l.b16 %v82
    %v1348 = vunpack.c.h.b16 %v82
    %v1349 = vunpack.c.l.b16 %v83
    %v1350 = vunpack.c.h.b16 %v83
    %v1351 = vunpack.c.l.b16 %v84
    %v1352 = vunpack.c.h.b16 %v84
    %v1353 = vunpack.c.l.b16 %v85
    %v1354 = vunpack.c.h.b16 %v85
    %v1355 = vunpack.c.l.b16 %v86
    %v1356 = vunpack.c.h.b16 %v86
    %v1357 = vunpack.c.l.b16 %v87
    %v1358 = vunpack.c.h.b16 %v87
    %v1359 = vunpack.c.l.b16 %v88
    %v1360 = vunpack.c.h.b16 %v88
    %v1361 = vunpack.c.l.b16 %v89
    %v1362 = vunpack.c.h.b16 %v89
    %v1363 = vunpack.c.l.b16 %v90
    %v1364 = vunpack.c.h.b16 %v90
    %v1365 = vunpack.c.l.b16 %v91
    %v1366 = vunpack.c.h.b16 %v91
    %v1367 = vunpack.c.l.b16 %v92
    %v1368 = vunpack.c.h.b16 %v92
    %v1369 = vunpack.c.l.b16 %v93
    %v1370 = vunpack.c.h.b16 %v93
    %v1371 = vunpack.c.l.b16 %v94
    %v1372 = vunpack.c.h.b16 %v94
    %v1373 = vunpack.c.l.b16 %v95
    %v1374 = vunpack.c.h.b16 %v95
    %v1375 = vunpack.c.l.b16 %v96
    %v1376 = vunpack.c.h.b16 %v96
    %v1377 = vunpack.c.l.b16 %v97
    %v1378 = vunpack.c.h.b16 %v97
    %v1379 = vunpack.c.l.b16 %v98
    %v1380 = vunpack.c.h.b16 %v98
    %v1381 = vunpack.c.l.b16 %v99
    %v1382 = vunpack.c.h.b16 %v99
    %v1383 = vunpack.c.l.b16 %v100
    %v1384 = vunpack.c.h.b16 %v100
    %v1385 = vunpack.c.l.b16 %v101
    %v1386 = vunpack.c.h.b16 %v101
    %v1387 = vunpack.c.l.b16 %v102
    %v1388 = vunpack.c.h.b16 %v102
    %v1389 = vunpack.c.l.b16 %v103
    %v1390 = vunpack.c.h.b16 %v103
    %v1391 = vunpack.c.l.b16 %v104
    %v1392 = vunpack.c.h.b16 %v104
    %v1393 = vunpack.c.l.b16 %v105
    %v1394 = vunpack.c.h.b16 %v105
    %v1395 = vunpack.c.l.b16 %v106
    %v1396 = vunpack.c.h.b16 %v106
    %v1397 = vunpack.c.l.b16 %v107
    %v1398 = vunpack.c.h.b16 %v107
    %v1399 = vunpack.c.l.b16 %v108
    %v1400 = vunpack.c.h.b16 %v108
    %v1401 = vunpack.c.l.b16 %v109
    %v1402 = vunpack.c.h.b16 %v109
    %v1403 = vunpack.c.l.b16 %v110
    %v1404 = vunpack.c.h.b16 %v110
    %v1405 = vunpack.c.l.b16 %v111
    %v1406 = vunpack.c.h.b16 %v111
    %v1407 = vunpack.c.l.b16 %v112
    %v1408 = vunpack.c.h.b16 %v112
    %v1409 = vunpack.c.l.b16 %v113
    %v1410 = vunpack.c.h.b16 %v113
    %v1411 = vunpack.c.l.b16 %v114
    %v1412 = vunpack.c.h.b16 %v114
    %v1413 = vunpack.c.l.b16 %v115
    %v1414 = vunpack.c.h.b16 %v115
    %v1415 = vunpack.c.l.b16 %v116
    %v1416 = vunpack.c.h.b16 %v116
    %v1417 = vunpack.c.l.b16 %v117
    %v1418 = vunpack.c.h.b16 %v117
    %v1419 = vunpack.c.l.b16 %v118
    %v1420 = vunpack.c.h.b16 %v118
    %v1421 = vunpack.c.l.b16 %v119
    %v1422 = vunpack.c.h.b16 %v119
    %v1423 = vunpack.c.l.b16 %v120
    %v1424 = vunpack.c.h.b16 %v120
    %v1425 = vunpack.c.l.b16 %v121
    %v1426 = vunpack.c.h.b16 %v121
    %v1427 = vunpack.c.l.b16 %v122
    %v1428 = vunpack.c.h.b16 %v122
    %v1429 = vunpack.c.l.b16 %v123
    %v1430 = vunpack.c.h.b16 %v123
    %v1431 = vunpack.c.l.b16 %v124
    %v1432 = vunpack.c.h.b16 %v124
    %v1433 = vunpack.c.l.b16 %v125
    %v1434 = vunpack.c.h.b16 %v125
    %v1435 = vunpack.c.l.b16 %v126
    %v1436 = vunpack.c.h.b16 %v126
    %v1437 = vunpack.c.l.b16 %v127
    %v1438 = vunpack.c.h.b16 %v127
    %v1439 = vunpack.c.l.b16 %v128
    %v1440 = vunpack.c.h.b16 %v128
    %v1441 = vunpack.c.l.b16 %v129
    %v1442 = vunpack.c.h.b16 %v129
    %v1443 = vunpack.c.l.b16 %v130
    %v1444 = vunpack.c.h.b16 %v130
    %v1445 = vunpack.c.l.b16 %v131
    %v1446 = vunpack.c.h.b16 %v131
    %v1447 = vunpack.c.l.b16 %v132
    %v1448 = vunpack.c.h.b16 %v132
    %v1449 = vunpack.c.l.b16 %v133
    %v1450 = vunpack.c.h.b16 %v133
    %v1451 = vunpack.c.l.b16 %v134
    %v1452 = vunpack.c.h.b16 %v134
    %v1453 = vunpack.c.l.b16 %v135
    %v1454 = vunpack.c.h.b16 %v135
    %v1455 = vunpack.c.l.b16 %v136
    %v1456 = vunpack.c.h.b16 %v136
    %v1457 = vunpack.c.l.b16 %v137
    %v1458 = vunpack.c.h.b16 %v137
    %v1459 = vunpack.c.l.b16 %v138
    %v1460 = vunpack.c.h.b16 %v138
    %v1461 = vunpack.c.l.b16 %v139
    %v1462 = vunpack.c.h.b16 %v139
    %v1463 = vunpack.c.l.b16 %v140
    %v1464 = vunpack.c.h.b16 %v140
    %v1465 = vunpack.c.l.b16 %v141
    %v1466 = vunpack.c.h.b16 %v141
    %v1467 = vunpack.c.l.b16 %v142
    %v1468 = vunpack.c.h.b16 %v142
    %v1469 = vunpack.c.l.b16 %v143
    %v1470 = vunpack.c.h.b16 %v143
    %v1471 = vunpack.c.l.b16 %v144
    %v1472 = vunpack.c.h.b16 %v144
    %v1473 = vunpack.c.l.b16 %v145
    %v1474 = vunpack.c.h.b16 %v145
    %v1475 = vunpack.c.l.b16 %v146
    %v1476 = vunpack.c.h.b16 %v146
    %v1477 = vunpack.c.l.b16 %v147
    %v1478 = vunpack.c.h.b16 %v147
    %v1479 = vunpack.c.l.b16 %v148
    %v1480 = vunpack.c.h.b16 %v148
    %v1481 = vunpack.c.l.b16 %v149
    %v1482 = vunpack.c.h.b16 %v149
    %v1483 = vunpack.c.l.b16 %v150
    %v1484 = vunpack.c.h.b16 %v150
    %v1485 = vunpack.c.l.b16 %v151
    %v1486 = vunpack.c.h.b16 %v151
    %v1487 = vunpack.c.l.b16 %v152
    %v1488 = vunpack.c.h.b16 %v152
    %v1489 = vunpack.c.l.b16 %v153
    %v1490 = vunpack.c.h.b16 %v153
    %v1491 = vunpack.c.l.b16 %v154
    %v1492 = vunpack.c.h.b16 %v154
    %v1493 = vunpack.c.l.b16 %v155
    %v1494 = vunpack.c.h.b16 %v155
    %v1495 = vunpack.c.l.b16 %v156
    %v1496 = vunpack.c.h.b16 %v156
    %v1497 = vunpack.c.l.b16 %v157
    %v1498 = vunpack.c.h.b16 %v157
    %v1499 = vunpack.c.l.b16 %v158
    %v1500 = vunpack.c.h.b16 %v158
    %v1501 = vunpack.c.l.b16 %v159
    %v1502 = vunpack.c.h.b16 %v159
    %v1503 = vunpack.c.l.b16 %v160
    %v1504 = vunpack.c.h.b16 %v160
    %v1505 = vunpack.c.l.b16 %v161
    %v1506 = vunpack.c.h.b16 %v161
    %v1507 = vunpack.c.l.b16 %v162
    %v1508 = vunpack.c.h.b16 %v162
    %v1509 = vunpack.c.l.b16 %v163
    %v1510 = vunpack.c.h.b16 %v163
    %v1511 = vunpack.c.l.b16 %v164
    %v1512 = vunpack.c.h.b16 %v164
    %v1513 = vunpack.c.l.b16 %v165
    %v1514 = vunpack.c.h.b16 %v165
    %v1515 = vunpack.c.l.b16 %v166
    %v1516 = vunpack.c.h.b16 %v166
    %v1517 = vunpack.c.l.b16 %v167
    %v1518 = vunpack.c.h.b16 %v167
    %v1519 = vunpack.c.l.b16 %v168
    %v1520 = vunpack.c.h.b16 %v168
    %v1521 = vunpack.c.l.b16 %v169
    %v1522 = vunpack.c.h.b16 %v169
    %v1523 = vunpack.c.l.b16 %v170
    %v1524 = vunpack.c.h.b16 %v170
    %v1525 = vunpack.c.l.b16 %v171
    %v1526 = vunpack.c.h.b16 %v171
    %v1527 = vunpack.c.l.b16 %v172
    %v1528 = vunpack.c.h.b16 %v172
    %v1529 = vunpack.c.l.b16 %v173
    %v1530 = vunpack.c.h.b16 %v173
    %v1531 = vunpack.c.l.b16 %v174
    %v1532 = vunpack.c.h.b16 %v174
    %v1533 = vunpack.c.l.b16 %v175
    %v1534 = vunpack.c.h.b16 %v175
    %v1535 = vunpack.c.l.b16 %v176
    %v1536 = vunpack.c.h.b16 %v176
    %v1537 = vunpack.c.l.b16 %v177
    %v1538 = vunpack.c.h.b16 %v177
    %v1539 = vunpack.c.l.b16 %v178
    %v1540 = vunpack.c.h.b16 %v178
    %v1541 = vunpack.c.l.b16 %v179
    %v1542 = vunpack.c.h.b16 %v179
    %v1543 = vunpack.c.l.b16 %v180
    %v1544 = vunpack.c.h.b16 %v180
    %v1545 = vunpack.c.l.b16 %v181
    %v1546 = vunpack.c.h.b16 %v181
    %v1547 = vunpack.c.l.b16 %v182
    %v1548 = vunpack.c.h.b16 %v182
    %v1549 = vunpack.c.l.b16 %v183
    %v1550 = vunpack.c.h.b16 %v183
    %v1551 = vunpack.c.l.b16 %v184
    %v1552 = vunpack.c.h.b16 %v184
    %v1553 = vunpack.c.l.b16 %v185
    %v1554 = vunpack.c.h.b16 %v185
    %v1555 = vunpack.c.l.b16 %v186
    %v1556 = vunpack.c.h.b16 %v186
    %v1557 = vunpack.c.l.b16 %v187
    %v1558 = vunpack.c.h.b16 %v187
    %v1559 = vunpack.c.l.b16 %v188
    %v1560 = vunpack.c.h.b16 %v188
    %v1561 = vunpack.c.l.b16 %v189
    %v1562 = vunpack.c.h.b16 %v189
    %v1563 = vunpack.c.l.b16 %v190
    %v1564 = vunpack.c.h.b16 %v190
    %v1565 = vunpack.c.l.b16 %v191
    %v1566 = vunpack.c.h.b16 %v191
    %v1567 = vunpack.c.l.b16 %v192
    %v1568 = vunpack.c.h.b16 %v192
    %v1569 = vunpack.c.l.b16 %v193
    %v1570 = vunpack.c.h.b16 %v193
    %v1571 = vunpack.c.l.b16 %v194
    %v1572 = vunpack.c.h.b16 %v194
    %v1573 = vunpack.c.l.b16 %v195
    %v1574 = vunpack.c.h.b16 %v195
    %v1575 = vunpack.c.l.b16 %v196
    %v1576 = vunpack.c.h.b16 %v196
    %v1577 = vunpack.c.l.b16 %v197
    %v1578 = vunpack.c.h.b16 %v197
    %v1579 = vunpack.c.l.b16 %v198
    %v1580 = vunpack.c.h.b16 %v198
    %v1581 = vunpack.c.l.b16 %v199
    %v1582 = vunpack.c.h.b16 %v199
    %v1583 = vunpack.c.l.b16 %v200
    %v1584 = vunpack.c.h.b16 %v200
    %v1585 = vunpack.c.l.b16 %v201
    %v1586 = vunpack.c.h.b16 %v201
    %v1587 = vunpack.c.l.b16 %v202
    %v1588 = vunpack.c.h.b16 %v202
    %v1589 = vunpack.c.l.b16 %v203
    %v1590 = vunpack.c.h.b16 %v203
    %v1591 = vunpack.c.l.b16 %v204
    %v1592 = vunpack.c.h.b16 %v204
    %v1593 = vunpack.c.l.b16 %v205
    %v1594 = vunpack.c.h.b16 %v205
    %v1595 = vunpack.c.l.b16 %v206
    %v1596 = vunpack.c.h.b16 %v206
    %v1597 = vunpack.c.l.b16 %v207
    %v1598 = vunpack.c.h.b16 %v207
    %v1599 = vunpack.c.l.b16 %v208
    %v1600 = vunpack.c.h.b16 %v208
    %v1601 = vunpack.c.l.b16 %v209
    %v1602 = vunpack.c.h.b16 %v209
    %v1603 = vunpack.c.l.b16 %v210
    %v1604 = vunpack.c.h.b16 %v210
    %v1605 = vunpack.c.l.b16 %v211
    %v1606 = vunpack.c.h.b16 %v211
    %v1607 = vunpack.c.l.b16 %v212
    %v1608 = vunpack.c.h.b16 %v212
    %v1609 = vunpack.c.l.b16 %v213
    %v1610 = vunpack.c.h.b16 %v213
    %v1611 = vunpack.c.l.b16 %v214
    %v1612 = vunpack.c.h.b16 %v214
    %v1613 = vunpack.c.l.b16 %v215
    %v1614 = vunpack.c.h.b16 %v215
    %v1615 = vunpack.c.l.b16 %v216
    %v1616 = vunpack.c.h.b16 %v216
    %v1617 = vunpack.c.l.b16 %v217
    %v1618 = vunpack.c.h.b16 %v217
    %v1619 = vunpack.c.l.b16 %v218
    %v1620 = vunpack.c.h.b16 %v218
    %v1621 = vunpack.c.l.b16 %v219
    %v1622 = vunpack.c.h.b16 %v219
    %v1623 = vunpack.c.l.b16 %v220
    %v1624 = vunpack.c.h.b16 %v220
    %v1625 = vunpack.c.l.b16 %v221
    %v1626 = vunpack.c.h.b16 %v221
    %v1627 = vunpack.c.l.b16 %v222
    %v1628 = vunpack.c.h.b16 %v222
    %v1629 = vunpack.c.l.b16 %v223
    %v1630 = vunpack.c.h.b16 %v223
    %v1631 = vunpack.c.l.b16 %v224
    %v1632 = vunpack.c.h.b16 %v224
    %v1633 = vunpack.c.l.b16 %v225
    %v1634 = vunpack.c.h.b16 %v225
    %v1635 = vunpack.c.l.b16 %v226
    %v1636 = vunpack.c.h.b16 %v226
    %v1637 = vunpack.c.l.b16 %v227
    %v1638 = vunpack.c.h.b16 %v227
    %v1639 = vunpack.c.l.b16 %v228
    %v1640 = vunpack.c.h.b16 %v228
    %v1641 = vunpack.c.l.b16 %v229
    %v1642 = vunpack.c.h.b16 %v229
    %v1643 = vunpack.c.l.b16 %v230
    %v1644 = vunpack.c.h.b16 %v230
    %v1645 = vunpack.c.l.b16 %v231
    %v1646 = vunpack.c.h.b16 %v231
    %v1647 = vunpack.c.l.b16 %v232
    %v1648 = vunpack.c.h.b16 %v232
    %v1649 = vunpack.c.l.b16 %v233
    %v1650 = vunpack.c.h.b16 %v233
    %v1651 = vunpack.c.l.b16 %v234
    %v1652 = vunpack.c.h.b16 %v234
    %v1653 = vunpack.c.l.b16 %v235
    %v1654 = vunpack.c.h.b16 %v235
    %v1655 = vunpack.c.l.b16 %v236
    %v1656 = vunpack.c.h.b16 %v236
    %v1657 = vunpack.c.l.b16 %v237
    %v1658 = vunpack.c.h.b16 %v237
    %v1659 = vunpack.c.l.b16 %v238
    %v1660 = vunpack.c.h.b16 %v238
    %v1661 = vunpack.c.l.b16 %v239
    %v1662 = vunpack.c.h.b16 %v239
    %v1663 = vunpack.c.l.b16 %v240
    %v1664 = vunpack.c.h.b16 %v240
    %v1665 = vunpack.c.l.b16 %v241
    %v1666 = vunpack.c.h.b16 %v241
    %v1667 = vunpack.c.l.b16 %v242
    %v1668 = vunpack.c.h.b16 %v242
    %v1669 = vunpack.c.l.b16 %v243
    %v1670 = vunpack.c.h.b16 %v243
    %v1671 = vunpack.c.l.b16 %v244
    %v1672 = vunpack.c.h.b16 %v244
    %v1673 = vunpack.c.l.b16 %v245
    %v1674 = vunpack.c.h.b16 %v245
    %v1675 = vunpack.c.l.b16 %v246
    %v1676 = vunpack.c.h.b16 %v246
    %v1677 = vunpack.c.l.b16 %v247
    %v1678 = vunpack.c.h.b16 %v247
    %v1679 = vunpack.c.l.b16 %v248
    %v1680 = vunpack.c.h.b16 %v248
    %v1681 = vunpack.c.l.b16 %v249
    %v1682 = vunpack.c.h.b16 %v249
    %v1683 = vunpack.c.l.b16 %v250
    %v1684 = vunpack.c.h.b16 %v250
    %v1685 = vunpack.c.l.b16 %v251
    %v1686 = vunpack.c.h.b16 %v251
    %v1687 = vunpack.c.l.b16 %v252
    %v1688 = vunpack.c.h.b16 %v252
    %v1689 = vunpack.c.l.b16 %v253
    %v1690 = vunpack.c.h.b16 %v253
    %v1691 = vunpack.c.l.b16 %v254
    %v1692 = vunpack.c.h.b16 %v254
    %v1693 = vunpack.c.l.b16 %v255
    %v1694 = vunpack.c.h.b16 %v255
    %v1695 = vunpack.c.l.b16 %v256
    %v1696 = vunpack.c.h.b16 %v256
    %v1697 = vunpack.c.l.b16 %v257
    %v1698 = vunpack.c.h.b16 %v257
    %v1699 = vunpack.c.l.b16 %v258
    %v1700 = vunpack.c.h.b16 %v258
    %v1701 = vunpack.c.l.b16 %v259
    %v1702 = vunpack.c.h.b16 %v259
    %v1703 = vunpack.c.l.b16 %v260
    %v1704 = vunpack.c.h.b16 %v260
    %v1705 = vunpack.c.l.b16 %v261
    %v1706 = vunpack.c.h.b16 %v261
    %v1707 = vunpack.c.l.b16 %v262
    %v1708 = vunpack.c.h.b16 %v262
    %v1709 = vunpack.c.l.b16 %v263
    %v1710 = vunpack.c.h.b16 %v263
    %v1711 = vunpack.c.l.b16 %v264
    %v1712 = vunpack.c.h.b16 %v264
    %v1713 = vunpack.c.l.b16 %v265
    %v1714 = vunpack.c.h.b16 %v265
    %v1715 = vunpack.c.l.b16 %v266
    %v1716 = vunpack.c.h.b16 %v266
    %v1717 = vunpack.c.l.b16 %v267
    %v1718 = vunpack.c.h.b16 %v267
    %v1719 = vunpack.c.l.b16 %v268
    %v1720 = vunpack.c.h.b16 %v268
    %v1721 = vunpack.c.l.b16 %v269
    %v1722 = vunpack.c.h.b16 %v269
    %v1723 = vunpack.c.l.b16 %v270
    %v1724 = vunpack.c.h.b16 %v270
    %v1725 = vunpack.c.l.b16 %v271
    %v1726 = vunpack.c.h.b16 %v271
    %v1727 = vunpack.c.l.b16 %v272
    %v1728 = vunpack.c.h.b16 %v272
    %v1729 = vunpack.c.l.b16 %v273
    %v1730 = vunpack.c.h.b16 %v273
    %v1731 = vunpack.c.l.b16 %v274
    %v1732 = vunpack.c.h.b16 %v274
    %v1733 = vunpack.c.l.b16 %v275
    %v1734 = vunpack.c.h.b16 %v275
    %v1735 = vunpack.c.l.b16 %v276
    %v1736 = vunpack.c.h.b16 %v276
    %v1737 = vunpack.c.l.b16 %v277
    %v1738 = vunpack.c.h.b16 %v277
    %v1739 = vunpack.c.l.b16 %v278
    %v1740 = vunpack.c.h.b16 %v278
    %v1741 = vunpack.c.l.b16 %v279
    %v1742 = vunpack.c.h.b16 %v279
    %v1743 = vunpack.c.l.b16 %v280
    %v1744 = vunpack.c.h.b16 %v280
    %v1745 = vunpack.c.l.b16 %v281
    %v1746 = vunpack.c.h.b16 %v281
    %v1747 = vunpack.c.l.b16 %v282
    %v1748 = vunpack.c.h.b16 %v282
    %v1749 = vunpack.c.l.b16 %v283
    %v1750 = vunpack.c.h.b16 %v283
    %v1751 = vunpack.c.l.b16 %v284
    %v1752 = vunpack.c.h.b16 %v284
    %v1753 = vunpack.c.l.b16 %v285
    %v1754 = vunpack.c.h.b16 %v285
    %v1755 = vunpack.c.l.b16 %v286
    %v1756 = vunpack.c.h.b16 %v286
    %v1757 = vunpack.c.l.b16 %v287
    %v1758 = vunpack.c.h.b16 %v287
    %v1759 = vunpack.c.l.b16 %v288
    %v1760 = vunpack.c.h.b16 %v288
    %v1761 = vunpack.c.l.b16 %v289
    %v1762 = vunpack.c.h.b16 %v289
    %v1763 = vunpack.c.l.b16 %v290
    %v1764 = vunpack.c.h.b16 %v290
    %v1765 = vunpack.c.l.b16 %v291
    %v1766 = vunpack.c.h.b16 %v291
    %v1767 = vunpack.c.l.b16 %v292
    %v1768 = vunpack.c.h.b16 %v292
    %v1769 = vunpack.c.l.b16 %v293
    %v1770 = vunpack.c.h.b16 %v293
    %v1771 = vunpack.c.l.b16 %v294
    %v1772 = vunpack.c.h.b16 %v294
    %v1773 = vunpack.c.l.b16 %v295
    %v1774 = vunpack.c.h.b16 %v295
    %v1775 = vunpack.c.l.b16 %v296
    %v1776 = vunpack.c.h.b16 %v296
    %v1777 = vunpack.c.l.b16 %v297
    %v1778 = vunpack.c.h.b16 %v297
    %v1779 = vunpack.c.l.b16 %v298
    %v1780 = vunpack.c.h.b16 %v298
    %v1781 = vunpack.c.l.b16 %v299
    %v1782 = vunpack.c.h.b16 %v299
    %v1783 = vunpack.c.l.b16 %v300
    %v1784 = vunpack.c.h.b16 %v300
    %v1785 = vunpack.c.l.b16 %v301
    %v1786 = vunpack.c.h.b16 %v301
    %v1787 = vunpack.c.l.b16 %v302
    %v1788 = vunpack.c.h.b16 %v302
    %v1789 = vunpack.c.l.b16 %v303
    %v1790 = vunpack.c.h.b16 %v303
    %v1791 = vunpack.c.l.b16 %v304
    %v1792 = vunpack.c.h.b16 %v304
    %v1793 = vunpack.c.l.b16 %v305
    %v1794 = vunpack.c.h.b16 %v305
    %v1795 = vunpack.c.l.b16 %v306
    %v1796 = vunpack.c.h.b16 %v306
    %v1797 = vunpack.c.l.b16 %v307
    %v1798 = vunpack.c.h.b16 %v307
    %v1799 = vunpack.c.l.b16 %v308
    %v1800 = vunpack.c.h.b16 %v308
    %v1801 = vunpack.c.l.b16 %v309
    %v1802 = vunpack.c.h.b16 %v309
    %v1803 = vunpack.c.l.b16 %v310
    %v1804 = vunpack.c.h.b16 %v310
    %v1805 = vunpack.c.l.b16 %v311
    %v1806 = vunpack.c.h.b16 %v311
    %v1807 = vunpack.c.l.b16 %v312
    %v1808 = vunpack.c.h.b16 %v312
    %v1809 = vunpack.c.l.b16 %v313
    %v1810 = vunpack.c.h.b16 %v313
    %v1811 = vunpack.c.l.b16 %v314
    %v1812 = vunpack.c.h.b16 %v314
    %v1813 = vunpack.c.l.b16 %v315
    %v1814 = vunpack.c.h.b16 %v315
    %v1815 = vunpack.c.l.b16 %v316
    %v1816 = vunpack.c.h.b16 %v316
    %v1817 = vunpack.c.l.b16 %v317
    %v1818 = vunpack.c.h.b16 %v317
    %v1819 = vunpack.c.l.b16 %v318
    %v1820 = vunpack.c.h.b16 %v318
    %v1821 = vunpack.c.l.b16 %v319
    %v1822 = vunpack.c.h.b16 %v319
    %v1823 = vunpack.c.l.b16 %v320
    %v1824 = vunpack.c.h.b16 %v320
    %v1825 = vunpack.c.l.b16 %v321
    %v1826 = vunpack.c.h.b16 %v321
    %v1827 = vunpack.c.l.b16 %v322
    %v1828 = vunpack.c.h.b16 %v322
    %v1829 = vunpack.c.l.b16 %v323
    %v1830 = vunpack.c.h.b16 %v323
    %v1831 = vunpack.c.l.b16 %v324
    %v1832 = vunpack.c.h.b16 %v324
    %v1833 = vunpack.c.l.b16 %v325
    %v1834 = vunpack.c.h.b16 %v325
    %v1835 = vunpack.c.l.b16 %v326
    %v1836 = vunpack.c.h.b16 %v326
    %v1837 = vunpack.c.l.b16 %v327
    %v1838 = vunpack.c.h.b16 %v327
    %v1839 = vunpack.c.l.b16 %v328
    %v1840 = vunpack.c.h.b16 %v328
    %v1841 = vunpack.c.l.b16 %v329
    %v1842 = vunpack.c.h.b16 %v329
    %v1843 = vunpack.c.l.b16 %v330
    %v1844 = vunpack.c.h.b16 %v330
    %v1845 = vunpack.c.l.b16 %v331
    %v1846 = vunpack.c.h.b16 %v331
    %v1847 = vunpack.c.l.b16 %v332
    %v1848 = vunpack.c.h.b16 %v332
    %v1849 = vunpack.c.l.b16 %v333
    %v1850 = vunpack.c.h.b16 %v333
    %v1851 = vunpack.c.l.b16 %v334
    %v1852 = vunpack.c.h.b16 %v334
    %v1853 = vunpack.c.l.b16 %v335
    %v1854 = vunpack.c.h.b16 %v335
    %v1855 = vunpack.c.l.b16 %v336
    %v1856 = vunpack.c.h.b16 %v336
    %v1857 = vunpack.c.l.b16 %v337
    %v1858 = vunpack.c.h.b16 %v337
    %v1859 = vunpack.c.l.b16 %v338
    %v1860 = vunpack.c.h.b16 %v338
    %v1861 = vunpack.c.l.b16 %v339
    %v1862 = vunpack.c.h.b16 %v339
    %v1863 = vunpack.c.l.b16 %v340
    %v1864 = vunpack.c.h.b16 %v340
    %v1865 = vunpack.c.l.b16 %v341
    %v1866 = vunpack.c.h.b16 %v341
    %v1867 = vunpack.c.l.b16 %v342
    %v1868 = vunpack.c.h.b16 %v342
    %v1869 = vunpack.c.l.b16 %v343
    %v1870 = vunpack.c.h.b16 %v343
    %v1871 = vunpack.c.l.b16 %v344
    %v1872 = vunpack.c.h.b16 %v344
    %v1873 = vunpack.c.l.b16 %v345
    %v1874 = vunpack.c.h.b16 %v345
    %v1875 = vunpack.c.l.b16 %v346
    %v1876 = vunpack.c.h.b16 %v346
    %v1877 = vunpack.c.l.b16 %v347
    %v1878 = vunpack.c.h.b16 %v347
    %v1879 = vunpack.c.l.b16 %v348
    %v1880 = vunpack.c.h.b16 %v348
    %v1881 = vunpack.c.l.b16 %v349
    %v1882 = vunpack.c.h.b16 %v349
    %v1883 = vunpack.c.l.b16 %v350
    %v1884 = vunpack.c.h.b16 %v350
    %v1885 = vunpack.c.l.b16 %v351
    %v1886 = vunpack.c.h.b16 %v351
    %v1887 = vunpack.c.l.b16 %v352
    %v1888 = vunpack.c.h.b16 %v352
    %v1889 = vunpack.c.l.b16 %v353
    %v1890 = vunpack.c.h.b16 %v353
    %v1891 = vunpack.c.l.b16 %v354
    %v1892 = vunpack.c.h.b16 %v354
    %v1893 = vunpack.c.l.b16 %v355
    %v1894 = vunpack.c.h.b16 %v355
    %v1895 = vunpack.c.l.b16 %v356
    %v1896 = vunpack.c.h.b16 %v356
    %v1897 = vunpack.c.l.b16 %v357
    %v1898 = vunpack.c.h.b16 %v357
    %v1899 = vunpack.c.l.b16 %v358
    %v1900 = vunpack.c.h.b16 %v358
    %v1901 = vunpack.c.l.b16 %v359
    %v1902 = vunpack.c.h.b16 %v359
    %v1903 = vunpack.c.l.b16 %v360
    %v1904 = vunpack.c.h.b16 %v360
    %v1905 = vunpack.c.l.b16 %v361
    %v1906 = vunpack.c.h.b16 %v361
    %v1907 = vunpack.c.l.b16 %v362
    %v1908 = vunpack.c.h.b16 %v362
    %v1909 = vunpack.c.l.b16 %v363
    %v1910 = vunpack.c.h.b16 %v363
    %v1911 = vunpack.c.l.b16 %v364
    %v1912 = vunpack.c.h.b16 %v364
    %v1913 = vunpack.c.l.b16 %v365
    %v1914 = vunpack.c.h.b16 %v365
    %v1915 = vunpack.c.l.b16 %v366
    %v1916 = vunpack.c.h.b16 %v366
    %v1917 = vunpack.c.l.b16 %v367
    %v1918 = vunpack.c.h.b16 %v367
    %v1919 = vunpack.c.l.b16 %v368
    %v1920 = vunpack.c.h.b16 %v368
    %v1921 = vunpack.c.l.b16 %v369
    %v1922 = vunpack.c.h.b16 %v369
    %v1923 = vunpack.c.l.b16 %v370
    %v1924 = vunpack.c.h.b16 %v370
    %v1925 = vunpack.c.l.b16 %v371
    %v1926 = vunpack.c.h.b16 %v371
    %v1927 = vunpack.c.l.b16 %v372
    %v1928 = vunpack.c.h.b16 %v372
    %v1929 = vunpack.c.l.b16 %v373
    %v1930 = vunpack.c.h.b16 %v373
    %v1931 = vunpack.c.l.b16 %v374
    %v1932 = vunpack.c.h.b16 %v374
    %v1933 = vunpack.c.l.b16 %v375
    %v1934 = vunpack.c.h.b16 %v375
    %v1935 = vunpack.c.l.b16 %v376
    %v1936 = vunpack.c.h.b16 %v376
    %v1937 = vunpack.c.l.b16 %v377
    %v1938 = vunpack.c.h.b16 %v377
    %v1939 = vunpack.c.l.b16 %v378
    %v1940 = vunpack.c.h.b16 %v378
    %v1941 = vunpack.c.l.b16 %v379
    %v1942 = vunpack.c.h.b16 %v379
    %v1943 = vunpack.c.l.b16 %v380
    %v1944 = vunpack.c.h.b16 %v380
    %v1945 = vunpack.c.l.b16 %v381
    %v1946 = vunpack.c.h.b16 %v381
    %v1947 = vunpack.c.l.b16 %v382
    %v1948 = vunpack.c.h.b16 %v382
    %v1949 = vunpack.c.l.b16 %v383
    %v1950 = vunpack.c.h.b16 %v383
    %v1951 = vunpack.c.l.b16 %v384
    %v1952 = vunpack.c.h.b16 %v384
    %v1953 = vunpack.c.l.b16 %v385
    %v1954 = vunpack.c.h.b16 %v385
    %v1955 = vunpack.c.l.b16 %v386
    %v1956 = vunpack.c.h.b16 %v386
    %v1957 = vunpack.c.l.b16 %v387
    %v1958 = vunpack.c.h.b16 %v387
    %v1959 = vunpack.c.l.b16 %v388
    %v1960 = vunpack.c.h.b16 %v388
    %v1961 = vunpack.c.l.b16 %v389
    %v1962 = vunpack.c.h.b16 %v389
    %v1963 = vunpack.c.l.b16 %v390
    %v1964 = vunpack.c.h.b16 %v390
    %v1965 = vunpack.c.l.b16 %v391
    %v1966 = vunpack.c.h.b16 %v391
    %v1967 = vunpack.c.l.b16 %v392
    %v1968 = vunpack.c.h.b16 %v392
    %v1969 = vunpack.c.l.b16 %v393
    %v1970 = vunpack.c.h.b16 %v393
    %v1971 = vunpack.c.l.b16 %v394
    %v1972 = vunpack.c.h.b16 %v394
    %v1973 = vunpack.c.l.b16 %v395
    %v1974 = vunpack.c.h.b16 %v395
    %v1975 = vunpack.c.l.b16 %v396
    %v1976 = vunpack.c.h.b16 %v396
    %v1977 = vunpack.c.l.b16 %v397
    %v1978 = vunpack.c.h.b16 %v397
    %v1979 = vunpack.c.l.b16 %v398
    %v1980 = vunpack.c.h.b16 %v398
    %v1981 = vunpack.c.l.b16 %v399
    %v1982 = vunpack.c.h.b16 %v399
    %v1983 = vunpack.c.l.b16 %v400
    %v1984 = vunpack.c.h.b16 %v400
    %v1985 = vunpack.c.l.b16 %v401
    %v1986 = vunpack.c.h.b16 %v401
    %v1987 = vunpack.c.l.b16 %v402
    %v1988 = vunpack.c.h.b16 %v402
    %v1989 = vunpack.c.l.b16 %v403
    %v1990 = vunpack.c.h.b16 %v403
    %v1991 = vunpack.c.l.b16 %v404
    %v1992 = vunpack.c.h.b16 %v404
    %v1993 = vunpack.c.l.b16 %v405
    %v1994 = vunpack.c.h.b16 %v405
    %v1995 = vunpack.c.l.b16 %v406
    %v1996 = vunpack.c.h.b16 %v406
    %v1997 = vunpack.c.l.b16 %v407
    %v1998 = vunpack.c.h.b16 %v407
    %v1999 = vunpack.c.l.b16 %v408
    %v2000 = vunpack.c.h.b16 %v408
    %v2001 = vunpack.c.l.b16 %v409
    %v2002 = vunpack.c.h.b16 %v409
    %v2003 = vunpack.c.l.b16 %v410
    %v2004 = vunpack.c.h.b16 %v410
    %v2005 = vunpack.c.l.b16 %v411
    %v2006 = vunpack.c.h.b16 %v411
    %v2007 = vunpack.c.l.b16 %v412
    %v2008 = vunpack.c.h.b16 %v412
    %v2009 = vunpack.c.l.b16 %v413
    %v2010 = vunpack.c.h.b16 %v413
    %v2011 = vunpack.c.l.b16 %v414
    %v2012 = vunpack.c.h.b16 %v414
    %v2013 = vunpack.c.l.b16 %v415
    %v2014 = vunpack.c.h.b16 %v415
    %v2015 = vunpack.c.l.b16 %v416
    %v2016 = vunpack.c.h.b16 %v416
    %v2017 = vunpack.c.l.b16 %v417
    %v2018 = vunpack.c.h.b16 %v417
    %v2019 = vunpack.c.l.b16 %v418
    %v2020 = vunpack.c.h.b16 %v418
    %v2021 = vunpack.c.l.b16 %v419
    %v2022 = vunpack.c.h.b16 %v419
    %v2023 = vunpack.c.l.b16 %v420
    %v2024 = vunpack.c.h.b16 %v420
    %v2025 = vunpack.c.l.b16 %v421
    %v2026 = vunpack.c.h.b16 %v421
    %v2027 = vunpack.c.l.b16 %v422
    %v2028 = vunpack.c.h.b16 %v422
    %v2029 = vunpack.c.l.b16 %v423
    %v2030 = vunpack.c.h.b16 %v423
    %v2031 = vunpack.c.l.b16 %v424
    %v2032 = vunpack.c.h.b16 %v424
    %v2033 = vunpack.c.l.b16 %v425
    %v2034 = vunpack.c.h.b16 %v425
    %v2035 = vunpack.c.l.b16 %v426
    %v2036 = vunpack.c.h.b16 %v426
    %v2037 = vunpack.c.l.b16 %v427
    %v2038 = vunpack.c.h.b16 %v427
    %v2039 = vunpack.c.l.b16 %v428
    %v2040 = vunpack.c.h.b16 %v428
    %v2041 = vunpack.c.l.b16 %v429
    %v2042 = vunpack.c.h.b16 %v429
    %v2043 = vunpack.c.l.b16 %v430
    %v2044 = vunpack.c.h.b16 %v430
    %v2045 = vunpack.c.l.b16 %v431
    %v2046 = vunpack.c.h.b16 %v431
    %v2047 = vunpack.c.l.b16 %v432
    %v2048 = vunpack.c.h.b16 %v432
    %v2049 = vunpack.c.l.b16 %v433
    %v2050 = vunpack.c.h.b16 %v433
    %v2051 = vunpack.c.l.b16 %v434
    %v2052 = vunpack.c.h.b16 %v434
    %v2053 = vunpack.c.l.b16 %v435
    %v2054 = vunpack.c.h.b16 %v435
    %v2055 = vunpack.c.l.b16 %v436
    %v2056 = vunpack.c.h.b16 %v436
    %v2057 = vunpack.c.l.b16 %v437
    %v2058 = vunpack.c.h.b16 %v437
    %v2059 = vunpack.c.l.b16 %v438
    %v2060 = vunpack.c.h.b16 %v438
    %v2061 = vunpack.c.l.b16 %v439
    %v2062 = vunpack.c.h.b16 %v439
    %v2063 = vunpack.c.l.b16 %v440
    %v2064 = vunpack.c.h.b16 %v440
    %v2065 = vunpack.c.l.b16 %v441
    %v2066 = vunpack.c.h.b16 %v441
    %v2067 = vunpack.c.l.b16 %v442
    %v2068 = vunpack.c.h.b16 %v442
    %v2069 = vunpack.c.l.b16 %v443
    %v2070 = vunpack.c.h.b16 %v443
    %v2071 = vunpack.c.l.b16 %v444
    %v2072 = vunpack.c.h.b16 %v444
    %v2073 = vunpack.c.l.b16 %v445
    %v2074 = vunpack.c.h.b16 %v445
    %v2075 = vunpack.c.l.b16 %v446
    %v2076 = vunpack.c.h.b16 %v446
    %v2077 = vunpack.c.l.b16 %v447
    %v2078 = vunpack.c.h.b16 %v447
    %v2079 = vunpack.c.l.b16 %v448
    %v2080 = vunpack.c.h.b16 %v448
    %v2081 = vunpack.c.l.b16 %v449
    %v2082 = vunpack.c.h.b16 %v449
    %v2083 = vunpack.c.l.b16 %v450
    %v2084 = vunpack.c.h.b16 %v450
    %v2085 = vunpack.c.l.b16 %v451
    %v2086 = vunpack.c.h.b16 %v451
    %v2087 = vunpack.c.l.b16 %v452
    %v2088 = vunpack.c.h.b16 %v452
    %v2089 = vunpack.c.l.b16 %v453
    %v2090 = vunpack.c.h.b16 %v453
    %v2091 = vunpack.c.l.b16 %v454
    %v2092 = vunpack.c.h.b16 %v454
    %v2093 = vunpack.c.l.b16 %v455
    %v2094 = vunpack.c.h.b16 %v455
    %v2095 = vunpack.c.l.b16 %v456
    %v2096 = vunpack.c.h.b16 %v456
    %v2097 = vunpack.c.l.b16 %v457
    %v2098 = vunpack.c.h.b16 %v457
    %v2099 = vunpack.c.l.b16 %v458
    %v2100 = vunpack.c.h.b16 %v458
    %v2101 = vunpack.c.l.b16 %v459
    %v2102 = vunpack.c.h.b16 %v459
    %v2103 = vunpack.c.l.b16 %v460
    %v2104 = vunpack.c.h.b16 %v460
    %v2105 = vunpack.c.l.b16 %v461
    %v2106 = vunpack.c.h.b16 %v461
    %v2107 = vunpack.c.l.b16 %v462
    %v2108 = vunpack.c.h.b16 %v462
    %v2109 = vunpack.c.l.b16 %v463
    %v2110 = vunpack.c.h.b16 %v463
    %v2111 = vunpack.c.l.b16 %v464
    %v2112 = vunpack.c.h.b16 %v464
    %v2113 = vunpack.c.l.b16 %v465
    %v2114 = vunpack.c.h.b16 %v465
    %v2115 = vunpack.c.l.b16 %v466
    %v2116 = vunpack.c.h.b16 %v466
    %v2117 = vunpack.c.l.b16 %v467
    %v2118 = vunpack.c.h.b16 %v467
    %v2119 = vunpack.c.l.b16 %v468
    %v2120 = vunpack.c.h.b16 %v468
    %v2121 = vunpack.c.l.b16 %v469
    %v2122 = vunpack.c.h.b16 %v469
    %v2123 = vunpack.c.l.b16 %v470
    %v2124 = vunpack.c.h.b16 %v470
    %v2125 = vunpack.c.l.b16 %v471
    %v2126 = vunpack.c.h.b16 %v471
    %v2127 = vunpack.c.l.b16 %v472
    %v2128 = vunpack.c.h.b16 %v472
    %v2129 = vunpack.c.l.b16 %v473
    %v2130 = vunpack.c.h.b16 %v473
    %v2131 = vunpack.c.l.b16 %v474
    %v2132 = vunpack.c.h.b16 %v474
    %v2133 = vunpack.c.l.b16 %v475
    %v2134 = vunpack.c.h.b16 %v475
    %v2135 = vunpack.c.l.b16 %v476
    %v2136 = vunpack.c.h.b16 %v476
    %v2137 = vunpack.c.l.b16 %v477
    %v2138 = vunpack.c.h.b16 %v477
    %v2139 = vunpack.c.l.b16 %v478
    %v2140 = vunpack.c.h.b16 %v478
    %v2141 = vunpack.c.l.b16 %v479
    %v2142 = vunpack.c.h.b16 %v479
    %v2143 = vunpack.c.l.b16 %v480
    %v2144 = vunpack.c.h.b16 %v480
    %v2145 = vunpack.c.l.b16 %v481
    %v2146 = vunpack.c.h.b16 %v481
    %v2147 = vunpack.c.l.b16 %v482
    %v2148 = vunpack.c.h.b16 %v482
    %v2149 = vunpack.c.l.b16 %v483
    %v2150 = vunpack.c.h.b16 %v483
    %v2151 = vunpack.c.l.b16 %v484
    %v2152 = vunpack.c.h.b16 %v484
    %v2153 = vunpack.c.l.b16 %v485
    %v2154 = vunpack.c.h.b16 %v485
    %v2155 = vunpack.c.l.b16 %v486
    %v2156 = vunpack.c.h.b16 %v486
    %v2157 = vunpack.c.l.b16 %v487
    %v2158 = vunpack.c.h.b16 %v487
    %v2159 = vunpack.c.l.b16 %v488
    %v2160 = vunpack.c.h.b16 %v488
    %v2161 = vunpack.c.l.b16 %v489
    %v2162 = vunpack.c.h.b16 %v489
    %v2163 = vunpack.c.l.b16 %v490
    %v2164 = vunpack.c.h.b16 %v490
    %v2165 = vunpack.c.l.b16 %v491
    %v2166 = vunpack.c.h.b16 %v491
    %v2167 = vunpack.c.l.b16 %v492
    %v2168 = vunpack.c.h.b16 %v492
    %v2169 = vunpack.c.l.b16 %v493
    %v2170 = vunpack.c.h.b16 %v493
    %v2171 = vunpack.c.l.b16 %v494
    %v2172 = vunpack.c.h.b16 %v494
    %v2173 = vunpack.c.l.b16 %v495
    %v2174 = vunpack.c.h.b16 %v495
    %v2175 = vunpack.c.l.b16 %v496
    %v2176 = vunpack.c.h.b16 %v496
    %v2177 = vunpack.c.l.b16 %v497
    %v2178 = vunpack.c.h.b16 %v497
    %v2179 = vunpack.c.l.b16 %v498
    %v2180 = vunpack.c.h.b16 %v498
    %v2181 = vunpack.c.l.b16 %v499
    %v2182 = vunpack.c.h.b16 %v499
    %v2183 = vunpack.c.l.b16 %v500
    %v2184 = vunpack.c.h.b16 %v500
    %v2185 = vunpack.c.l.b16 %v501
    %v2186 = vunpack.c.h.b16 %v501
    %v2187 = vunpack.c.l.b16 %v502
    %v2188 = vunpack.c.h.b16 %v502
    %v2189 = vunpack.c.l.b16 %v503
    %v2190 = vunpack.c.h.b16 %v503
    %v2191 = vunpack.c.l.b16 %v504
    %v2192 = vunpack.c.h.b16 %v504
    %v2193 = vunpack.c.l.b16 %v505
    %v2194 = vunpack.c.h.b16 %v505
    %v2195 = vunpack.c.l.b16 %v506
    %v2196 = vunpack.c.h.b16 %v506
    %v2197 = vunpack.c.l.b16 %v507
    %v2198 = vunpack.c.h.b16 %v507
    %v2199 = vunpack.c.l.b16 %v508
    %v2200 = vunpack.c.h.b16 %v508
    %v2201 = vunpack.c.l.b16 %v509
    %v2202 = vunpack.c.h.b16 %v509
    %v2203 = vpack.c.b16 %v1237, %v1235
    %v2204 = vpack.c.b16 %v1238, %v1236
    %v2205 = vpack.c.b16 %v1241, %v1239
    %v2206 = vpack.c.b16 %v1242, %v1240
    %v2207 = vpack.c.b16 %v1245, %v1243
    %v2208 = vpack.c.b16 %v1246, %v1244
    %v2209 = vpack.c.b16 %v1249, %v1247
    %v2210 = vpack.c.b16 %v1250, %v1248
    %v2211 = vpack.c.b16 %v1253, %v1251
    %v2212 = vpack.c.b16 %v1254, %v1252
    %v2213 = vpack.c.b16 %v1257, %v1255
    %v2214 = vpack.c.b16 %v1258, %v1256
    %v2215 = vpack.c.b16 %v1261, %v1259
    %v2216 = vpack.c.b16 %v1262, %v1260
    %v2217 = vpack.c.b16 %v1265, %v1263
    %v2218 = vpack.c.b16 %v1266, %v1264
    %v2219 = vpack.c.b16 %v1269, %v1267
    %v2220 = vpack.c.b16 %v1270, %v1268
    %v2221 = vpack.c.b16 %v1273, %v1271
    %v2222 = vpack.c.b16 %v1274, %v1272
    %v2223 = vpack.c.b16 %v1277, %v1275
    %v2224 = vpack.c.b16 %v1278, %v1276
    %v2225 = vpack.c.b16 %v1281, %v1279
    %v2226 = vpack.c.b16 %v1282, %v1280
    %v2227 = vpack.c.b16 %v1285, %v1283
    %v2228 = vpack.c.b16 %v1286, %v1284
    %v2229 = vpack.c.b16 %v1289, %v1287
    %v2230 = vpack.c.b16 %v1290, %v1288
    %v2231 = vpack.c.b16 %v1293, %v1291
    %v2232 = vpack.c.b16 %v1294, %v1292
    %v2233 = vpack.c.b16 %v1297, %v1295
    %v2234 = vpack.c.b16 %v1298, %v1296
    %v2235 = vpack.c.b16 %v1301, %v1299
    %v2236 = vpack.c.b16 %v1302, %v1300
    %v2237 = vpack.c.b16 %v1305, %v1303
    %v2238 = vpack.c.b16 %v1306, %v1304
    %v2239 = vpack.c.b16 %v1309, %v1307
    %v2240 = vpack.c.b16 %v1310, %v1308
    %v2241 = vpack.c.b16 %v1313, %v1311
    %v2242 = vpack.c.b16 %v1314, %v1312
    %v2243 = vpack.c.b16 %v1317, %v1315
    %v2244 = vpack.c.b16 %v1318, %v1316
    %v2245 = vpack.c.b16 %v1321, %v1319
    %v2246 = vpack.c.b16 %v1322, %v1320
    %v2247 = vpack.c.b16 %v1325, %v1323
    %v2248 = vpack.c.b16 %v1326, %v1324
    %v2249 = vpack.c.b16 %v1329, %v1327
    %v2250 = vpack.c.b16 %v1330, %v1328
    %v2251 = vpack.c.b16 %v1333, %v1331
    %v2252 = vpack.c.b16 %v1334, %v1332
    %v2253 = vpack.c.b16 %v1337, %v1335
    %v2254 = vpack.c.b16 %v1338, %v1336
    %v2255 = vpack.c.b16 %v1341, %v1339
    %v2256 = vpack.c.b16 %v1342, %v1340
    %v2257 = vpack.c.b16 %v1345, %v1343
    %v2258 = vpack.c.b16 %v1346, %v1344
    %v2259 = vpack.c.b16 %v1349, %v1347
    %v2260 = vpack.c.b16 %v1350, %v1348
    %v2261 = vpack.c.b16 %v1353, %v1351
    %v2262 = vpack.c.b16 %v1354, %v1352
    %v2263 = vpack.c.b16 %v1357, %v1355
    %v2264 = vpack.c.b16 %v1358, %v1356
    %v2265 = vpack.c.b16 %v1361, %v1359
    %v2266 = vpack.c.b16 %v1362, %v1360
    %v2267 = vpack.c.b16 %v1365, %v1363
    %v2268 = vpack.c.b16 %v1366, %v1364
    %v2269 = vpack.c.b16 %v1369, %v1367
    %v2270 = vpack.c.b16 %v1370, %v1368
    %v2271 = vpack.c.b16 %v1373, %v1371
    %v2272 = vpack.c.b16 %v1374, %v1372
    %v2273 = vpack.c.b16 %v1377, %v1375
    %v2274 = vpack.c.b16 %v1378, %v1376
    %v2275 = vpack.c.b16 %v1381, %v1379
    %v2276 = vpack.c.b16 %v1382, %v1380
    %v2277 = vpack.c.b16 %v1385, %v1383
    %v2278 = vpack.c.b16 %v1386, %v1384
    %v2279 = vpack.c.b16 %v1389, %v1387
    %v2280 = vpack.c.b16 %v1390, %v1388
    %v2281 = vpack.c.b16 %v1393, %v1391
    %v2282 = vpack.c.b16 %v1394, %v1392
    %v2283 = vpack.c.b16 %v1397, %v1395
    %v2284 = vpack.c.b16 %v1398, %v1396
    %v2285 = vpack.c.b16 %v1401, %v1399
    %v2286 = vpack.c.b16 %v1402, %v1400
    %v2287 = vpack.c.b16 %v1405, %v1403
    %v2288 = vpack.c.b16 %v1406, %v1404
    %v2289 = vpack.c.b16 %v1409, %v1407
    %v2290 = vpack.c.b16 %v1410, %v1408
    %v2291 = vpack.c.b16 %v1413, %v1411
    %v2292 = vpack.c.b16 %v1414, %v1412
    %v2293 = vpack.c.b16 %v1417, %v1415
    %v2294 = vpack.c.b16 %v1418, %v1416
    %v2295 = vpack.c.b16 %v1421, %v1419
    %v2296 = vpack.c.b16 %v1422, %v1420
    %v2297 = vpack.c.b16 %v1425, %v1423
    %v2298 = vpack.c.b16 %v1426, %v1424
    %v2299 = vpack.c.b16 %v1429, %v1427
    %v2300 = vpack.c.b16 %v1430, %v1428
    %v2301 = vpack.c.b16 %v1433, %v1431
    %v2302 = vpack.c.b16 %v1434, %v1432
    %v2303 = vpack.c.b16 %v1437, %v1435
    %v2304 = vpack.c.b16 %v1438, %v1436
    %v2305 = vpack.c.b16 %v1441, %v1439
    %v2306 = vpack.c.b16 %v1442, %v1440
    %v2307 = vpack.c.b16 %v1445, %v1443
    %v2308 = vpack.c.b16 %v1446, %v1444
    %v2309 = vpack.c.b16 %v1449, %v1447
    %v2310 = vpack.c.b16 %v1450, %v1448
    %v2311 = vpack.c.b16 %v1453, %v1451
    %v2312 = vpack.c.b16 %v1454, %v1452
    %v2313 = vpack.c.b16 %v1457, %v1455
    %v2314 = vpack.c.b16 %v1458, %v1456
    %v2315 = vpack.c.b16 %v1461, %v1459
    %v2316 = vpack.c.b16 %v1462, %v1460
    %v2317 = vpack.c.b16 %v1465, %v1463
    %v2318 = vpack.c.b16 %v1466, %v1464
    %v2319 = vpack.c.b16 %v1469, %v1467
    %v2320 = vpack.c.b16 %v1470, %v1468
    %v2321 = vpack.c.b16 %v1473, %v1471
    %v2322 = vpack.c.b16 %v1474, %v1472
    %v2323 = vpack.c.b16 %v1477, %v1475
    %v2324 = vpack.c.b16 %v1478, %v1476
    %v2325 = vpack.c.b16 %v1481, %v1479
    %v2326 = vpack.c.b16 %v1482, %v1480
    %v2327 = vpack.c.b16 %v1485, %v1483
    %v2328 = vpack.c.b16 %v1486, %v1484
    %v2329 = vpack.c.b16 %v1489, %v1487
    %v2330 = vpack.c.b16 %v1490, %v1488
    %v2331 = vpack.c.b16 %v1493, %v1491
    %v2332 = vpack.c.b16 %v1494, %v1492
    %v2333 = vpack.c.b16 %v1497, %v1495
    %v2334 = vpack.c.b16 %v1498, %v1496
    %v2335 = vpack.c.b16 %v1501, %v1499
    %v2336 = vpack.c.b16 %v1502, %v1500
    %v2337 = vpack.c.b16 %v1505, %v1503
    %v2338 = vpack.c.b16 %v1506, %v1504
    %v2339 = vpack.c.b16 %v1509, %v1507
    %v2340 = vpack.c.b16 %v1510, %v1508
    %v2341 = vpack.c.b16 %v1513, %v1511
    %v2342 = vpack.c.b16 %v1514, %v1512
    %v2343 = vpack.c.b16 %v1517, %v1515
    %v2344 = vpack.c.b16 %v1518, %v1516
    %v2345 = vpack.c.b16 %v1521, %v1519
    %v2346 = vpack.c.b16 %v1522, %v1520
    %v2347 = vpack.c.b16 %v1525, %v1523
    %v2348 = vpack.c.b16 %v1526, %v1524
    %v2349 = vpack.c.b16 %v1529, %v1527
    %v2350 = vpack.c.b16 %v1530, %v1528
    %v2351 = vpack.c.b16 %v1533, %v1531
    %v2352 = vpack.c.b16 %v1534, %v1532
    %v2353 = vpack.c.b16 %v1537, %v1535
    %v2354 = vpack.c.b16 %v1538, %v1536
    %v2355 = vpack.c.b16 %v1541, %v1539
    %v2356 = vpack.c.b16 %v1542, %v1540
    %v2357 = vpack.c.b16 %v1545, %v1543
    %v2358 = vpack.c.b16 %v1546, %v1544
    %v2359 = vpack.c.b16 %v1549, %v1547
    %v2360 = vpack.c.b16 %v1550, %v1548
    %v2361 = vpack.c.b16 %v1553, %v1551
    %v2362 = vpack.c.b16 %v1554, %v1552
    %v2363 = vpack.c.b16 %v1557, %v1555
    %v2364 = vpack.c.b16 %v1558, %v1556
    %v2365 = vpack.c.b16 %v1561, %v1559
    %v2366 = vpack.c.b16 %v1562, %v1560
    %v2367 = vpack.c.b16 %v1565, %v1563
    %v2368 = vpack.c.b16 %v1566, %v1564
    %v2369 = vpack.c.b16 %v1569, %v1567
    %v2370 = vpack.c.b16 %v1570, %v1568
    %v2371 = vpack.c.b16 %v1573, %v1571
    %v2372 = vpack.c.b16 %v1574, %v1572
    %v2373 = vpack.c.b16 %v1577, %v1575
    %v2374 = vpack.c.b16 %v1578, %v1576
    %v2375 = vpack.c.b16 %v1581, %v1579
    %v2376 = vpack.c.b16 %v1582, %v1580
    %v2377 = vpack.c.b16 %v1585, %v1583
    %v2378 = vpack.c.b16 %v1586, %v1584
    %v2379 = vpack.c.b16 %v1589, %v1587
    %v2380 = vpack.c.b16 %v1590, %v1588
    %v2381 = vpack.c.b16 %v1593, %v1591
    %v2382 = vpack.c.b16 %v1594, %v1592
    %v2383 = vpack.c.b16 %v1597, %v1595
    %v2384 = vpack.c.b16 %v1598, %v1596
    %v2385 = vpack.c.b16 %v1601, %v1599
    %v2386 = vpack.c.b16 %v1602, %v1600
    %v2387 = vpack.c.b16 %v1605, %v1603
    %v2388 = vpack.c.b16 %v1606, %v1604
    %v2389 = vpack.c.b16 %v1609, %v1607
    %v2390 = vpack.c.b16 %v1610, %v1608
    %v2391 = vpack.c.b16 %v1613, %v1611
    %v2392 = vpack.c.b16 %v1614, %v1612
    %v2393 = vpack.c.b16 %v1617, %v1615
    %v2394 = vpack.c.b16 %v1618, %v1616
    %v2395 = vpack.c.b16 %v1621, %v1619
    %v2396 = vpack.c.b16 %v1622, %v1620
    %v2397 = vpack.c.b16 %v1625, %v1623
    %v2398 = vpack.c.b16 %v1626, %v1624
    %v2399 = vpack.c.b16 %v1629, %v1627
    %v2400 = vpack.c.b16 %v1630, %v1628
    %v2401 = vpack.c.b16 %v1633, %v1631
    %v2402 = vpack.c.b16 %v1634, %v1632
    %v2403 = vpack.c.b16 %v1637, %v1635
    %v2404 = vpack.c.b16 %v1638, %v1636
    %v2405 = vpack.c.b16 %v1641, %v1639
    %v2406 = vpack.c.b16 %v1642, %v1640
    %v2407 = vpack.c.b16 %v1645, %v1643
    %v2408 = vpack.c.b16 %v1646, %v1644
    %v2409 = vpack.c.b16 %v1649, %v1647
    %v2410 = vpack.c.b16 %v1650, %v1648
    %v2411 = vpack.c.b16 %v1653, %v1651
    %v2412 = vpack.c.b16 %v1654, %v1652
    %v2413 = vpack.c.b16 %v1657, %v1655
    %v2414 = vpack.c.b16 %v1658, %v1656
    %v2415 = vpack.c.b16 %v1661, %v1659
    %v2416 = vpack.c.b16 %v1662, %v1660
    %v2417 = vpack.c.b16 %v1665, %v1663
    %v2418 = vpack.c.b16 %v1666, %v1664
    %v2419 = vpack.c.b16 %v1669, %v1667
    %v2420 = vpack.c.b16 %v1670, %v1668
    %v2421 = vpack.c.b16 %v1673, %v1671
    %v2422 = vpack.c.b16 %v1674, %v1672
    %v2423 = vpack.c.b16 %v1677, %v1675
    %v2424 = vpack.c.b16 %v1678, %v1676
    %v2425 = vpack.c.b16 %v1681, %v1679
    %v2426 = vpack.c.b16 %v1682, %v1680
    %v2427 = vpack.c.b16 %v1685, %v1683
    %v2428 = vpack.c.b16 %v1686, %v1684
    %v2429 = vpack.c.b16 %v1689, %v1687
    %v2430 = vpack.c.b16 %v1690, %v1688
    %v2431 = vpack.c.b16 %v1693, %v1691
    %v2432 = vpack.c.b16 %v1694, %v1692
    %v2433 = vpack.c.b16 %v1697, %v1695
    %v2434 = vpack.c.b16 %v1698, %v1696
    %v2435 = vpack.c.b16 %v1701, %v1699
    %v2436 = vpack.c.b16 %v1702, %v1700
    %v2437 = vpack.c.b16 %v1705, %v1703
    %v2438 = vpack.c.b16 %v1706, %v1704
    %v2439 = vpack.c.b16 %v1709, %v1707
    %v2440 = vpack.c.b16 %v1710, %v1708
    %v2441 = vpack.c.b16 %v1713, %v1711
    %v2442 = vpack.c.b16 %v1714, %v1712
    %v2443 = vpack.c.b16 %v1717, %v1715
    %v2444 = vpack.c.b16 %v1718, %v1716
    %v2445 = vpack.c.b16 %v1721, %v1719
    %v2446 = vpack.c.b16 %v1722, %v1720
    %v2447 = vpack.c.b16 %v1725, %v1723
    %v2448 = vpack.c.b16 %v1726, %v1724
    %v2449 = vpack.c.b16 %v1729, %v1727
    %v2450 = vpack.c.b16 %v1730, %v1728
    %v2451 = vpack.c.b16 %v1733, %v1731
    %v2452 = vpack.c.b16 %v1734, %v1732
    %v2453 = vpack.c.b16 %v1737, %v1735
    %v2454 = vpack.c.b16 %v1738, %v1736
    %v2455 = vpack.c.b16 %v1741, %v1739
    %v2456 = vpack.c.b16 %v1742, %v1740
    %v2457 = vpack.c.b16 %v1745, %v1743
    %v2458 = vpack.c.b16 %v1746, %v1744
    %v2459 = vpack.c.b16 %v1749, %v1747
    %v2460 = vpack.c.b16 %v1750, %v1748
    %v2461 = vpack.c.b16 %v1753, %v1751
    %v2462 = vpack.c.b16 %v1754, %v1752
    %v2463 = vpack.c.b16 %v1757, %v1755
    %v2464 = vpack.c.b16 %v1758, %v1756
    %v2465 = vpack.c.b16 %v1761, %v1759
    %v2466 = vpack.c.b16 %v1762, %v1760
    %v2467 = vpack.c.b16 %v1765, %v1763
    %v2468 = vpack.c.b16 %v1766, %v1764
    %v2469 = vpack.c.b16 %v1769, %v1767
    %v2470 = vpack.c.b16 %v1770, %v1768
    %v2471 = vpack.c.b16 %v1773, %v1771
    %v2472 = vpack.c.b16 %v1774, %v1772
    %v2473 = vpack.c.b16 %v1777, %v1775
    %v2474 = vpack.c.b16 %v1778, %v1776
    %v2475 = vpack.c.b16 %v1781, %v1779
    %v2476 = vpack.c.b16 %v1782, %v1780
    %v2477 = vpack.c.b16 %v1785, %v1783
    %v2478 = vpack.c.b16 %v1786, %v1784
    %v2479 = vpack.c.b16 %v1789, %v1787
    %v2480 = vpack.c.b16 %v1790, %v1788
    %v2481 = vpack.c.b16 %v1793, %v1791
    %v2482 = vpack.c.b16 %v1794, %v1792
    %v2483 = vpack.c.b16 %v1797, %v1795
    %v2484 = vpack.c.b16 %v1798, %v1796
    %v2485 = vpack.c.b16 %v1801, %v1799
    %v2486 = vpack.c.b16 %v1802, %v1800
    %v2487 = vpack.c.b16 %v1805, %v1803
    %v2488 = vpack.c.b16 %v1806, %v1804
    %v2489 = vpack.c.b16 %v1809, %v1807
    %v2490 = vpack.c.b16 %v1810, %v1808
    %v2491 = vpack.c.b16 %v1813, %v1811
    %v2492 = vpack.c.b16 %v1814, %v1812
    %v2493 = vpack.c.b16 %v1817, %v1815
    %v2494 = vpack.c.b16 %v1818, %v1816
    %v2495 = vpack.c.b16 %v1821, %v1819
    %v2496 = vpack.c.b16 %v1822, %v1820
    %v2497 = vpack.c.b16 %v1825, %v1823
    %v2498 = vpack.c.b16 %v1826, %v1824
    %v2499 = vpack.c.b16 %v1829, %v1827
    %v2500 = vpack.c.b16 %v1830, %v1828
    %v2501 = vpack.c.b16 %v1833, %v1831
    %v2502 = vpack.c.b16 %v1834, %v1832
    %v2503 = vpack.c.b16 %v1837, %v1835
    %v2504 = vpack.c.b16 %v1838, %v1836
    %v2505 = vpack.c.b16 %v1841, %v1839
    %v2506 = vpack.c.b16 %v1842, %v1840
    %v2507 = vpack.c.b16 %v1845, %v1843
    %v2508 = vpack.c.b16 %v1846, %v1844
    %v2509 = vpack.c.b16 %v1849, %v1847
    %v2510 = vpack.c.b16 %v1850, %v1848
    %v2511 = vpack.c.b16 %v1853, %v1851
    %v2512 = vpack.c.b16 %v1854, %v1852
    %v2513 = vpack.c.b16 %v1857, %v1855
    %v2514 = vpack.c.b16 %v1858, %v1856
    %v2515 = vpack.c.b16 %v1861, %v1859
    %v2516 = vpack.c.b16 %v1862, %v1860
    %v2517 = vpack.c.b16 %v1865, %v1863
    %v2518 = vpack.c.b16 %v1866, %v1864
    %v2519 = vpack.c.b16 %v1869, %v1867
    %v2520 = vpack.c.b16 %v1870, %v1868
    %v2521 = vpack.c.b16 %v1873, %v1871
    %v2522 = vpack.c.b16 %v1874, %v1872
    %v2523 = vpack.c.b16 %v1877, %v1875
    %v2524 = vpack.c.b16 %v1878, %v1876
    %v2525 = vpack.c.b16 %v1881, %v1879
    %v2526 = vpack.c.b16 %v1882, %v1880
    %v2527 = vpack.c.b16 %v1885, %v1883
    %v2528 = vpack.c.b16 %v1886, %v1884
    %v2529 = vpack.c.b16 %v1889, %v1887
    %v2530 = vpack.c.b16 %v1890, %v1888
    %v2531 = vpack.c.b16 %v1893, %v1891
    %v2532 = vpack.c.b16 %v1894, %v1892
    %v2533 = vpack.c.b16 %v1897, %v1895
    %v2534 = vpack.c.b16 %v1898, %v1896
    %v2535 = vpack.c.b16 %v1901, %v1899
    %v2536 = vpack.c.b16 %v1902, %v1900
    %v2537 = vpack.c.b16 %v1905, %v1903
    %v2538 = vpack.c.b16 %v1906, %v1904
    %v2539 = vpack.c.b16 %v1909, %v1907
    %v2540 = vpack.c.b16 %v1910, %v1908
    %v2541 = vpack.c.b16 %v1913, %v1911
    %v2542 = vpack.c.b16 %v1914, %v1912
    %v2543 = vpack.c.b16 %v1917, %v1915
    %v2544 = vpack.c.b16 %v1918, %v1916
    %v2545 = vpack.c.b16 %v1921, %v1919
    %v2546 = vpack.c.b16 %v1922, %v1920
    %v2547 = vpack.c.b16 %v1925, %v1923
    %v2548 = vpack.c.b16 %v1926, %v1924
    %v2549 = vpack.c.b16 %v1929, %v1927
    %v2550 = vpack.c.b16 %v1930, %v1928
    %v2551 = vpack.c.b16 %v1933, %v1931
    %v2552 = vpack.c.b16 %v1934, %v1932
    %v2553 = vpack.c.b16 %v1937, %v1935
    %v2554 = vpack.c.b16 %v1938, %v1936
    %v2555 = vpack.c.b16 %v1941, %v1939
    %v2556 = vpack.c.b16 %v1942, %v1940
    %v2557 = vpack.c.b16 %v1945, %v1943
    %v2558 = vpack.c.b16 %v1946, %v1944
    %v2559 = vpack.c.b16 %v1949, %v1947
    %v2560 = vpack.c.b16 %v1950, %v1948
    %v2561 = vpack.c.b16 %v1953, %v1951
    %v2562 = vpack.c.b16 %v1954, %v1952
    %v2563 = vpack.c.b16 %v1957, %v1955
    %v2564 = vpack.c.b16 %v1958, %v1956
    %v2565 = vpack.c.b16 %v1961, %v1959
    %v2566 = vpack.c.b16 %v1962, %v1960
    %v2567 = vpack.c.b16 %v1965, %v1963
    %v2568 = vpack.c.b16 %v1966, %v1964
    %v2569 = vpack.c.b16 %v1969, %v1967
    %v2570 = vpack.c.b16 %v1970, %v1968
    %v2571 = vpack.c.b16 %v1973, %v1971
    %v2572 = vpack.c.b16 %v1974, %v1972
    %v2573 = vpack.c.b16 %v1977, %v1975
    %v2574 = vpack.c.b16 %v1978, %v1976
    %v2575 = vpack.c.b16 %v1981, %v1979
    %v2576 = vpack.c.b16 %v1982, %v1980
    %v2577 = vpack.c.b16 %v1985, %v1983
    %v2578 = vpack.c.b16 %v1986, %v1984
    %v2579 = vpack.c.b16 %v1989, %v1987
    %v2580 = vpack.c.b16 %v1990, %v1988
    %v2581 = vpack.c.b16 %v1993, %v1991
    %v2582 = vpack.c.b16 %v1994, %v1992
    %v2583 = vpack.c.b16 %v1997, %v1995
    %v2584 = vpack.c.b16 %v1998, %v1996
    %v2585 = vpack.c.b16 %v2001, %v1999
    %v2586 = vpack.c.b16 %v2002, %v2000
    %v2587 = vpack.c.b16 %v2005, %v2003
    %v2588 = vpack.c.b16 %v2006, %v2004
    %v2589 = vpack.c.b16 %v2009, %v2007
    %v2590 = vpack.c.b16 %v2010, %v2008
    %v2591 = vpack.c.b16 %v2013, %v2011
    %v2592 = vpack.c.b16 %v2014, %v2012
    %v2593 = vpack.c.b16 %v2017, %v2015
    %v2594 = vpack.c.b16 %v2018, %v2016
    %v2595 = vpack.c.b16 %v2021, %v2019
    %v2596 = vpack.c.b16 %v2022, %v2020
    %v2597 = vpack.c.b16 %v2025, %v2023
    %v2598 = vpack.c.b16 %v2026, %v2024
    %v2599 = vpack.c.b16 %v2029, %v2027
    %v2600 = vpack.c.b16 %v2030, %v2028
    %v2601 = vpack.c.b16 %v2033, %v2031
    %v2602 = vpack.c.b16 %v2034, %v2032
    %v2603 = vpack.c.b16 %v2037, %v2035
    %v2604 = vpack.c.b16 %v2038, %v2036
    %v2605 = vpack.c.b16 %v2041, %v2039
    %v2606 = vpack.c.b16 %v2042, %v2040
    %v2607 = vpack.c.b16 %v2045, %v2043
    %v2608 = vpack.c.b16 %v2046, %v2044
    %v2609 = vpack.c.b16 %v2049, %v2047
    %v2610 = vpack.c.b16 %v2050, %v2048
    %v2611 = vpack.c.b16 %v2053, %v2051
    %v2612 = vpack.c.b16 %v2054, %v2052
    %v2613 = vpack.c.b16 %v2057, %v2055
    %v2614 = vpack.c.b16 %v2058, %v2056
    %v2615 = vpack.c.b16 %v2061, %v2059
    %v2616 = vpack.c.b16 %v2062, %v2060
    %v2617 = vpack.c.b16 %v2065, %v2063
    %v2618 = vpack.c.b16 %v2066, %v2064
    %v2619 = vpack.c.b16 %v2069, %v2067
    %v2620 = vpack.c.b16 %v2070, %v2068
    %v2621 = vpack.c.b16 %v2073, %v2071
    %v2622 = vpack.c.b16 %v2074, %v2072
    %v2623 = vpack.c.b16 %v2077, %v2075
    %v2624 = vpack.c.b16 %v2078, %v2076
    %v2625 = vpack.c.b16 %v2081, %v2079
    %v2626 = vpack.c.b16 %v2082, %v2080
    %v2627 = vpack.c.b16 %v2085, %v2083
    %v2628 = vpack.c.b16 %v2086, %v2084
    %v2629 = vpack.c.b16 %v2089, %v2087
    %v2630 = vpack.c.b16 %v2090, %v2088
    %v2631 = vpack.c.b16 %v2093, %v2091
    %v2632 = vpack.c.b16 %v2094, %v2092
    %v2633 = vpack.c.b16 %v2097, %v2095
    %v2634 = vpack.c.b16 %v2098, %v2096
    %v2635 = vpack.c.b16 %v2101, %v2099
    %v2636 = vpack.c.b16 %v2102, %v2100
    %v2637 = vpack.c.b16 %v2105, %v2103
    %v2638 = vpack.c.b16 %v2106, %v2104
    %v2639 = vpack.c.b16 %v2109, %v2107
    %v2640 = vpack.c.b16 %v2110, %v2108
    %v2641 = vpack.c.b16 %v2113, %v2111
    %v2642 = vpack.c.b16 %v2114, %v2112
    %v2643 = vpack.c.b16 %v2117, %v2115
    %v2644 = vpack.c.b16 %v2118, %v2116
    %v2645 = vpack.c.b16 %v2121, %v2119
    %v2646 = vpack.c.b16 %v2122, %v2120
    %v2647 = vpack.c.b16 %v2125, %v2123
    %v2648 = vpack.c.b16 %v2126, %v2124
    %v2649 = vpack.c.b16 %v2129, %v2127
    %v2650 = vpack.c.b16 %v2130, %v2128
    %v2651 = vpack.c.b16 %v2133, %v2131
    %v2652 = vpack.c.b16 %v2134, %v2132
    %v2653 = vpack.c.b16 %v2137, %v2135
    %v2654 = vpack.c.b16 %v2138, %v2136
    %v2655 = vpack.c.b16 %v2141, %v2139
    %v2656 = vpack.c.b16 %v2142, %v2140
    %v2657 = vpack.c.b16 %v2145, %v2143
    %v2658 = vpack.c.b16 %v2146, %v2144
    %v2659 = vpack.c.b16 %v2149, %v2147
    %v2660 = vpack.c.b16 %v2150, %v2148
    %v2661 = vpack.c.b16 %v2153, %v2151
    %v2662 = vpack.c.b16 %v2154, %v2152
    %v2663 = vpack.c.b16 %v2157, %v2155
    %v2664 = vpack.c.b16 %v2158, %v2156
    %v2665 = vpack.c.b16 %v2161, %v2159
    %v2666 = vpack.c.b16 %v2162, %v2160
    %v2667 = vpack.c.b16 %v2165, %v2163
    %v2668 = vpack.c.b16 %v2166, %v2164
    %v2669 = vpack.c.b16 %v2169, %v2167
    %v2670 = vpack.c.b16 %v2170, %v2168
    %v2671 = vpack.c.b16 %v2173, %v2171
    %v2672 = vpack.c.b16 %v2174, %v2172
    %v2673 = vpack.c.b16 %v2177, %v2175
    %v2674 = vpack.c.b16 %v2178, %v2176
    %v2675 = vpack.c.b16 %v2181, %v2179
    %v2676 = vpack.c.b16 %v2182, %v2180
    %v2677 = vpack.c.b16 %v2185, %v2183
    %v2678 = vpack.c.b16 %v2186, %v2184
    %v2679 = vpack.c.b16 %v2189, %v2187
    %v2680 = vpack.c.b16 %v2190, %v2188
    %v2681 = vpack.c.b16 %v2193, %v2191
    %v2682 = vpack.c.b16 %v2194, %v2192
    %v2683 = vpack.c.b16 %v2197, %v2195
    %v2684 = vpack.c.b16 %v2198, %v2196
    %v2685 = vpack.c.b16 %v2201, %v2199
    %v2686 = vpack.c.b16 %v2202, %v2200
    %vm3171 = vcmask 261120
    %v3173 = vsel %vm3171, %v719, 0
    %3175 = vmatprep.subr.bf16.mxu0 %v2204
    %3176 = vmatpush1.bf16.msra.mxu0 %v2203
    %3177 = vmatprep.subr.bf16.mxu0 %v2206
    %3178 = vmatpush1.bf16.msra.mxu0 %v2205
    %3179 = vmatprep.subr.bf16.mxu0 %v2208
    %3180 = vmatpush1.bf16.msra.mxu0 %v2207
    %3181 = vmatprep.subr.bf16.mxu0 %v2210
    %3182 = vmatpush1.bf16.msra.mxu0 %v2209
    %3183 = vmatprep.subr.bf16.mxu0 %v2212
    %3184 = vmatpush1.bf16.msra.mxu0 %v2211
    %3185 = vmatprep.subr.bf16.mxu0 %v2214
    %3186 = vmatpush1.bf16.msra.mxu0 %v2213
    %3187 = vmatprep.subr.bf16.mxu0 %v2216
    %3188 = vmatpush1.bf16.msra.mxu0 %v2215
    %3189 = vmatprep.subr.bf16.mxu0 %v2218
    %3190 = vmatpush1.bf16.msra.mxu0 %v2217
    %3191 = vmatprep.subr.bf16.mxu0 %v2220
    %3192 = vmatpush1.bf16.msra.mxu0 %v2219
    %3193 = vmatprep.subr.bf16.mxu0 %v2222
    %3194 = vmatpush1.bf16.msra.mxu0 %v2221
    %3195 = vmatprep.subr.bf16.mxu0 %v2224
    %3196 = vmatpush1.bf16.msra.mxu0 %v2223
    %3197 = vmatprep.subr.bf16.mxu0 %v2226
    %3198 = vmatpush1.bf16.msra.mxu0 %v2225
    %3199 = vmatprep.subr.bf16.mxu0 %v2228
    %3200 = vmatpush1.bf16.msra.mxu0 %v2227
    %3201 = vmatprep.subr.bf16.mxu0 %v2230
    %3202 = vmatpush1.bf16.msra.mxu0 %v2229
    %3203 = vmatprep.subr.bf16.mxu0 %v2232
    %3204 = vmatpush1.bf16.msra.mxu0 %v2231
    %3205 = vmatprep.subr.bf16.mxu0 %v2234
    %3206 = vmatpush1.bf16.msra.mxu0 %v2233
    %3207 = vmatprep.mubr.bf16.mxu0 %v563
    %3208 = vmatmul.mubr.bf16.gmra.mrb[0].mxu0 %v549
    %v3209 = vpop.f32.mrb[0].mxu0
    %v3210 = vadd.f32 %v515, %v3209
    %v3211 = vpop.f32.mrb[0].mxu0
    %v3212 = vadd.f32 %v519, %v3211
    %v3213 = vpop.f32.mrb[0].mxu0
    %v3214 = vpop.f32.mrb[0].mxu0
    %3215 = vdwg.mxu0
    %3216 = vmatprep.subr.bf16.mxu0 %v2236
    %3217 = vmatpush1.bf16.msra.mxu0 %v2235
    %3218 = vmatprep.subr.bf16.mxu0 %v2238
    %3219 = vmatpush1.bf16.msra.mxu0 %v2237
    %3220 = vmatprep.subr.bf16.mxu0 %v2240
    %3221 = vmatpush1.bf16.msra.mxu0 %v2239
    %3222 = vmatprep.subr.bf16.mxu0 %v2242
    %3223 = vmatpush1.bf16.msra.mxu0 %v2241
    %3224 = vmatprep.subr.bf16.mxu0 %v2244
    %3225 = vmatpush1.bf16.msra.mxu0 %v2243
    %3226 = vmatprep.subr.bf16.mxu0 %v2246
    %3227 = vmatpush1.bf16.msra.mxu0 %v2245
    %3228 = vmatprep.subr.bf16.mxu0 %v2248
    %3229 = vmatpush1.bf16.msra.mxu0 %v2247
    %3230 = vmatprep.subr.bf16.mxu0 %v2250
    %3231 = vmatpush1.bf16.msra.mxu0 %v2249
    %3232 = vmatprep.subr.bf16.mxu0 %v2252
    %3233 = vmatpush1.bf16.msra.mxu0 %v2251
    %3234 = vmatprep.subr.bf16.mxu0 %v2254
    %3235 = vmatpush1.bf16.msra.mxu0 %v2253
    %3236 = vmatprep.subr.bf16.mxu0 %v2256
    %3237 = vmatpush1.bf16.msra.mxu0 %v2255
    %3238 = vmatprep.subr.bf16.mxu0 %v2258
    %3239 = vmatpush1.bf16.msra.mxu0 %v2257
    %3240 = vmatprep.subr.bf16.mxu0 %v2260
    %3241 = vmatpush1.bf16.msra.mxu0 %v2259
    %3242 = vmatprep.subr.bf16.mxu0 %v2262
    %3243 = vmatpush1.bf16.msra.mxu0 %v2261
    %3244 = vmatprep.subr.bf16.mxu0 %v2264
    %3245 = vmatpush1.bf16.msra.mxu0 %v2263
    %3246 = vmatprep.subr.bf16.mxu0 %v2266
    %3247 = vmatpush1.bf16.msra.mxu0 %v2265
    %3248 = vmatprep.mubr.bf16.mxu0 %v573
    %3249 = vmatmul.mubr.bf16.gmra.mrb[0].mxu0 %v571
    %v3250 = vpop.f32.mrb[0].mxu0
    %v3251 = vadd.f32 %v3210, %v3250
    %v3252 = vpop.f32.mrb[0].mxu0
    %v3253 = vadd.f32 %v3212, %v3252
    %v3254 = vpop.f32.mrb[0].mxu0
    %v3255 = vpop.f32.mrb[0].mxu0
    %3256 = vdwg.mxu0
    %3257 = vmatprep.subr.bf16.mxu0 %v2268
    %3258 = vmatpush1.bf16.msra.mxu0 %v2267
    %3259 = vmatprep.subr.bf16.mxu0 %v2270
    %3260 = vmatpush1.bf16.msra.mxu0 %v2269
    %3261 = vmatprep.subr.bf16.mxu0 %v2272
    %3262 = vmatpush1.bf16.msra.mxu0 %v2271
    %3263 = vmatprep.subr.bf16.mxu0 %v2274
    %3264 = vmatpush1.bf16.msra.mxu0 %v2273
    %3265 = vmatprep.subr.bf16.mxu0 %v2276
    %3266 = vmatpush1.bf16.msra.mxu0 %v2275
    %3267 = vmatprep.subr.bf16.mxu0 %v2278
    %3268 = vmatpush1.bf16.msra.mxu0 %v2277
    %3269 = vmatprep.subr.bf16.mxu0 %v2280
    %3270 = vmatpush1.bf16.msra.mxu0 %v2279
    %3271 = vmatprep.subr.bf16.mxu0 %v2282
    %3272 = vmatpush1.bf16.msra.mxu0 %v2281
    %3273 = vmatprep.subr.bf16.mxu0 %v2284
    %3274 = vmatpush1.bf16.msra.mxu0 %v2283
    %3275 = vmatprep.subr.bf16.mxu0 %v2286
    %3276 = vmatpush1.bf16.msra.mxu0 %v2285
    %3277 = vmatprep.subr.bf16.mxu0 %v2288
    %3278 = vmatpush1.bf16.msra.mxu0 %v2287
    %3279 = vmatprep.subr.bf16.mxu0 %v2290
    %3280 = vmatpush1.bf16.msra.mxu0 %v2289
    %3281 = vmatprep.subr.bf16.mxu0 %v2292
    %3282 = vmatpush1.bf16.msra.mxu0 %v2291
    %3283 = vmatprep.subr.bf16.mxu0 %v2294
    %3284 = vmatpush1.bf16.msra.mxu0 %v2293
    %3285 = vmatprep.subr.bf16.mxu0 %v2296
    %3286 = vmatpush1.bf16.msra.mxu0 %v2295
    %3287 = vmatprep.subr.bf16.mxu0 %v2298
    %3288 = vmatpush1.bf16.msra.mxu0 %v2297
    %3289 = vmatprep.mubr.bf16.mxu0 %v570
    %3290 = vmatmul.mubr.bf16.gmra.mrb[0].mxu0 %v556
    %v3291 = vpop.f32.mrb[0].mxu0
    %v3292 = vadd.f32 %v3251, %v3291
    %v3293 = vpop.f32.mrb[0].mxu0
    %v3294 = vadd.f32 %v3253, %v3293
    %v3295 = vpop.f32.mrb[0].mxu0
    %v3296 = vpop.f32.mrb[0].mxu0
    %3297 = vdwg.mxu0
    %3298 = vmatprep.subr.bf16.mxu0 %v2300
    %3299 = vmatpush1.bf16.msra.mxu0 %v2299
    %3300 = vmatprep.subr.bf16.mxu0 %v2302
    %3301 = vmatpush1.bf16.msra.mxu0 %v2301
    %3302 = vmatprep.subr.bf16.mxu0 %v2304
    %3303 = vmatpush1.bf16.msra.mxu0 %v2303
    %3304 = vmatprep.subr.bf16.mxu0 %v2306
    %3305 = vmatpush1.bf16.msra.mxu0 %v2305
    %3306 = vmatprep.subr.bf16.mxu0 %v2308
    %3307 = vmatpush1.bf16.msra.mxu0 %v2307
    %3308 = vmatprep.subr.bf16.mxu0 %v2310
    %3309 = vmatpush1.bf16.msra.mxu0 %v2309
    %3310 = vmatprep.subr.bf16.mxu0 %v2312
    %3311 = vmatpush1.bf16.msra.mxu0 %v2311
    %3312 = vmatprep.subr.bf16.mxu0 %v2314
    %3313 = vmatpush1.bf16.msra.mxu0 %v2313
    %3314 = vmatprep.subr.bf16.mxu0 %v2316
    %3315 = vmatpush1.bf16.msra.mxu0 %v2315
    %3316 = vmatprep.subr.bf16.mxu0 %v2318
    %3317 = vmatpush1.bf16.msra.mxu0 %v2317
    %3318 = vmatprep.subr.bf16.mxu0 %v2320
    %3319 = vmatpush1.bf16.msra.mxu0 %v2319
    %3320 = vmatprep.subr.bf16.mxu0 %v2322
    %3321 = vmatpush1.bf16.msra.mxu0 %v2321
    %3322 = vmatprep.subr.bf16.mxu0 %v2324
    %3323 = vmatpush1.bf16.msra.mxu0 %v2323
    %3324 = vmatprep.subr.bf16.mxu0 %v2326
    %3325 = vmatpush1.bf16.msra.mxu0 %v2325
    %3326 = vmatprep.subr.bf16.mxu0 %v2328
    %3327 = vmatpush1.bf16.msra.mxu0 %v2327
    %3328 = vmatprep.subr.bf16.mxu0 %v2330
    %3329 = vmatpush1.bf16.msra.mxu0 %v2329
    %3330 = vmatprep.mubr.bf16.mxu0 %v574
    %3331 = vmatmul.mubr.bf16.gmra.mrb[0].mxu0 %v572
    %v3332 = vpop.f32.mrb[0].mxu0
    %v3333 = vadd.f32 %v3292, %v3332
    %v3334 = vpop.f32.mrb[0].mxu0
    %v3335 = vadd.f32 %v3294, %v3334
    %v3336 = vpop.f32.mrb[0].mxu0
    %v3337 = vpop.f32.mrb[0].mxu0
    %3338 = vdwg.mxu0
    %3339 = vmatprep.subr.bf16.mxu0 %v2332
    %3340 = vmatpush1.bf16.msra.mxu0 %v2331
    %3341 = vmatprep.subr.bf16.mxu0 %v2334
    %3342 = vmatpush1.bf16.msra.mxu0 %v2333
    %3343 = vmatprep.subr.bf16.mxu0 %v2336
    %3344 = vmatpush1.bf16.msra.mxu0 %v2335
    %3345 = vmatprep.subr.bf16.mxu0 %v2338
    %3346 = vmatpush1.bf16.msra.mxu0 %v2337
    %3347 = vmatprep.subr.bf16.mxu0 %v2340
    %3348 = vmatpush1.bf16.msra.mxu0 %v2339
    %3349 = vmatprep.subr.bf16.mxu0 %v2342
    %3350 = vmatpush1.bf16.msra.mxu0 %v2341
    %3351 = vmatprep.subr.bf16.mxu0 %v2344
    %3352 = vmatpush1.bf16.msra.mxu0 %v2343
    %3353 = vmatprep.subr.bf16.mxu0 %v2346
    %3354 = vmatpush1.bf16.msra.mxu0 %v2345
    %3355 = vmatprep.subr.bf16.mxu0 %v2348
    %3356 = vmatpush1.bf16.msra.mxu0 %v2347
    %3357 = vmatprep.subr.bf16.mxu0 %v2350
    %3358 = vmatpush1.bf16.msra.mxu0 %v2349
    %3359 = vmatprep.subr.bf16.mxu0 %v2352
    %3360 = vmatpush1.bf16.msra.mxu0 %v2351
    %3361 = vmatprep.subr.bf16.mxu0 %v2354
    %3362 = vmatpush1.bf16.msra.mxu0 %v2353
    %3363 = vmatprep.subr.bf16.mxu0 %v2356
    %3364 = vmatpush1.bf16.msra.mxu0 %v2355
    %3365 = vmatprep.subr.bf16.mxu0 %v2358
    %3366 = vmatpush1.bf16.msra.mxu0 %v2357
    %3367 = vmatprep.subr.bf16.mxu0 %v2360
    %3368 = vmatpush1.bf16.msra.mxu0 %v2359
    %3369 = vmatprep.subr.bf16.mxu0 %v2362
    %3370 = vmatpush1.bf16.msra.mxu0 %v2361
    %3371 = vmatprep.mubr.bf16.mxu0 %v612
    %3372 = vmatmul.mubr.bf16.gmra.mrb[0].mxu0 %v598
    %v3373 = vpop.f32.mrb[0].mxu0
    %v3374 = vadd.f32 %v3333, %v3373
    %v3375 = vpop.f32.mrb[0].mxu0
    %v3376 = vadd.f32 %v3335, %v3375
    %v3377 = vpop.f32.mrb[0].mxu0
    %v3378 = vpop.f32.mrb[0].mxu0
    %3379 = vdwg.mxu0
    %3380 = vmatprep.subr.bf16.mxu0 %v2364
    %3381 = vmatpush1.bf16.msra.mxu0 %v2363
    %3382 = vmatprep.subr.bf16.mxu0 %v2366
    %3383 = vmatpush1.bf16.msra.mxu0 %v2365
    %3384 = vmatprep.subr.bf16.mxu0 %v2368
    %3385 = vmatpush1.bf16.msra.mxu0 %v2367
    %3386 = vmatprep.subr.bf16.mxu0 %v2370
    %3387 = vmatpush1.bf16.msra.mxu0 %v2369
    %3388 = vmatprep.subr.bf16.mxu0 %v2372
    %3389 = vmatpush1.bf16.msra.mxu0 %v2371
    %3390 = vmatprep.subr.bf16.mxu0 %v2374
    %3391 = vmatpush1.bf16.msra.mxu0 %v2373
    %3392 = vmatprep.subr.bf16.mxu0 %v2376
    %3393 = vmatpush1.bf16.msra.mxu0 %v2375
    %3394 = vmatprep.subr.bf16.mxu0 %v2378
    %3395 = vmatpush1.bf16.msra.mxu0 %v2377
    %3396 = vmatprep.subr.bf16.mxu0 %v2380
    %3397 = vmatpush1.bf16.msra.mxu0 %v2379
    %3398 = vmatprep.subr.bf16.mxu0 %v2382
    %3399 = vmatpush1.bf16.msra.mxu0 %v2381
    %3400 = vmatprep.subr.bf16.mxu0 %v2384
    %3401 = vmatpush1.bf16.msra.mxu0 %v2383
    %3402 = vmatprep.subr.bf16.mxu0 %v2386
    %3403 = vmatpush1.bf16.msra.mxu0 %v2385
    %3404 = vmatprep.subr.bf16.mxu0 %v2388
    %3405 = vmatpush1.bf16.msra.mxu0 %v2387
    %3406 = vmatprep.subr.bf16.mxu0 %v2390
    %3407 = vmatpush1.bf16.msra.mxu0 %v2389
    %3408 = vmatprep.subr.bf16.mxu0 %v2392
    %3409 = vmatpush1.bf16.msra.mxu0 %v2391
    %3410 = vmatprep.subr.bf16.mxu0 %v2394
    %3411 = vmatpush1.bf16.msra.mxu0 %v2393
    %3412 = vmatprep.mubr.bf16.mxu0 %v622
    %3413 = vmatmul.mubr.bf16.gmra.mrb[0].mxu0 %v620
    %v3414 = vpop.f32.mrb[0].mxu0
    %v3415 = vadd.f32 %v3374, %v3414
    %v3416 = vpop.f32.mrb[0].mxu0
    %v3417 = vadd.f32 %v3376, %v3416
    %v3418 = vpop.f32.mrb[0].mxu0
    %v3419 = vpop.f32.mrb[0].mxu0
    %3420 = vdwg.mxu0
    %3421 = vmatprep.subr.bf16.mxu0 %v2396
    %3422 = vmatpush1.bf16.msra.mxu0 %v2395
    %3423 = vmatprep.subr.bf16.mxu0 %v2398
    %3424 = vmatpush1.bf16.msra.mxu0 %v2397
    %3425 = vmatprep.subr.bf16.mxu0 %v2400
    %3426 = vmatpush1.bf16.msra.mxu0 %v2399
    %3427 = vmatprep.subr.bf16.mxu0 %v2402
    %3428 = vmatpush1.bf16.msra.mxu0 %v2401
    %3429 = vmatprep.subr.bf16.mxu0 %v2404
    %3430 = vmatpush1.bf16.msra.mxu0 %v2403
    %3431 = vmatprep.subr.bf16.mxu0 %v2406
    %3432 = vmatpush1.bf16.msra.mxu0 %v2405
    %3433 = vmatprep.subr.bf16.mxu0 %v2408
    %3434 = vmatpush1.bf16.msra.mxu0 %v2407
    %3435 = vmatprep.subr.bf16.mxu0 %v2410
    %3436 = vmatpush1.bf16.msra.mxu0 %v2409
    %3437 = vmatprep.subr.bf16.mxu0 %v2412
    %3438 = vmatpush1.bf16.msra.mxu0 %v2411
    %3439 = vmatprep.subr.bf16.mxu0 %v2414
    %3440 = vmatpush1.bf16.msra.mxu0 %v2413
    %3441 = vmatprep.subr.bf16.mxu0 %v2416
    %3442 = vmatpush1.bf16.msra.mxu0 %v2415
    %3443 = vmatprep.subr.bf16.mxu0 %v2418
    %3444 = vmatpush1.bf16.msra.mxu0 %v2417
    %3445 = vmatprep.subr.bf16.mxu0 %v2420
    %3446 = vmatpush1.bf16.msra.mxu0 %v2419
    %3447 = vmatprep.subr.bf16.mxu0 %v2422
    %3448 = vmatpush1.bf16.msra.mxu0 %v2421
    %3449 = vmatprep.subr.bf16.mxu0 %v2424
    %3450 = vmatpush1.bf16.msra.mxu0 %v2423
    %3451 = vmatprep.subr.bf16.mxu0 %v2426
    %3452 = vmatpush1.bf16.msra.mxu0 %v2425
    %3453 = vmatprep.mubr.bf16.mxu0 %v619
    %3454 = vmatmul.mubr.bf16.gmra.mrb[0].mxu0 %v605
    %v3455 = vpop.f32.mrb[0].mxu0
    %v3456 = vadd.f32 %v3415, %v3455
    %v3457 = vpop.f32.mrb[0].mxu0
    %v3458 = vadd.f32 %v3417, %v3457
    %v3459 = vpop.f32.mrb[0].mxu0
    %v3460 = vpop.f32.mrb[0].mxu0
    %3461 = vdwg.mxu0
    %3462 = vmatprep.subr.bf16.mxu0 %v2428
    %3463 = vmatpush1.bf16.msra.mxu0 %v2427
    %3464 = vmatprep.subr.bf16.mxu0 %v2430
    %3465 = vmatpush1.bf16.msra.mxu0 %v2429
    %3466 = vmatprep.subr.bf16.mxu0 %v2432
    %3467 = vmatpush1.bf16.msra.mxu0 %v2431
    %3468 = vmatprep.subr.bf16.mxu0 %v2434
    %3469 = vmatpush1.bf16.msra.mxu0 %v2433
    %3470 = vmatprep.subr.bf16.mxu0 %v2436
    %3471 = vmatpush1.bf16.msra.mxu0 %v2435
    %3472 = vmatprep.subr.bf16.mxu0 %v2438
    %3473 = vmatpush1.bf16.msra.mxu0 %v2437
    %3474 = vmatprep.subr.bf16.mxu0 %v2440
    %3475 = vmatpush1.bf16.msra.mxu0 %v2439
    %3476 = vmatprep.subr.bf16.mxu0 %v2442
    %3477 = vmatpush1.bf16.msra.mxu0 %v2441
    %3478 = vmatprep.subr.bf16.mxu0 %v2444
    %3479 = vmatpush1.bf16.msra.mxu0 %v2443
    %3480 = vmatprep.subr.bf16.mxu0 %v2446
    %3481 = vmatpush1.bf16.msra.mxu0 %v2445
    %3482 = vmatprep.subr.bf16.mxu0 %v2448
    %3483 = vmatpush1.bf16.msra.mxu0 %v2447
    %3484 = vmatprep.subr.bf16.mxu0 %v2450
    %3485 = vmatpush1.bf16.msra.mxu0 %v2449
    %3486 = vmatprep.subr.bf16.mxu0 %v2452
    %3487 = vmatpush1.bf16.msra.mxu0 %v2451
    %3488 = vmatprep.subr.bf16.mxu0 %v2454
    %3489 = vmatpush1.bf16.msra.mxu0 %v2453
    %3490 = vmatprep.subr.bf16.mxu0 %v2456
    %3491 = vmatpush1.bf16.msra.mxu0 %v2455
    %3492 = vmatprep.subr.bf16.mxu0 %v2458
    %3493 = vmatpush1.bf16.msra.mxu0 %v2457
    %3494 = vmatprep.mubr.bf16.mxu0 %v623
    %3495 = vmatmul.mubr.bf16.gmra.mrb[0].mxu0 %v621
    %v3496 = vpop.f32.mrb[0].mxu0
    %v3497 = vadd.f32 %v3456, %v3496
    %v3498 = vpop.f32.mrb[0].mxu0
    %v3499 = vadd.f32 %v3458, %v3498
    %v3500 = vpop.f32.mrb[0].mxu0
    %v3501 = vpop.f32.mrb[0].mxu0
    %3502 = vdwg.mxu0
    %3503 = vmatprep.subr.bf16.mxu0 %v2460
    %3504 = vmatpush1.bf16.msra.mxu0 %v2459
    %3505 = vmatprep.subr.bf16.mxu0 %v2462
    %3506 = vmatpush1.bf16.msra.mxu0 %v2461
    %3507 = vmatprep.subr.bf16.mxu0 %v2464
    %3508 = vmatpush1.bf16.msra.mxu0 %v2463
    %3509 = vmatprep.subr.bf16.mxu0 %v2466
    %3510 = vmatpush1.bf16.msra.mxu0 %v2465
    %3511 = vmatprep.subr.bf16.mxu0 %v2468
    %3512 = vmatpush1.bf16.msra.mxu0 %v2467
    %3513 = vmatprep.subr.bf16.mxu0 %v2470
    %3514 = vmatpush1.bf16.msra.mxu0 %v2469
    %3515 = vmatprep.subr.bf16.mxu0 %v2472
    %3516 = vmatpush1.bf16.msra.mxu0 %v2471
    %3517 = vmatprep.subr.bf16.mxu0 %v2474
    %3518 = vmatpush1.bf16.msra.mxu0 %v2473
    %3519 = vmatprep.subr.bf16.mxu0 %v2476
    %3520 = vmatpush1.bf16.msra.mxu0 %v2475
    %3521 = vmatprep.subr.bf16.mxu0 %v2478
    %3522 = vmatpush1.bf16.msra.mxu0 %v2477
    %3523 = vmatprep.subr.bf16.mxu0 %v2480
    %3524 = vmatpush1.bf16.msra.mxu0 %v2479
    %3525 = vmatprep.subr.bf16.mxu0 %v2482
    %3526 = vmatpush1.bf16.msra.mxu0 %v2481
    %3527 = vmatprep.subr.bf16.mxu0 %v2484
    %3528 = vmatpush1.bf16.msra.mxu0 %v2483
    %3529 = vmatprep.subr.bf16.mxu0 %v2486
    %3530 = vmatpush1.bf16.msra.mxu0 %v2485
    %3531 = vmatprep.subr.bf16.mxu0 %v2488
    %3532 = vmatpush1.bf16.msra.mxu0 %v2487
    %3533 = vmatprep.subr.bf16.mxu0 %v2490
    %3534 = vmatpush1.bf16.msra.mxu0 %v2489
    %3535 = vmatprep.mubr.bf16.mxu0 %v661
    %3536 = vmatmul.mubr.bf16.gmra.mrb[0].mxu0 %v647
    %v3537 = vpop.f32.mrb[0].mxu0
    %v3538 = vadd.f32 %v3497, %v3537
    %v3539 = vpop.f32.mrb[0].mxu0
    %v3540 = vadd.f32 %v3499, %v3539
    %v3541 = vpop.f32.mrb[0].mxu0
    %v3542 = vpop.f32.mrb[0].mxu0
    %3543 = vdwg.mxu0
    %3544 = vmatprep.subr.bf16.mxu0 %v2492
    %3545 = vmatpush1.bf16.msra.mxu0 %v2491
    %3546 = vmatprep.subr.bf16.mxu0 %v2494
    %3547 = vmatpush1.bf16.msra.mxu0 %v2493
    %3548 = vmatprep.subr.bf16.mxu0 %v2496
    %3549 = vmatpush1.bf16.msra.mxu0 %v2495
    %3550 = vmatprep.subr.bf16.mxu0 %v2498
    %3551 = vmatpush1.bf16.msra.mxu0 %v2497
    %3552 = vmatprep.subr.bf16.mxu0 %v2500
    %3553 = vmatpush1.bf16.msra.mxu0 %v2499
    %3554 = vmatprep.subr.bf16.mxu0 %v2502
    %3555 = vmatpush1.bf16.msra.mxu0 %v2501
    %3556 = vmatprep.subr.bf16.mxu0 %v2504
    %3557 = vmatpush1.bf16.msra.mxu0 %v2503
    %3558 = vmatprep.subr.bf16.mxu0 %v2506
    %3559 = vmatpush1.bf16.msra.mxu0 %v2505
    %3560 = vmatprep.subr.bf16.mxu0 %v2508
    %3561 = vmatpush1.bf16.msra.mxu0 %v2507
    %3562 = vmatprep.subr.bf16.mxu0 %v2510
    %3563 = vmatpush1.bf16.msra.mxu0 %v2509
    %3564 = vmatprep.subr.bf16.mxu0 %v2512
    %3565 = vmatpush1.bf16.msra.mxu0 %v2511
    %3566 = vmatprep.subr.bf16.mxu0 %v2514
    %3567 = vmatpush1.bf16.msra.mxu0 %v2513
    %3568 = vmatprep.subr.bf16.mxu0 %v2516
    %3569 = vmatpush1.bf16.msra.mxu0 %v2515
    %3570 = vmatprep.subr.bf16.mxu0 %v2518
    %3571 = vmatpush1.bf16.msra.mxu0 %v2517
    %3572 = vmatprep.subr.bf16.mxu0 %v2520
    %3573 = vmatpush1.bf16.msra.mxu0 %v2519
    %3574 = vmatprep.subr.bf16.mxu0 %v2522
    %3575 = vmatpush1.bf16.msra.mxu0 %v2521
    %3576 = vmatprep.mubr.bf16.mxu0 %v671
    %3577 = vmatmul.mubr.bf16.gmra.mrb[0].mxu0 %v669
    %v3578 = vpop.f32.mrb[0].mxu0
    %v3579 = vadd.f32 %v3538, %v3578
    %v3580 = vpop.f32.mrb[0].mxu0
    %v3581 = vadd.f32 %v3540, %v3580
    %v3582 = vpop.f32.mrb[0].mxu0
    %v3583 = vpop.f32.mrb[0].mxu0
    %3584 = vdwg.mxu0
    %3585 = vmatprep.subr.bf16.mxu0 %v2524
    %3586 = vmatpush1.bf16.msra.mxu0 %v2523
    %3587 = vmatprep.subr.bf16.mxu0 %v2526
    %3588 = vmatpush1.bf16.msra.mxu0 %v2525
    %3589 = vmatprep.subr.bf16.mxu0 %v2528
    %3590 = vmatpush1.bf16.msra.mxu0 %v2527
    %3591 = vmatprep.subr.bf16.mxu0 %v2530
    %3592 = vmatpush1.bf16.msra.mxu0 %v2529
    %3593 = vmatprep.subr.bf16.mxu0 %v2532
    %3594 = vmatpush1.bf16.msra.mxu0 %v2531
    %3595 = vmatprep.subr.bf16.mxu0 %v2534
    %3596 = vmatpush1.bf16.msra.mxu0 %v2533
    %3597 = vmatprep.subr.bf16.mxu0 %v2536
    %3598 = vmatpush1.bf16.msra.mxu0 %v2535
    %3599 = vmatprep.subr.bf16.mxu0 %v2538
    %3600 = vmatpush1.bf16.msra.mxu0 %v2537
    %3601 = vmatprep.subr.bf16.mxu0 %v2540
    %3602 = vmatpush1.bf16.msra.mxu0 %v2539
    %3603 = vmatprep.subr.bf16.mxu0 %v2542
    %3604 = vmatpush1.bf16.msra.mxu0 %v2541
    %3605 = vmatprep.subr.bf16.mxu0 %v2544
    %3606 = vmatpush1.bf16.msra.mxu0 %v2543
    %3607 = vmatprep.subr.bf16.mxu0 %v2546
    %3608 = vmatpush1.bf16.msra.mxu0 %v2545
    %3609 = vmatprep.subr.bf16.mxu0 %v2548
    %3610 = vmatpush1.bf16.msra.mxu0 %v2547
    %3611 = vmatprep.subr.bf16.mxu0 %v2550
    %3612 = vmatpush1.bf16.msra.mxu0 %v2549
    %3613 = vmatprep.subr.bf16.mxu0 %v2552
    %3614 = vmatpush1.bf16.msra.mxu0 %v2551
    %3615 = vmatprep.subr.bf16.mxu0 %v2554
    %3616 = vmatpush1.bf16.msra.mxu0 %v2553
    %3617 = vmatprep.mubr.bf16.mxu0 %v668
    %3618 = vmatmul.mubr.bf16.gmra.mrb[0].mxu0 %v654
    %v3619 = vpop.f32.mrb[0].mxu0
    %v3620 = vadd.f32 %v3579, %v3619
    %v3621 = vpop.f32.mrb[0].mxu0
    %v3622 = vadd.f32 %v3581, %v3621
    %v3623 = vpop.f32.mrb[0].mxu0
    %v3624 = vpop.f32.mrb[0].mxu0
    %3625 = vdwg.mxu0
    %3626 = vmatprep.subr.bf16.mxu0 %v2556
    %3627 = vmatpush1.bf16.msra.mxu0 %v2555
    %3628 = vmatprep.subr.bf16.mxu0 %v2558
    %3629 = vmatpush1.bf16.msra.mxu0 %v2557
    %3630 = vmatprep.subr.bf16.mxu0 %v2560
    %3631 = vmatpush1.bf16.msra.mxu0 %v2559
    %3632 = vmatprep.subr.bf16.mxu0 %v2562
    %3633 = vmatpush1.bf16.msra.mxu0 %v2561
    %3634 = vmatprep.subr.bf16.mxu0 %v2564
    %3635 = vmatpush1.bf16.msra.mxu0 %v2563
    %3636 = vmatprep.subr.bf16.mxu0 %v2566
    %3637 = vmatpush1.bf16.msra.mxu0 %v2565
    %3638 = vmatprep.subr.bf16.mxu0 %v2568
    %3639 = vmatpush1.bf16.msra.mxu0 %v2567
    %3640 = vmatprep.subr.bf16.mxu0 %v2570
    %3641 = vmatpush1.bf16.msra.mxu0 %v2569
    %3642 = vmatprep.subr.bf16.mxu0 %v2572
    %3643 = vmatpush1.bf16.msra.mxu0 %v2571
    %3644 = vmatprep.subr.bf16.mxu0 %v2574
    %3645 = vmatpush1.bf16.msra.mxu0 %v2573
    %3646 = vmatprep.subr.bf16.mxu0 %v2576
    %3647 = vmatpush1.bf16.msra.mxu0 %v2575
    %3648 = vmatprep.subr.bf16.mxu0 %v2578
    %3649 = vmatpush1.bf16.msra.mxu0 %v2577
    %3650 = vmatprep.subr.bf16.mxu0 %v2580
    %3651 = vmatpush1.bf16.msra.mxu0 %v2579
    %3652 = vmatprep.subr.bf16.mxu0 %v2582
    %3653 = vmatpush1.bf16.msra.mxu0 %v2581
    %3654 = vmatprep.subr.bf16.mxu0 %v2584
    %3655 = vmatpush1.bf16.msra.mxu0 %v2583
    %3656 = vmatprep.subr.bf16.mxu0 %v2586
    %3657 = vmatpush1.bf16.msra.mxu0 %v2585
    %3658 = vmatprep.mubr.bf16.mxu0 %v672
    %3659 = vmatmul.mubr.bf16.gmra.mrb[0].mxu0 %v670
    %v3660 = vpop.f32.mrb[0].mxu0
    %v3661 = vadd.f32 %v3620, %v3660
    %v3662 = vpop.f32.mrb[0].mxu0
    %v3663 = vadd.f32 %v3622, %v3662
    %v3664 = vpop.f32.mrb[0].mxu0
    %v3665 = vpop.f32.mrb[0].mxu0
    %3666 = vdwg.mxu0
    %3667 = vmatprep.subr.bf16.mxu0 %v2588
    %3668 = vmatpush1.bf16.msra.mxu0 %v2587
    %3669 = vmatprep.subr.bf16.mxu0 %v2590
    %3670 = vmatpush1.bf16.msra.mxu0 %v2589
    %3671 = vmatprep.subr.bf16.mxu0 %v2592
    %3672 = vmatpush1.bf16.msra.mxu0 %v2591
    %3673 = vmatprep.subr.bf16.mxu0 %v2594
    %3674 = vmatpush1.bf16.msra.mxu0 %v2593
    %3675 = vmatprep.subr.bf16.mxu0 %v2596
    %3676 = vmatpush1.bf16.msra.mxu0 %v2595
    %3677 = vmatprep.subr.bf16.mxu0 %v2598
    %3678 = vmatpush1.bf16.msra.mxu0 %v2597
    %3679 = vmatprep.subr.bf16.mxu0 %v2600
    %3680 = vmatpush1.bf16.msra.mxu0 %v2599
    %3681 = vmatprep.subr.bf16.mxu0 %v2602
    %3682 = vmatpush1.bf16.msra.mxu0 %v2601
    %3683 = vmatprep.subr.bf16.mxu0 %v2604
    %3684 = vmatpush1.bf16.msra.mxu0 %v2603
    %3685 = vmatprep.subr.bf16.mxu0 %v2606
    %3686 = vmatpush1.bf16.msra.mxu0 %v2605
    %3687 = vmatprep.subr.bf16.mxu0 %v2608
    %3688 = vmatpush1.bf16.msra.mxu0 %v2607
    %3689 = vmatprep.subr.bf16.mxu0 %v2610
    %3690 = vmatpush1.bf16.msra.mxu0 %v2609
    %3691 = vmatprep.subr.bf16.mxu0 %v2612
    %3692 = vmatpush1.bf16.msra.mxu0 %v2611
    %3693 = vmatprep.subr.bf16.mxu0 %v2614
    %3694 = vmatpush1.bf16.msra.mxu0 %v2613
    %3695 = vmatprep.subr.bf16.mxu0 %v2616
    %3696 = vmatpush1.bf16.msra.mxu0 %v2615
    %3697 = vmatprep.subr.bf16.mxu0 %v2618
    %3698 = vmatpush1.bf16.msra.mxu0 %v2617
    %3699 = vmatprep.mubr.bf16.mxu0 %v710
    %3700 = vmatmul.mubr.bf16.gmra.mrb[0].mxu0 %v696
    %v3701 = vpop.f32.mrb[0].mxu0
    %v3702 = vadd.f32 %v3661, %v3701
    %v3703 = vpop.f32.mrb[0].mxu0
    %v3704 = vadd.f32 %v3663, %v3703
    %v3705 = vpop.f32.mrb[0].mxu0
    %v3706 = vpop.f32.mrb[0].mxu0
    %3707 = vdwg.mxu0
    %3708 = vmatprep.subr.bf16.mxu0 %v2620
    %3709 = vmatpush1.bf16.msra.mxu0 %v2619
    %3710 = vmatprep.subr.bf16.mxu0 %v2622
    %3711 = vmatpush1.bf16.msra.mxu0 %v2621
    %3712 = vmatprep.subr.bf16.mxu0 %v2624
    %3713 = vmatpush1.bf16.msra.mxu0 %v2623
    %3714 = vmatprep.subr.bf16.mxu0 %v2626
    %3715 = vmatpush1.bf16.msra.mxu0 %v2625
    %3716 = vmatprep.subr.bf16.mxu0 %v2628
    %3717 = vmatpush1.bf16.msra.mxu0 %v2627
    %3718 = vmatprep.subr.bf16.mxu0 %v2630
    %3719 = vmatpush1.bf16.msra.mxu0 %v2629
    %3720 = vmatprep.subr.bf16.mxu0 %v2632
    %3721 = vmatpush1.bf16.msra.mxu0 %v2631
    %3722 = vmatprep.subr.bf16.mxu0 %v2634
    %3723 = vmatpush1.bf16.msra.mxu0 %v2633
    %3724 = vmatprep.subr.bf16.mxu0 %v2636
    %3725 = vmatpush1.bf16.msra.mxu0 %v2635
    %3726 = vmatprep.subr.bf16.mxu0 %v2638
    %3727 = vmatpush1.bf16.msra.mxu0 %v2637
    %3728 = vmatprep.subr.bf16.mxu0 %v2640
    %3729 = vmatpush1.bf16.msra.mxu0 %v2639
    %3730 = vmatprep.subr.bf16.mxu0 %v2642
    %3731 = vmatpush1.bf16.msra.mxu0 %v2641
    %3732 = vmatprep.subr.bf16.mxu0 %v2644
    %3733 = vmatpush1.bf16.msra.mxu0 %v2643
    %3734 = vmatprep.subr.bf16.mxu0 %v2646
    %3735 = vmatpush1.bf16.msra.mxu0 %v2645
    %3736 = vmatprep.subr.bf16.mxu0 %v2648
    %3737 = vmatpush1.bf16.msra.mxu0 %v2647
    %3738 = vmatprep.subr.bf16.mxu0 %v2650
    %3739 = vmatpush1.bf16.msra.mxu0 %v2649
    %3740 = vmatprep.mubr.bf16.mxu0 %v720
    %3741 = vmatmul.mubr.bf16.gmra.mrb[0].mxu0 %v718
    %v3742 = vpop.f32.mrb[0].mxu0
    %v3743 = vadd.f32 %v3702, %v3742
    %v3744 = vpop.f32.mrb[0].mxu0
    %v3745 = vadd.f32 %v3704, %v3744
    %v3746 = vpop.f32.mrb[0].mxu0
    %v3747 = vpop.f32.mrb[0].mxu0
    %3748 = vdwg.mxu0
    %3749 = vmatprep.subr.bf16.mxu0 %v2652
    %3750 = vmatpush1.bf16.msra.mxu0 %v2651
    %3751 = vmatprep.subr.bf16.mxu0 %v2654
    %3752 = vmatpush1.bf16.msra.mxu0 %v2653
    %3753 = vmatprep.subr.bf16.mxu0 %v2656
    %3754 = vmatpush1.bf16.msra.mxu0 %v2655
    %3755 = vmatprep.subr.bf16.mxu0 %v2658
    %3756 = vmatpush1.bf16.msra.mxu0 %v2657
    %3757 = vmatprep.subr.bf16.mxu0 %v2660
    %3758 = vmatpush1.bf16.msra.mxu0 %v2659
    %3759 = vmatprep.subr.bf16.mxu0 %v2662
    %3760 = vmatpush1.bf16.msra.mxu0 %v2661
    %3761 = vmatprep.subr.bf16.mxu0 %v2664
    %3762 = vmatpush1.bf16.msra.mxu0 %v2663
    %3763 = vmatprep.subr.bf16.mxu0 %v2666
    %3764 = vmatpush1.bf16.msra.mxu0 %v2665
    %3765 = vmatprep.subr.bf16.mxu0 %v2668
    %3766 = vmatpush1.bf16.msra.mxu0 %v2667
    %3767 = vmatprep.subr.bf16.mxu0 %v2670
    %3768 = vmatpush1.bf16.msra.mxu0 %v2669
    %3769 = vmatprep.subr.bf16.mxu0 %v2672
    %3770 = vmatpush1.bf16.msra.mxu0 %v2671
    %3771 = vmatprep.subr.bf16.mxu0 %v2674
    %3772 = vmatpush1.bf16.msra.mxu0 %v2673
    %3773 = vmatprep.subr.bf16.mxu0 %v2676
    %3774 = vmatpush1.bf16.msra.mxu0 %v2675
    %3775 = vmatprep.subr.bf16.mxu0 %v2678
    %3776 = vmatpush1.bf16.msra.mxu0 %v2677
    %3777 = vmatprep.subr.bf16.mxu0 %v2680
    %3778 = vmatpush1.bf16.msra.mxu0 %v2679
    %3779 = vmatprep.subr.bf16.mxu0 %v2682
    %3780 = vmatpush1.bf16.msra.mxu0 %v2681
    %3781 = vmatprep.mubr.bf16.mxu0 %v717
    %3782 = vmatmul.mubr.bf16.gmra.mrb[0].mxu0 %v703
    %v3783 = vpop.f32.mrb[0].mxu0
    %v3784 = vadd.f32 %v3743, %v3783
    %v3785 = vpop.f32.mrb[0].mxu0
    %v3786 = vadd.f32 %v3745, %v3785
    %v3787 = vpop.f32.mrb[0].mxu0
    %v3788 = vpop.f32.mrb[0].mxu0
    %3789 = vdwg.mxu0
    %3790 = vmatprep.subr.bf16.mxu0 %v2684
    %3791 = vmatpush1.bf16.msra.mxu0 %v2683
    %3792 = vmatprep.subr.bf16.mxu0 %v2686
    %3793 = vmatpush1.bf16.msra.mxu0 %v2685
    %3794 = vmatprep.subr.bf16.mxu0 0
    %3795 = vmatpush1.bf16.msra.mxu0 0
    %3796 = vmatprep.subr.bf16.mxu0 0
    %3797 = vmatpush1.bf16.msra.mxu0 0
    %3798 = vmatprep.subr.bf16.mxu0 0
    %3799 = vmatpush1.bf16.msra.mxu0 0
    %3800 = vmatprep.subr.bf16.mxu0 0
    %3801 = vmatpush1.bf16.msra.mxu0 0
    %3802 = vmatprep.subr.bf16.mxu0 0
    %3803 = vmatpush1.bf16.msra.mxu0 0
    %3804 = vmatprep.subr.bf16.mxu0 0
    %3805 = vmatpush1.bf16.msra.mxu0 0
    %3806 = vmatprep.subr.bf16.mxu0 0
    %3807 = vmatpush1.bf16.msra.mxu0 0
    %3808 = vmatprep.subr.bf16.mxu0 0
    %3809 = vmatpush1.bf16.msra.mxu0 0
    %3810 = vmatprep.subr.bf16.mxu0 0
    %3811 = vmatpush1.bf16.msra.mxu0 0
    %3812 = vmatprep.subr.bf16.mxu0 0
    %3813 = vmatpush1.bf16.msra.mxu0 0
    %3814 = vmatprep.subr.bf16.mxu0 0
    %3815 = vmatpush1.bf16.msra.mxu0 0
    %3816 = vmatprep.subr.bf16.mxu0 0
    %3817 = vmatpush1.bf16.msra.mxu0 0
    %3818 = vmatprep.subr.bf16.mxu0 0
    %3819 = vmatpush1.bf16.msra.mxu0 0
    %3820 = vmatprep.subr.bf16.mxu0 0
    %3821 = vmatpush1.bf16.msra.mxu0 0
    %3822 = vmatprep.mubr.bf16.mxu0 0
    %3823 = vmatmul.mubr.bf16.gmra.mrb[0].mxu0 %v3173
    %v3824 = vpop.f32.mrb[0].mxu0
    %v3825 = vadd.f32 %v3784, %v3824
    %v3826 = vpop.f32.mrb[0].mxu0
    %v3827 = vadd.f32 %v3786, %v3826
    %v3828 = vpop.f32.mrb[0].mxu0
    %v3829 = vpop.f32.mrb[0].mxu0
    %3830 = vdwg.mxu0
    %v3831 = vld [vmem:[%s3] sm:$0xff]
    %v3832 = vld [vmem:[%s3 + $0x8] sm:$0xff]
    %v3833 = vld [vmem:[%s3 + $0x10] sm:$0xff]
    %v3834 = vld [vmem:[%s3 + $0x18] sm:$0xff]
    %v3835 = vld [vmem:[%s3 + $0x20] sm:$0xff]
    %v3836 = vld [vmem:[%s3 + $0x28] sm:$0xff]
    %v3837 = vld [vmem:[%s3 + $0x30] sm:$0xff]
    %v3838 = vld [vmem:[%s3 + $0x38] sm:$0xff]
    %v3839 = vld [vmem:[%s3 + $0x40] sm:$0xff]
    %v3840 = vld [vmem:[%s3 + $0x48] sm:$0xff]
    %v3841 = vld [vmem:[%s3 + $0x50] sm:$0xff]
    %v3842 = vld [vmem:[%s3 + $0x58] sm:$0xff]
    %v3843 = vld [vmem:[%s3 + $0x60] sm:$0xff]
    %v3844 = vld [vmem:[%s3 + $0x68] sm:$0xff]
    %v3845 = vld [vmem:[%s3 + $0x70] sm:$0xff]
    %v3846 = vld [vmem:[%s3 + $0x78] sm:$0xff]
    %v3847 = vld [vmem:[%s3 + $0x80] sm:$0xff]
    %v3848 = vld [vmem:[%s3 + $0x88] sm:$0xff]
    %v3849 = vld [vmem:[%s3 + $0x90] sm:$0xff]
    %v3850 = vld [vmem:[%s3 + $0x98] sm:$0xff]
    %v3851 = vld [vmem:[%s3 + $0xa0] sm:$0xff]
    %v3852 = vld [vmem:[%s3 + $0xa8] sm:$0xff]
    %v3853 = vld [vmem:[%s3 + $0xb0] sm:$0xff]
    %v3854 = vld [vmem:[%s3 + $0xb8] sm:$0xff]
    %v3855 = vld [vmem:[%s3 + $0xc0] sm:$0xff]
    %v3856 = vld [vmem:[%s3 + $0xc8] sm:$0xff]
    %v3857 = vld [vmem:[%s3 + $0xd0] sm:$0xff]
    %v3858 = vld [vmem:[%s3 + $0xd8] sm:$0xff]
    %v3859 = vld [vmem:[%s3 + $0xe0] sm:$0xff]
    %v3860 = vld [vmem:[%s3 + $0xe8] sm:$0xff]
    %v3861 = vld [vmem:[%s3 + $0xf0] sm:$0xff]
    %v3862 = vld [vmem:[%s3 + $0xf8] sm:$0xff]
    %v3863 = vld [vmem:[%s4] sm:$0x1]
    %v3865 = vlaneseq
    %v3866 = vshrl.u32 %v3865, 7
    %v3867 = vsub.s32 0, %v3866
    %v3868 = vrot.slane %v3863, %v3867
    %3870 = vmatprep.subr.mxu0 0.0
    %3871 = vmatpush1.msra.mxu0 %v3831
    %3872 = vmatprep.subr.mxu0 0.0
    %3873 = vmatpush1.msra.mxu0 %v3832
    %3874 = vmatprep.subr.mxu0 0.0
    %3875 = vmatpush1.msra.mxu0 %v3833
    %3876 = vmatprep.subr.mxu0 0.0
    %3877 = vmatpush1.msra.mxu0 %v3834
    %3878 = vmatprep.subr.mxu0 0.0
    %3879 = vmatpush1.msra.mxu0 %v3835
    %3880 = vmatprep.subr.mxu0 0.0
    %3881 = vmatpush1.msra.mxu0 %v3836
    %3882 = vmatprep.subr.mxu0 0.0
    %3883 = vmatpush1.msra.mxu0 %v3837
    %3884 = vmatprep.subr.mxu0 0.0
    %3885 = vmatpush1.msra.mxu0 %v3838
    %3886 = vmatprep.subr.mxu0 0.0
    %3887 = vmatpush1.msra.mxu0 %v3839
    %3888 = vmatprep.subr.mxu0 0.0
    %3889 = vmatpush1.msra.mxu0 %v3840
    %3890 = vmatprep.subr.mxu0 0.0
    %3891 = vmatpush1.msra.mxu0 %v3841
    %3892 = vmatprep.subr.mxu0 0.0
    %3893 = vmatpush1.msra.mxu0 %v3842
    %3894 = vmatprep.subr.mxu0 0.0
    %3895 = vmatpush1.msra.mxu0 %v3843
    %3896 = vmatprep.subr.mxu0 0.0
    %3897 = vmatpush1.msra.mxu0 %v3844
    %3898 = vmatprep.subr.mxu0 0.0
    %3899 = vmatpush1.msra.mxu0 %v3845
    %3900 = vmatprep.subr.mxu0 0.0
    %3901 = vmatpush1.msra.mxu0 %v3846
    %3902 = vmatprep.subr.mxu0 0.0
    %3903 = vmatpush1.msra.mxu0 %v3847
    %3904 = vmatprep.subr.mxu0 0.0
    %3905 = vmatpush1.msra.mxu0 %v3848
    %3906 = vmatprep.subr.mxu0 0.0
    %3907 = vmatpush1.msra.mxu0 %v3849
    %3908 = vmatprep.subr.mxu0 0.0
    %3909 = vmatpush1.msra.mxu0 %v3850
    %3910 = vmatprep.subr.mxu0 0.0
    %3911 = vmatpush1.msra.mxu0 %v3851
    %3912 = vmatprep.subr.mxu0 0.0
    %3913 = vmatpush1.msra.mxu0 %v3852
    %3914 = vmatprep.subr.mxu0 0.0
    %3915 = vmatpush1.msra.mxu0 %v3853
    %3916 = vmatprep.subr.mxu0 0.0
    %3917 = vmatpush1.msra.mxu0 %v3854
    %3918 = vmatprep.subr.mxu0 0.0
    %3919 = vmatpush1.msra.mxu0 %v3855
    %3920 = vmatprep.subr.mxu0 0.0
    %3921 = vmatpush1.msra.mxu0 %v3856
    %3922 = vmatprep.subr.mxu0 0.0
    %3923 = vmatpush1.msra.mxu0 %v3857
    %3924 = vmatprep.subr.mxu0 0.0
    %3925 = vmatpush1.msra.mxu0 %v3858
    %3926 = vmatprep.subr.mxu0 0.0
    %3927 = vmatpush1.msra.mxu0 %v3859
    %3928 = vmatprep.subr.mxu0 0.0
    %3929 = vmatpush1.msra.mxu0 %v3860
    %3930 = vmatprep.subr.mxu0 0.0
    %3931 = vmatpush1.msra.mxu0 %v3861
    %3932 = vmatprep.subr.mxu0 0.0
    %3933 = vmatpush1.msra.mxu0 %v3862
    %3934 = vmatprep.mubr.f32.mxu0 %v3827
    %3935 = vmatmul.mubr.f32.gmra.mrb[0].mxu0 %v3825
    %v3936 = vpop.f32.mrb[0].mxu0
    %v3937 = vadd.f32 %v3868, %v3936
    %v3938 = vpop.f32.mrb[0].mxu0
    %3939 = vdwg.mxu0
    %vm3940 = vcmask 25600
    %v3941 = vsel %vm3940, %v3937, -inf
    %3942 = vmax.xlane.f32.xlu0 %v3941
    %v3943 = vpop.xlane.xlu0 %3942
    %v3944 = vsub.f32 %v3937, %v3943
    %v3945 = vmul.f32 %v3944, 1.442695
    %v3946 = vpow.pop %v3945
    %v3947 = vsel %vm3940, %v3946, 0.0
    %3948 = vadd.xlane.f32.xlu0 %v3947
    %v3949 = vpop.xlane.xlu0 %3948
    %v3950 = vrcp.pop %v3949
    %v3951 = vmul.f32 %v3946, %v3950
    %3952 = vst.msk [vmem:[#allocation2] sm:$0x3] %vm3940, %v3951
    // Predicated region
    $region22: #{actor_forward.5} parent=1 // pred_check
      _
    $region23: #{actor_forward.5} parent=1 // pred_check_branch
      %3954 = sbr.rel (0) target = $region25
    $region24: #{actor_forward.5} parent=1 // pred_region
      %s3956 = ssub.s32 32, 32
      %3957 = vsyncadd [#allocation3], %s3956
      %s3959 = sshll.u32 [#allocation2], 4
      %s3960 = int_to_ptr.vmem [resolvable:$true] %s3959
      %3962 = dma.vmem_to_hbm [thread:$0]  %s3960, 32, %s5, [#allocation3]
    $region25: #{actor_forward.5} parent=1 // pred_fallthru
      _
    // Predicated region
    $region26: #{actor_forward.5} parent=1 // pred_check
      _
    $region27: #{actor_forward.5} parent=1 // pred_check_branch
      %3964 = sbr.rel (0) target = $region29
    $region28: #{actor_forward.5} parent=1 // pred_region
      %3965 = dma.done [#allocation3], 32
    $region29: #{actor_forward.5} parent=1 // pred_fallthru
      _
    %3966 = vsyncpa [#allocation3], 1

</llo_original>
